<compile_context>
chip_gen: v6e
topology: v6e:2x2x1
jax: 0.10.0
libtpu: 0.0.40
codegen_flags: <defaults>
</compile_context>

<pallas_src>
import math

import jax
import jax.numpy as jnp
from jax import lax
from jax.experimental import pallas as pl
from jax.experimental.pallas import tpu as pltpu

_EPS = 1e-5  # PyTorch GroupNorm default eps


# ----------------------------------------------------------------------------
# helpers
# ----------------------------------------------------------------------------
def _round_up(x, m):
    return (x + m - 1) // m * m


def get_group_size(channels, goal=8):
    """num_groups such that each group has ~`goal` channels and divides channels."""
    ng = max(1, channels // goal)
    while channels % ng != 0:
        ng -= 1
    return ng


def _group_matrices(channels, num_groups):
    """Membership matrices for MXU-based GroupNorm statistics."""
    gs = channels // num_groups
    gid = jnp.arange(channels, dtype=jnp.int32) // gs
    m = (gid[:, None] == jnp.arange(num_groups, dtype=jnp.int32)[None, :])
    m = m.astype(jnp.float32)
    return m / gs, m.T  # (C, G) per-group-mean matrix, (G, C) broadcast matrix


# ----------------------------------------------------------------------------
# one-time constant folding (group matrices, gamma folding, bf16 weights)
# ----------------------------------------------------------------------------
def fold_params(params):
    (g1w, g1b) = params["gn1"]
    (w1, b1) = params["lin1"]
    (g2w, g2b) = params["gn2"]
    (w2, b2) = params["lin2"]

    C3 = g1w.shape[1]
    C = C3 // 3
    H = w1.shape[1]
    G1 = get_group_size(C3, 3 * 8)     # GroupNorm over the (virtual) 3C concat
    G2 = get_group_size(H)             # GroupNorm over hidden_ch

    m1div, m1bc = _group_matrices(C3, G1)
    m2div, m2bc = _group_matrices(H, G2)

    def seg_rows(m):   # (3C, X) -> (3, C, X)
        return jnp.stack([m[s * C:(s + 1) * C] for s in range(3)])

    def seg_cols(m):   # (G, 3C) -> (3, G, C)
        return jnp.stack([m[:, s * C:(s + 1) * C] for s in range(3)])

    return {
        # GroupNorm-1 constants, split per concat segment (src / tgt / edge_attr)
        "g1div": seg_rows(m1div),                       # (3, C, G1) group means
        "g1bc": seg_cols(m1bc),                         # (3, G1, C) mean broadcast
        "g1sc": seg_cols(m1bc * g1w),                   # (3, G1, C) gamma-folded scale
        "g1beta": jnp.stack([g1b[:, s * C:(s + 1) * C] for s in range(3)]),  # (3,1,C)
        # Linear-1 split per segment, bf16 operands (f32 accumulation on MXU)
        "w1": seg_rows(w1).astype(jnp.bfloat16),        # (3, C, H)
        "b1": b1,                                       # (1, H) f32
        # GroupNorm-2 constants
        "g2div": m2div,                                 # (H, G2)
        "g2bc": m2bc,                                   # (G2, H)
        "g2sc": m2bc * g2w,                             # (G2, H) gamma-folded
        "g2beta": g2b,                                  # (1, H)
        # Linear-2
        "w2": w2.astype(jnp.bfloat16),                  # (H, C)
        "b2": b2,                                       # (1, C) f32
    }


# ----------------------------------------------------------------------------
# fused kernel
# ----------------------------------------------------------------------------
def _edge_func_kernel(src_ref, tgt_ref, ea_ref,
                      g1div_ref, g1bc_ref, g1sc_ref, g1beta_ref,
                      w1_ref, b1_ref,
                      g2div_ref, g2bc_ref, g2sc_ref, g2beta_ref,
                      w2_ref, b2_ref,
                      o_ref):
    f32 = jnp.float32
    ea = ea_ref[...]                                    # (tile, C) f32, reused for residual
    segs = (src_ref[...], tgt_ref[...], ea)

    # ---- GroupNorm over the virtual concat [src | tgt | ea] ------------------
    # Group statistics via small f32 MXU matmuls (accurate multi-pass f32;
    # keeps XLU/VALU free).  No (tile, 3C) concat is ever materialized.
    mean_g = jnp.dot(segs[0], g1div_ref[0], preferred_element_type=f32)
    mean_g += jnp.dot(segs[1], g1div_ref[1], preferred_element_type=f32)
    mean_g += jnp.dot(segs[2], g1div_ref[2], preferred_element_type=f32)   # (tile, G1)

    d = [segs[s] - jnp.dot(mean_g, g1bc_ref[s], preferred_element_type=f32)
         for s in range(3)]                                                # centered

    var_g = jnp.dot(d[0] * d[0], g1div_ref[0], preferred_element_type=f32)
    var_g += jnp.dot(d[1] * d[1], g1div_ref[1], preferred_element_type=f32)
    var_g += jnp.dot(d[2] * d[2], g1div_ref[2], preferred_element_type=f32)

    inv_g = lax.rsqrt(var_g + _EPS)                     # (tile, G1): group-res EUP only

    # ---- normalize + affine + ReLU per segment, then Linear-1 (bf16 MXU) -----
    def norm_relu(s):
        scale_c = jnp.dot(inv_g, g1sc_ref[s], preferred_element_type=f32)  # gamma folded
        n = jnp.maximum(d[s] * scale_c + g1beta_ref[s], 0.0)               # Dropout(eval)+ReLU
        return n.astype(jnp.bfloat16)

    h1 = jnp.dot(norm_relu(0), w1_ref[0], preferred_element_type=f32)
    h1 += jnp.dot(norm_relu(1), w1_ref[1], preferred_element_type=f32)
    h1 += jnp.dot(norm_relu(2), w1_ref[2], preferred_element_type=f32)
    h1 += b1_ref[...]                                   # (tile, H) f32

    # ---- GroupNorm-2 + ReLU + Linear-2 ---------------------------------------
    mean_g2 = jnp.dot(h1, g2div_ref[...], preferred_element_type=f32)
    d2 = h1 - jnp.dot(mean_g2, g2bc_ref[...], preferred_element_type=f32)
    var_g2 = jnp.dot(d2 * d2, g2div_ref[...], preferred_element_type=f32)
    inv_g2 = lax.rsqrt(var_g2 + _EPS)                   # (tile, G2)
    scale2 = jnp.dot(inv_g2, g2sc_ref[...], preferred_element_type=f32)
    n2 = jnp.maximum(d2 * scale2 + g2beta_ref[...], 0.0).astype(jnp.bfloat16)

    out = jnp.dot(n2, w2_ref[...], preferred_element_type=f32) + b2_ref[...]
    o_ref[...] = (out + ea).astype(o_ref.dtype)         # residual (useRes=True)


# ----------------------------------------------------------------------------
# wrapper
# ----------------------------------------------------------------------------
def edge_func(source, target, edge_attr, folded, *, tile_e=1024, min_grid_steps=4):
    E, C = edge_attr.shape
    H = folded["b1"].shape[1]
    G1 = folded["g1div"].shape[2]
    G2 = folded["g2div"].shape[1]

    # Row tile: multiple of 8, at most tile_e, capped so the 'parallel' grid
    # has >= min_grid_steps steps (v7x has 2 TensorCores to keep busy).
    # Non-divisible E is handled by a partial last block (no padding copies):
    # garbage tail-row reads stay row-local and the tail write is masked.
    tile = max(8, min(tile_e, _round_up(pl.cdiv(E, min_grid_steps), 8)))
    grid = (pl.cdiv(E, tile),)

    rows = lambda i: (i, 0)
    c2 = lambda i: (0, 0)
    c3 = lambda i: (0, 0, 0)

    in_specs = [
        pl.BlockSpec((tile, C), rows),      # source tile
        pl.BlockSpec((tile, C), rows),      # target tile
        pl.BlockSpec((tile, C), rows),      # edge_attr tile
        pl.BlockSpec((3, C, G1), c3),       # gn1 group-mean matrices (per segment)
        pl.BlockSpec((3, G1, C), c3),       # gn1 mean-broadcast matrices
        pl.BlockSpec((3, G1, C), c3),       # gn1 gamma-folded scale matrices
        pl.BlockSpec((3, 1, C), c3),        # gn1 beta slices
        pl.BlockSpec((3, C, H), c3),        # W1 slices (bf16)
        pl.BlockSpec((1, H), c2),           # b1
        pl.BlockSpec((H, G2), c2),          # gn2 group-mean matrix
        pl.BlockSpec((G2, H), c2),          # gn2 mean-broadcast matrix
        pl.BlockSpec((G2, H), c2),          # gn2 gamma-folded scale matrix
        pl.BlockSpec((1, H), c2),           # gn2 beta
        pl.BlockSpec((H, C), c2),           # W2 (bf16)
        pl.BlockSpec((1, C), c2),           # b2
    ]

    return pl.pallas_call(
        _edge_func_kernel,
        out_shape=jax.ShapeDtypeStruct((E, C), jnp.float32),
        grid=grid,
        in_specs=in_specs,
        out_specs=pl.BlockSpec((tile, C), rows),
        compiler_params=pltpu.CompilerParams(
            dimension_semantics=("parallel",),
            vmem_limit_bytes=32 * 1024 * 1024,   # explicit, portable budget (v7x-safe)
        ),
    )(source, target, edge_attr,
      folded["g1div"], folded["g1bc"], folded["g1sc"], folded["g1beta"],
      folded["w1"], folded["b1"],
      folded["g2div"], folded["g2bc"], folded["g2sc"], folded["g2beta"],
      folded["w2"], folded["b2"])


# ----------------------------------------------------------------------------
# deterministic parameter init (nn.Linear / nn.GroupNorm style)
# ----------------------------------------------------------------------------
def init_params(key, ch, hidden_ch=None):
    if hidden_ch is None:
        hidden_ch = ch
    c3 = 3 * ch
    ks = jax.random.split(key, 8)

    def linear(kw, kb, din, dout):
        bound = 1.0 / math.sqrt(din)
        w = jax.random.uniform(kw, (din, dout), jnp.float32, -bound, bound)
        b = jax.random.uniform(kb, (1, dout), jnp.float32, -bound, bound)
        return w, b

    def gn(kw, kb, c):
        # PyTorch default is weight=1, bias=0; perturb slightly so the affine
        # path is actually exercised by the correctness check.
        w = 1.0 + 0.1 * jax.random.normal(kw, (1, c), jnp.float32)
        b = 0.1 * jax.random.normal(kb, (1, c), jnp.float32)
        return w, b

    return {
        "gn1": gn(ks[0], ks[1], c3),
        "lin1": linear(ks[2], ks[3], c3, hidden_ch),
        "gn2": gn(ks[4], ks[5], hidden_ch),
        "lin2": linear(ks[6], ks[7], hidden_ch, ch),
    }


# ----------------------------------------------------------------------------
# pure-JAX references for correctness checking
#   bf16_linears=True mirrors the kernel's intentional bf16-operand matmuls.
# ----------------------------------------------------------------------------
def reference(source, target, edge_attr, params, *, bf16_linears=False):
    (g1w, g1b) = params["gn1"]
    (w1, b1) = params["lin1"]
    (g2w, g2b) = params["gn2"]
    (w2, b2) = params["lin2"]
    C = edge_attr.shape[1]
    H = w1.shape[1]
    G1 = get_group_size(3 * C, 3 * 8)
    G2 = get_group_size(H)

    def group_norm(x, g, w, b):
        n, c = x.shape
        xg = x.reshape(n, g, c // g)
        mean = xg.mean(axis=2, keepdims=True)
        var = ((xg - mean) ** 2).mean(axis=2, keepdims=True)
        xn = ((xg - mean) * lax.rsqrt(var + _EPS)).reshape(n, c)
        return xn * w + b

    hp = jax.lax.Precision.HIGHEST

    def linear(x, w, b):
        if bf16_linears:
            return jnp.dot(x.astype(jnp.bfloat16), w.astype(jnp.bfloat16),
                           preferred_element_type=jnp.float32) + b
        return jnp.dot(x, w, precision=hp) + b

    h = jnp.concatenate([source, target, edge_attr], axis=1)
    h = jnp.maximum(group_norm(h, G1, g1w, g1b), 0.0)
    h = linear(h, w1, b1)
    h = jnp.maximum(group_norm(h, G2, g2w, g2b), 0.0)
    h = linear(h, w2, b2)
    return h + edge_attr


if __name__ == "__main__":
    E, CH = 300, 128    # edges, channels; CH=128 keeps the output lane-dense.
                        # E=300 exercises the cdiv-grid + partial-last-block path
                        # (4 grid steps of 80 rows, last block 60 valid rows).

    key = jax.random.PRNGKey(0)
    k_s, k_t, k_e, k_p = jax.random.split(key, 4)
    source = jax.random.normal(k_s, (E, CH), jnp.float32)
    target = jax.random.normal(k_t, (E, CH), jnp.float32)
    edge_attr = jax.random.normal(k_e, (E, CH), jnp.float32)
    params = init_params(k_p, CH)
    folded = fold_params(params)            # constants built ONCE, off the hot path

    edge_fn = jax.jit(edge_func)
    out = jax.block_until_ready(edge_fn(source, target, edge_attr, folded))
    assert out.shape == (E, CH)
    assert bool(jnp.all(jnp.isfinite(out)))

    # (a) tight check vs a reference that matches the kernel's precision choice
    #     (bf16-operand linears, f32 GroupNorm statistics)
    ref_matched = jax.block_until_ready(
        reference(source, target, edge_attr, params, bf16_linears=True))
    err_m = float(jnp.max(jnp.abs(out - ref_matched)))
    assert jnp.allclose(out, ref_matched, rtol=3e-3, atol=3e-3), \
        f"mismatch vs matched-precision reference, max err {err_m}"

    # (b) loose sanity check vs the full-f32 (Precision.HIGHEST) reference;
    #     the gap is the intentional bf16 quantization of the two linears.
    ref_f32 = jax.block_until_ready(
        reference(source, target, edge_attr, params, bf16_linears=False))
    err_f = float(jnp.max(jnp.abs(out - ref_f32)))
    assert jnp.allclose(out, ref_f32, rtol=2e-2, atol=2e-2), \
        f"mismatch vs f32 reference, max err {err_f}"

    print("KERNEL_OK")
</pallas_src>

<mosaic_0001>
module attributes {stable_mosaic.version = 11 : i64} {
  func.func @_edge_func_kernel(%arg0: i32, %arg1: memref<80x128xf32, #tpu.memory_space<vmem>>, %arg2: memref<80x128xf32, #tpu.memory_space<vmem>>, %arg3: memref<80x128xf32, #tpu.memory_space<vmem>>, %arg4: memref<3x128x16xf32, #tpu.memory_space<vmem>>, %arg5: memref<3x16x128xf32, #tpu.memory_space<vmem>>, %arg6: memref<3x16x128xf32, #tpu.memory_space<vmem>>, %arg7: memref<3x1x128xf32, #tpu.memory_space<vmem>>, %arg8: memref<3x128x128xbf16, #tpu.memory_space<vmem>>, %arg9: memref<1x128xf32, #tpu.memory_space<vmem>>, %arg10: memref<128x16xf32, #tpu.memory_space<vmem>>, %arg11: memref<16x128xf32, #tpu.memory_space<vmem>>, %arg12: memref<16x128xf32, #tpu.memory_space<vmem>>, %arg13: memref<1x128xf32, #tpu.memory_space<vmem>>, %arg14: memref<128x128xbf16, #tpu.memory_space<vmem>>, %arg15: memref<1x128xf32, #tpu.memory_space<vmem>>, %arg16: memref<80x128xf32, #tpu.memory_space<vmem>>) attributes {dimension_semantics = [#tpu.dimension_semantics<parallel>], iteration_bounds = array<i64: 4>, scalar_prefetch = 0 : i64, scratch_operands = 0 : i64, tpu.core_type = #tpu.core_type<tc>, window_params = [{transform_indices = @transform_0, window_bounds = array<i64: 80, 128>}, {transform_indices = @transform_1, window_bounds = array<i64: 80, 128>}, {transform_indices = @transform_2, window_bounds = array<i64: 80, 128>}, {pipeline_mode = #tpu.pipeline_mode<synchronous>, transform_indices = @transform_3, window_bounds = array<i64: 3, 128, 16>}, {pipeline_mode = #tpu.pipeline_mode<synchronous>, transform_indices = @transform_4, window_bounds = array<i64: 3, 16, 128>}, {pipeline_mode = #tpu.pipeline_mode<synchronous>, transform_indices = @transform_5, window_bounds = array<i64: 3, 16, 128>}, {pipeline_mode = #tpu.pipeline_mode<synchronous>, transform_indices = @transform_6, window_bounds = array<i64: 3, 1, 128>}, {pipeline_mode = #tpu.pipeline_mode<synchronous>, transform_indices = @transform_7, window_bounds = array<i64: 3, 128, 128>}, {pipeline_mode = #tpu.pipeline_mode<synchronous>, transform_indices = @transform_8, window_bounds = array<i64: 1, 128>}, {pipeline_mode = #tpu.pipeline_mode<synchronous>, transform_indices = @transform_9, window_bounds = array<i64: 128, 16>}, {pipeline_mode = #tpu.pipeline_mode<synchronous>, transform_indices = @transform_10, window_bounds = array<i64: 16, 128>}, {pipeline_mode = #tpu.pipeline_mode<synchronous>, transform_indices = @transform_11, window_bounds = array<i64: 16, 128>}, {pipeline_mode = #tpu.pipeline_mode<synchronous>, transform_indices = @transform_12, window_bounds = array<i64: 1, 128>}, {pipeline_mode = #tpu.pipeline_mode<synchronous>, transform_indices = @transform_13, window_bounds = array<i64: 128, 128>}, {pipeline_mode = #tpu.pipeline_mode<synchronous>, transform_indices = @transform_14, window_bounds = array<i64: 1, 128>}, {transform_indices = @transform_15, window_bounds = array<i64: 80, 128>}]} {
    %c0 = arith.constant 0 : index
    %c0_0 = arith.constant 0 : index
    %0 = vector.load %arg3[%c0, %c0_0] : memref<80x128xf32, #tpu.memory_space<vmem>>, vector<80x128xf32>
    %c0_1 = arith.constant 0 : index
    %c0_2 = arith.constant 0 : index
    %1 = vector.load %arg1[%c0_1, %c0_2] : memref<80x128xf32, #tpu.memory_space<vmem>>, vector<80x128xf32>
    %c0_3 = arith.constant 0 : index
    %c0_4 = arith.constant 0 : index
    %2 = vector.load %arg2[%c0_3, %c0_4] : memref<80x128xf32, #tpu.memory_space<vmem>>, vector<80x128xf32>
    %c0_5 = arith.constant 0 : index
    %c0_6 = arith.constant 0 : index
    %c0_7 = arith.constant 0 : index
    %3 = vector.load %arg4[%c0_5, %c0_6, %c0_7] : memref<3x128x16xf32, #tpu.memory_space<vmem>>, vector<1x128x16xf32>
    %4 = vector.shape_cast %3 : vector<1x128x16xf32> to vector<128x16xf32>
    %cst = arith.constant dense<0.000000e+00> : vector<80x16xf32>
    %5 = tpu.matmul %1, %4, %cst {dimension_numbers = #tpu.dot_dimension_numbers<[1], [0], [0], [1], [0, 0, 1, 1], [], []>} : vector<80x128xf32>, vector<128x16xf32>, vector<80x16xf32> -> vector<80x16xf32>
    %c1 = arith.constant 1 : index
    %c0_8 = arith.constant 0 : index
    %c0_9 = arith.constant 0 : index
    %6 = vector.load %arg4[%c1, %c0_8, %c0_9] : memref<3x128x16xf32, #tpu.memory_space<vmem>>, vector<1x128x16xf32>
    %7 = vector.shape_cast %6 : vector<1x128x16xf32> to vector<128x16xf32>
    %cst_10 = arith.constant dense<0.000000e+00> : vector<80x16xf32>
    %8 = tpu.matmul %2, %7, %cst_10 {dimension_numbers = #tpu.dot_dimension_numbers<[1], [0], [0], [1], [0, 0, 1, 1], [], []>} : vector<80x128xf32>, vector<128x16xf32>, vector<80x16xf32> -> vector<80x16xf32>
    %9 = arith.addf %5, %8 : vector<80x16xf32>
    %c2 = arith.constant 2 : index
    %c0_11 = arith.constant 0 : index
    %c0_12 = arith.constant 0 : index
    %10 = vector.load %arg4[%c2, %c0_11, %c0_12] : memref<3x128x16xf32, #tpu.memory_space<vmem>>, vector<1x128x16xf32>
    %11 = vector.shape_cast %10 : vector<1x128x16xf32> to vector<128x16xf32>
    %cst_13 = arith.constant dense<0.000000e+00> : vector<80x16xf32>
    %12 = tpu.matmul %0, %11, %cst_13 {dimension_numbers = #tpu.dot_dimension_numbers<[1], [0], [0], [1], [0, 0, 1, 1], [], []>} : vector<80x128xf32>, vector<128x16xf32>, vector<80x16xf32> -> vector<80x16xf32>
    %13 = arith.addf %9, %12 : vector<80x16xf32>
    %c0_14 = arith.constant 0 : index
    %c0_15 = arith.constant 0 : index
    %c0_16 = arith.constant 0 : index
    %14 = vector.load %arg5[%c0_14, %c0_15, %c0_16] : memref<3x16x128xf32, #tpu.memory_space<vmem>>, vector<1x16x128xf32>
    %15 = vector.shape_cast %14 : vector<1x16x128xf32> to vector<16x128xf32>
    %cst_17 = arith.constant dense<0.000000e+00> : vector<80x128xf32>
    %16 = tpu.matmul %13, %15, %cst_17 {dimension_numbers = #tpu.dot_dimension_numbers<[1], [0], [0], [1], [0, 0, 1, 1], [], []>} : vector<80x16xf32>, vector<16x128xf32>, vector<80x128xf32> -> vector<80x128xf32>
    %17 = arith.subf %1, %16 : vector<80x128xf32>
    %c1_18 = arith.constant 1 : index
    %c0_19 = arith.constant 0 : index
    %c0_20 = arith.constant 0 : index
    %18 = vector.load %arg5[%c1_18, %c0_19, %c0_20] : memref<3x16x128xf32, #tpu.memory_space<vmem>>, vector<1x16x128xf32>
    %19 = vector.shape_cast %18 : vector<1x16x128xf32> to vector<16x128xf32>
    %cst_21 = arith.constant dense<0.000000e+00> : vector<80x128xf32>
    %20 = tpu.matmul %13, %19, %cst_21 {dimension_numbers = #tpu.dot_dimension_numbers<[1], [0], [0], [1], [0, 0, 1, 1], [], []>} : vector<80x16xf32>, vector<16x128xf32>, vector<80x128xf32> -> vector<80x128xf32>
    %21 = arith.subf %2, %20 : vector<80x128xf32>
    %c2_22 = arith.constant 2 : index
    %c0_23 = arith.constant 0 : index
    %c0_24 = arith.constant 0 : index
    %22 = vector.load %arg5[%c2_22, %c0_23, %c0_24] : memref<3x16x128xf32, #tpu.memory_space<vmem>>, vector<1x16x128xf32>
    %23 = vector.shape_cast %22 : vector<1x16x128xf32> to vector<16x128xf32>
    %cst_25 = arith.constant dense<0.000000e+00> : vector<80x128xf32>
    %24 = tpu.matmul %13, %23, %cst_25 {dimension_numbers = #tpu.dot_dimension_numbers<[1], [0], [0], [1], [0, 0, 1, 1], [], []>} : vector<80x16xf32>, vector<16x128xf32>, vector<80x128xf32> -> vector<80x128xf32>
    %25 = arith.subf %0, %24 : vector<80x128xf32>
    %26 = arith.mulf %17, %17 : vector<80x128xf32>
    %c0_26 = arith.constant 0 : index
    %c0_27 = arith.constant 0 : index
    %c0_28 = arith.constant 0 : index
    %27 = vector.load %arg4[%c0_26, %c0_27, %c0_28] : memref<3x128x16xf32, #tpu.memory_space<vmem>>, vector<1x128x16xf32>
    %28 = vector.shape_cast %27 : vector<1x128x16xf32> to vector<128x16xf32>
    %cst_29 = arith.constant dense<0.000000e+00> : vector<80x16xf32>
    %29 = tpu.matmul %26, %28, %cst_29 {dimension_numbers = #tpu.dot_dimension_numbers<[1], [0], [0], [1], [0, 0, 1, 1], [], []>} : vector<80x128xf32>, vector<128x16xf32>, vector<80x16xf32> -> vector<80x16xf32>
    %30 = arith.mulf %21, %21 : vector<80x128xf32>
    %c1_30 = arith.constant 1 : index
    %c0_31 = arith.constant 0 : index
    %c0_32 = arith.constant 0 : index
    %31 = vector.load %arg4[%c1_30, %c0_31, %c0_32] : memref<3x128x16xf32, #tpu.memory_space<vmem>>, vector<1x128x16xf32>
    %32 = vector.shape_cast %31 : vector<1x128x16xf32> to vector<128x16xf32>
    %cst_33 = arith.constant dense<0.000000e+00> : vector<80x16xf32>
    %33 = tpu.matmul %30, %32, %cst_33 {dimension_numbers = #tpu.dot_dimension_numbers<[1], [0], [0], [1], [0, 0, 1, 1], [], []>} : vector<80x128xf32>, vector<128x16xf32>, vector<80x16xf32> -> vector<80x16xf32>
    %34 = arith.addf %29, %33 : vector<80x16xf32>
    %35 = arith.mulf %25, %25 : vector<80x128xf32>
    %c2_34 = arith.constant 2 : index
    %c0_35 = arith.constant 0 : index
    %c0_36 = arith.constant 0 : index
    %36 = vector.load %arg4[%c2_34, %c0_35, %c0_36] : memref<3x128x16xf32, #tpu.memory_space<vmem>>, vector<1x128x16xf32>
    %37 = vector.shape_cast %36 : vector<1x128x16xf32> to vector<128x16xf32>
    %cst_37 = arith.constant dense<0.000000e+00> : vector<80x16xf32>
    %38 = tpu.matmul %35, %37, %cst_37 {dimension_numbers = #tpu.dot_dimension_numbers<[1], [0], [0], [1], [0, 0, 1, 1], [], []>} : vector<80x128xf32>, vector<128x16xf32>, vector<80x16xf32> -> vector<80x16xf32>
    %39 = arith.addf %34, %38 : vector<80x16xf32>
    %cst_38 = arith.constant 9.99999974E-6 : f32
    %40 = vector.broadcast %cst_38 : f32 to vector<80x16xf32>
    %41 = arith.addf %39, %40 : vector<80x16xf32>
    %42 = math.rsqrt %41 : vector<80x16xf32>
    %c0_39 = arith.constant 0 : index
    %c0_40 = arith.constant 0 : index
    %c0_41 = arith.constant 0 : index
    %43 = vector.load %arg6[%c0_39, %c0_40, %c0_41] : memref<3x16x128xf32, #tpu.memory_space<vmem>>, vector<1x16x128xf32>
    %44 = vector.shape_cast %43 : vector<1x16x128xf32> to vector<16x128xf32>
    %cst_42 = arith.constant dense<0.000000e+00> : vector<80x128xf32>
    %45 = tpu.matmul %42, %44, %cst_42 {dimension_numbers = #tpu.dot_dimension_numbers<[1], [0], [0], [1], [0, 0, 1, 1], [], []>} : vector<80x16xf32>, vector<16x128xf32>, vector<80x128xf32> -> vector<80x128xf32>
    %46 = arith.mulf %17, %45 : vector<80x128xf32>
    %c0_43 = arith.constant 0 : index
    %c0_44 = arith.constant 0 : index
    %c0_45 = arith.constant 0 : index
    %47 = vector.load %arg7[%c0_43, %c0_44, %c0_45] : memref<3x1x128xf32, #tpu.memory_space<vmem>>, vector<1x1x128xf32>
    %48 = vector.shape_cast %47 : vector<1x1x128xf32> to vector<1x128xf32>
    %49 = vector.broadcast %48 : vector<1x128xf32> to vector<80x128xf32>
    %50 = arith.addf %46, %49 : vector<80x128xf32>
    %cst_46 = arith.constant 0.000000e+00 : f32
    %51 = vector.broadcast %cst_46 : f32 to vector<80x128xf32>
    %52 = arith.maximumf %50, %51 : vector<80x128xf32>
    %53 = arith.truncf %52 : vector<80x128xf32> to vector<80x128xbf16>
    %c0_47 = arith.constant 0 : index
    %c0_48 = arith.constant 0 : index
    %c0_49 = arith.constant 0 : index
    %54 = vector.load %arg8[%c0_47, %c0_48, %c0_49] : memref<3x128x128xbf16, #tpu.memory_space<vmem>>, vector<1x128x128xbf16>
    %55 = vector.shape_cast %54 : vector<1x128x128xbf16> to vector<128x128xbf16>
    %cst_50 = arith.constant dense<0.000000e+00> : vector<80x128xf32>
    %56 = tpu.matmul %53, %55, %cst_50 {dimension_numbers = #tpu.dot_dimension_numbers<[1], [0], [0], [1], [0, 0, 1, 1], [], []>} : vector<80x128xbf16>, vector<128x128xbf16>, vector<80x128xf32> -> vector<80x128xf32>
    %c1_51 = arith.constant 1 : index
    %c0_52 = arith.constant 0 : index
    %c0_53 = arith.constant 0 : index
    %57 = vector.load %arg6[%c1_51, %c0_52, %c0_53] : memref<3x16x128xf32, #tpu.memory_space<vmem>>, vector<1x16x128xf32>
    %58 = vector.shape_cast %57 : vector<1x16x128xf32> to vector<16x128xf32>
    %cst_54 = arith.constant dense<0.000000e+00> : vector<80x128xf32>
    %59 = tpu.matmul %42, %58, %cst_54 {dimension_numbers = #tpu.dot_dimension_numbers<[1], [0], [0], [1], [0, 0, 1, 1], [], []>} : vector<80x16xf32>, vector<16x128xf32>, vector<80x128xf32> -> vector<80x128xf32>
    %60 = arith.mulf %21, %59 : vector<80x128xf32>
    %c1_55 = arith.constant 1 : index
    %c0_56 = arith.constant 0 : index
    %c0_57 = arith.constant 0 : index
    %61 = vector.load %arg7[%c1_55, %c0_56, %c0_57] : memref<3x1x128xf32, #tpu.memory_space<vmem>>, vector<1x1x128xf32>
    %62 = vector.shape_cast %61 : vector<1x1x128xf32> to vector<1x128xf32>
    %63 = vector.broadcast %62 : vector<1x128xf32> to vector<80x128xf32>
    %64 = arith.addf %60, %63 : vector<80x128xf32>
    %cst_58 = arith.constant 0.000000e+00 : f32
    %65 = vector.broadcast %cst_58 : f32 to vector<80x128xf32>
    %66 = arith.maximumf %64, %65 : vector<80x128xf32>
    %67 = arith.truncf %66 : vector<80x128xf32> to vector<80x128xbf16>
    %c1_59 = arith.constant 1 : index
    %c0_60 = arith.constant 0 : index
    %c0_61 = arith.constant 0 : index
    %68 = vector.load %arg8[%c1_59, %c0_60, %c0_61] : memref<3x128x128xbf16, #tpu.memory_space<vmem>>, vector<1x128x128xbf16>
    %69 = vector.shape_cast %68 : vector<1x128x128xbf16> to vector<128x128xbf16>
    %cst_62 = arith.constant dense<0.000000e+00> : vector<80x128xf32>
    %70 = tpu.matmul %67, %69, %cst_62 {dimension_numbers = #tpu.dot_dimension_numbers<[1], [0], [0], [1], [0, 0, 1, 1], [], []>} : vector<80x128xbf16>, vector<128x128xbf16>, vector<80x128xf32> -> vector<80x128xf32>
    %71 = arith.addf %56, %70 : vector<80x128xf32>
    %c2_63 = arith.constant 2 : index
    %c0_64 = arith.constant 0 : index
    %c0_65 = arith.constant 0 : index
    %72 = vector.load %arg6[%c2_63, %c0_64, %c0_65] : memref<3x16x128xf32, #tpu.memory_space<vmem>>, vector<1x16x128xf32>
    %73 = vector.shape_cast %72 : vector<1x16x128xf32> to vector<16x128xf32>
    %cst_66 = arith.constant dense<0.000000e+00> : vector<80x128xf32>
    %74 = tpu.matmul %42, %73, %cst_66 {dimension_numbers = #tpu.dot_dimension_numbers<[1], [0], [0], [1], [0, 0, 1, 1], [], []>} : vector<80x16xf32>, vector<16x128xf32>, vector<80x128xf32> -> vector<80x128xf32>
    %75 = arith.mulf %25, %74 : vector<80x128xf32>
    %c2_67 = arith.constant 2 : index
    %c0_68 = arith.constant 0 : index
    %c0_69 = arith.constant 0 : index
    %76 = vector.load %arg7[%c2_67, %c0_68, %c0_69] : memref<3x1x128xf32, #tpu.memory_space<vmem>>, vector<1x1x128xf32>
    %77 = vector.shape_cast %76 : vector<1x1x128xf32> to vector<1x128xf32>
    %78 = vector.broadcast %77 : vector<1x128xf32> to vector<80x128xf32>
    %79 = arith.addf %75, %78 : vector<80x128xf32>
    %cst_70 = arith.constant 0.000000e+00 : f32
    %80 = vector.broadcast %cst_70 : f32 to vector<80x128xf32>
    %81 = arith.maximumf %79, %80 : vector<80x128xf32>
    %82 = arith.truncf %81 : vector<80x128xf32> to vector<80x128xbf16>
    %c2_71 = arith.constant 2 : index
    %c0_72 = arith.constant 0 : index
    %c0_73 = arith.constant 0 : index
    %83 = vector.load %arg8[%c2_71, %c0_72, %c0_73] : memref<3x128x128xbf16, #tpu.memory_space<vmem>>, vector<1x128x128xbf16>
    %84 = vector.shape_cast %83 : vector<1x128x128xbf16> to vector<128x128xbf16>
    %cst_74 = arith.constant dense<0.000000e+00> : vector<80x128xf32>
    %85 = tpu.matmul %82, %84, %cst_74 {dimension_numbers = #tpu.dot_dimension_numbers<[1], [0], [0], [1], [0, 0, 1, 1], [], []>} : vector<80x128xbf16>, vector<128x128xbf16>, vector<80x128xf32> -> vector<80x128xf32>
    %86 = arith.addf %71, %85 : vector<80x128xf32>
    %c0_75 = arith.constant 0 : index
    %c0_76 = arith.constant 0 : index
    %87 = vector.load %arg9[%c0_75, %c0_76] : memref<1x128xf32, #tpu.memory_space<vmem>>, vector<1x128xf32>
    %88 = vector.broadcast %87 : vector<1x128xf32> to vector<80x128xf32>
    %89 = arith.addf %86, %88 : vector<80x128xf32>
    %c0_77 = arith.constant 0 : index
    %c0_78 = arith.constant 0 : index
    %90 = vector.load %arg10[%c0_77, %c0_78] : memref<128x16xf32, #tpu.memory_space<vmem>>, vector<128x16xf32>
    %cst_79 = arith.constant dense<0.000000e+00> : vector<80x16xf32>
    %91 = tpu.matmul %89, %90, %cst_79 {dimension_numbers = #tpu.dot_dimension_numbers<[1], [0], [0], [1], [0, 0, 1, 1], [], []>} : vector<80x128xf32>, vector<128x16xf32>, vector<80x16xf32> -> vector<80x16xf32>
    %c0_80 = arith.constant 0 : index
    %c0_81 = arith.constant 0 : index
    %92 = vector.load %arg11[%c0_80, %c0_81] : memref<16x128xf32, #tpu.memory_space<vmem>>, vector<16x128xf32>
    %cst_82 = arith.constant dense<0.000000e+00> : vector<80x128xf32>
    %93 = tpu.matmul %91, %92, %cst_82 {dimension_numbers = #tpu.dot_dimension_numbers<[1], [0], [0], [1], [0, 0, 1, 1], [], []>} : vector<80x16xf32>, vector<16x128xf32>, vector<80x128xf32> -> vector<80x128xf32>
    %94 = arith.subf %89, %93 : vector<80x128xf32>
    %95 = arith.mulf %94, %94 : vector<80x128xf32>
    %c0_83 = arith.constant 0 : index
    %c0_84 = arith.constant 0 : index
    %96 = vector.load %arg10[%c0_83, %c0_84] : memref<128x16xf32, #tpu.memory_space<vmem>>, vector<128x16xf32>
    %cst_85 = arith.constant dense<0.000000e+00> : vector<80x16xf32>
    %97 = tpu.matmul %95, %96, %cst_85 {dimension_numbers = #tpu.dot_dimension_numbers<[1], [0], [0], [1], [0, 0, 1, 1], [], []>} : vector<80x128xf32>, vector<128x16xf32>, vector<80x16xf32> -> vector<80x16xf32>
    %cst_86 = arith.constant 9.99999974E-6 : f32
    %98 = vector.broadcast %cst_86 : f32 to vector<80x16xf32>
    %99 = arith.addf %97, %98 : vector<80x16xf32>
    %100 = math.rsqrt %99 : vector<80x16xf32>
    %c0_87 = arith.constant 0 : index
    %c0_88 = arith.constant 0 : index
    %101 = vector.load %arg12[%c0_87, %c0_88] : memref<16x128xf32, #tpu.memory_space<vmem>>, vector<16x128xf32>
    %cst_89 = arith.constant dense<0.000000e+00> : vector<80x128xf32>
    %102 = tpu.matmul %100, %101, %cst_89 {dimension_numbers = #tpu.dot_dimension_numbers<[1], [0], [0], [1], [0, 0, 1, 1], [], []>} : vector<80x16xf32>, vector<16x128xf32>, vector<80x128xf32> -> vector<80x128xf32>
    %103 = arith.mulf %94, %102 : vector<80x128xf32>
    %c0_90 = arith.constant 0 : index
    %c0_91 = arith.constant 0 : index
    %104 = vector.load %arg13[%c0_90, %c0_91] : memref<1x128xf32, #tpu.memory_space<vmem>>, vector<1x128xf32>
    %105 = vector.broadcast %104 : vector<1x128xf32> to vector<80x128xf32>
    %106 = arith.addf %103, %105 : vector<80x128xf32>
    %cst_92 = arith.constant 0.000000e+00 : f32
    %107 = vector.broadcast %cst_92 : f32 to vector<80x128xf32>
    %108 = arith.maximumf %106, %107 : vector<80x128xf32>
    %109 = arith.truncf %108 : vector<80x128xf32> to vector<80x128xbf16>
    %c0_93 = arith.constant 0 : index
    %c0_94 = arith.constant 0 : index
    %110 = vector.load %arg14[%c0_93, %c0_94] : memref<128x128xbf16, #tpu.memory_space<vmem>>, vector<128x128xbf16>
    %cst_95 = arith.constant dense<0.000000e+00> : vector<80x128xf32>
    %111 = tpu.matmul %109, %110, %cst_95 {dimension_numbers = #tpu.dot_dimension_numbers<[1], [0], [0], [1], [0, 0, 1, 1], [], []>} : vector<80x128xbf16>, vector<128x128xbf16>, vector<80x128xf32> -> vector<80x128xf32>
    %c0_96 = arith.constant 0 : index
    %c0_97 = arith.constant 0 : index
    %112 = vector.load %arg15[%c0_96, %c0_97] : memref<1x128xf32, #tpu.memory_space<vmem>>, vector<1x128xf32>
    %113 = vector.broadcast %112 : vector<1x128xf32> to vector<80x128xf32>
    %114 = arith.addf %111, %113 : vector<80x128xf32>
    %115 = arith.addf %114, %0 : vector<80x128xf32>
    %c0_98 = arith.constant 0 : index
    %c0_99 = arith.constant 0 : index
    %116 = vector.load %arg16[%c0_98, %c0_99] : memref<80x128xf32, #tpu.memory_space<vmem>>, vector<80x128xf32>
    tpu.vector_store %arg16[%c0_98, %c0_99], %115 {strides = array<i32>} : memref<80x128xf32, #tpu.memory_space<vmem>>, vector<80x128xf32>,
    return
  }
  func.func @transform_0(%arg0: i32) -> (i32, i32) {
    %c0_i32 = arith.constant 0 : i32
    %c0_i32_0 = arith.constant 0 : i32
    return %arg0, %c0_i32 : i32, i32
  }
  func.func @transform_1(%arg0: i32) -> (i32, i32) {
    %c0_i32 = arith.constant 0 : i32
    %c0_i32_0 = arith.constant 0 : i32
    return %arg0, %c0_i32 : i32, i32
  }
  func.func @transform_2(%arg0: i32) -> (i32, i32) {
    %c0_i32 = arith.constant 0 : i32
    %c0_i32_0 = arith.constant 0 : i32
    return %arg0, %c0_i32 : i32, i32
  }
  func.func @transform_3(%arg0: i32) -> (i32, i32, i32) {
    %c0_i32 = arith.constant 0 : i32
    %c0_i32_0 = arith.constant 0 : i32
    %c0_i32_1 = arith.constant 0 : i32
    %c0_i32_2 = arith.constant 0 : i32
    return %c0_i32, %c0_i32_0, %c0_i32_1 : i32, i32, i32
  }
  func.func @transform_4(%arg0: i32) -> (i32, i32, i32) {
    %c0_i32 = arith.constant 0 : i32
    %c0_i32_0 = arith.constant 0 : i32
    %c0_i32_1 = arith.constant 0 : i32
    %c0_i32_2 = arith.constant 0 : i32
    return %c0_i32, %c0_i32_0, %c0_i32_1 : i32, i32, i32
  }
  func.func @transform_5(%arg0: i32) -> (i32, i32, i32) {
    %c0_i32 = arith.constant 0 : i32
    %c0_i32_0 = arith.constant 0 : i32
    %c0_i32_1 = arith.constant 0 : i32
    %c0_i32_2 = arith.constant 0 : i32
    return %c0_i32, %c0_i32_0, %c0_i32_1 : i32, i32, i32
  }
  func.func @transform_6(%arg0: i32) -> (i32, i32, i32) {
    %c0_i32 = arith.constant 0 : i32
    %c0_i32_0 = arith.constant 0 : i32
    %c0_i32_1 = arith.constant 0 : i32
    %c0_i32_2 = arith.constant 0 : i32
    return %c0_i32, %c0_i32_0, %c0_i32_1 : i32, i32, i32
  }
  func.func @transform_7(%arg0: i32) -> (i32, i32, i32) {
    %c0_i32 = arith.constant 0 : i32
    %c0_i32_0 = arith.constant 0 : i32
    %c0_i32_1 = arith.constant 0 : i32
    %c0_i32_2 = arith.constant 0 : i32
    return %c0_i32, %c0_i32_0, %c0_i32_1 : i32, i32, i32
  }
  func.func @transform_8(%arg0: i32) -> (i32, i32) {
    %c0_i32 = arith.constant 0 : i32
    %c0_i32_0 = arith.constant 0 : i32
    %c0_i32_1 = arith.constant 0 : i32
    return %c0_i32, %c0_i32_0 : i32, i32
  }
  func.func @transform_9(%arg0: i32) -> (i32, i32) {
    %c0_i32 = arith.constant 0 : i32
    %c0_i32_0 = arith.constant 0 : i32
    %c0_i32_1 = arith.constant 0 : i32
    return %c0_i32, %c0_i32_0 : i32, i32
  }
  func.func @transform_10(%arg0: i32) -> (i32, i32) {
    %c0_i32 = arith.constant 0 : i32
    %c0_i32_0 = arith.constant 0 : i32
    %c0_i32_1 = arith.constant 0 : i32
    return %c0_i32, %c0_i32_0 : i32, i32
  }
  func.func @transform_11(%arg0: i32) -> (i32, i32) {
    %c0_i32 = arith.constant 0 : i32
    %c0_i32_0 = arith.constant 0 : i32
    %c0_i32_1 = arith.constant 0 : i32
    return %c0_i32, %c0_i32_0 : i32, i32
  }
  func.func @transform_12(%arg0: i32) -> (i32, i32) {
    %c0_i32 = arith.constant 0 : i32
    %c0_i32_0 = arith.constant 0 : i32
    %c0_i32_1 = arith.constant 0 : i32
    return %c0_i32, %c0_i32_0 : i32, i32
  }
  func.func @transform_13(%arg0: i32) -> (i32, i32) {
    %c0_i32 = arith.constant 0 : i32
    %c0_i32_0 = arith.constant 0 : i32
    %c0_i32_1 = arith.constant 0 : i32
    return %c0_i32, %c0_i32_0 : i32, i32
  }
  func.func @transform_14(%arg0: i32) -> (i32, i32) {
    %c0_i32 = arith.constant 0 : i32
    %c0_i32_0 = arith.constant 0 : i32
    %c0_i32_1 = arith.constant 0 : i32
    return %c0_i32, %c0_i32_0 : i32, i32
  }
  func.func @transform_15(%arg0: i32) -> (i32, i32) {
    %c0_i32 = arith.constant 0 : i32
    %c0_i32_0 = arith.constant 0 : i32
    return %arg0, %c0_i32 : i32, i32
  }
}

</mosaic_0001>

<llo_original>
// kernel: edge_func.1
$region0: #{edge_func.1}
  #allocation0 [shape = 'u32[]', space=smem, size = 0x4, offset = 0x4, fixed_abs, tag = 'smem constant byte address 0x4 - core index']
  #allocation1 [shape = 'u32[144,128]{1,0:T(1,128)}', space=vmem, size = 0x12000, scoped, tag = 'internal scratch']
  %s0 = inlined_call_operand.vmem [shape: f32[300,128], index: 0, kind: input, shape index: {}]
  %s1 = inlined_call_operand.hbm [shape: f32[300,128], index: 1, kind: input, shape index: {}]
  %s2 = inlined_call_operand.hbm [shape: f32[300,128], index: 2, kind: input, shape index: {}]
  %s3 = inlined_call_operand.vmem [shape: f32[3,128,16], index: 3, kind: input, shape index: {}]
  %s4 = inlined_call_operand.hbm [shape: f32[3,16,128], index: 4, kind: input, shape index: {}]
  %s5 = inlined_call_operand.hbm [shape: f32[3,16,128], index: 5, kind: input, shape index: {}]
  %s6 = inlined_call_operand.vmem [shape: f32[3,1,128], index: 6, kind: input, shape index: {}]
  %s7 = inlined_call_operand.vmem [shape: bf16[3,128,128], index: 7, kind: input, shape index: {}]
  %s8 = inlined_call_operand.hbm [shape: f32[1,128], index: 8, kind: input, shape index: {}]
  %s9 = inlined_call_operand.vmem [shape: f32[128,16], index: 9, kind: input, shape index: {}]
  %s10 = inlined_call_operand.vmem [shape: f32[16,128], index: 10, kind: input, shape index: {}]
  %s11 = inlined_call_operand.vmem [shape: f32[16,128], index: 11, kind: input, shape index: {}]
  %s12 = inlined_call_operand.vmem [shape: f32[1,128], index: 12, kind: input, shape index: {}]
  %s13 = inlined_call_operand.vmem [shape: bf16[128,128], index: 13, kind: input, shape index: {}]
  %s14 = inlined_call_operand.vmem [shape: f32[1,128], index: 14, kind: input, shape index: {}]
  %s15 = inlined_call_operand.hbm [shape: f32[300,128], index: 15, kind: output, shape index: {}]
  %s16 = sld [smem:[#allocation0]]
  $region113: #{edge_func.1} parent=0
    _
  %s18 = ssub.s32 1, %s16
  %s19 = scalar_select 0, %s18, %s16
  $region1: #{edge_func.1} parent=0
    #allocation2 [shape = 'u8[81920]{0}', space=vmem, size = 0x14000, scoped, tag = 'input window, operand 1']
    #allocation3 [shape = 's32[2]{0}', space=sflag, size = 0x8, scoped, tag = 'scoped memory for edge_func.1']
    #allocation4 [shape = 's32[2]{0}', space=sflag, size = 0x8, scoped, tag = 'scoped memory for edge_func.1']
    #allocation5 [shape = 'u8[81920]{0}', space=vmem, size = 0x14000, scoped, tag = 'input window, operand 2']
    #allocation6 [shape = 's32[2]{0}', space=sflag, size = 0x8, scoped, tag = 'scoped memory for edge_func.1']
    #allocation7 [shape = 'u8[24576]{0}', space=vmem, size = 0x6000, scoped, tag = 'input window, operand 4, single buffered']
    #allocation8 [shape = 'u8[24576]{0}', space=vmem, size = 0x6000, scoped, tag = 'input window, operand 5, single buffered']
    #allocation9 [shape = 's32[1]{0}', space=sflag, size = 0x4, scoped, tag = 'scoped memory for edge_func.1']
    #allocation10 [shape = 'u8[512]{0}', space=vmem, size = 0x400, scoped, tag = 'input window, operand 8, single buffered']
    #allocation11 [shape = 'u8[81920]{0}', space=vmem, size = 0x14000, scoped, tag = 'output window, operand 0']
    %20 = vsyncpa [#allocation3], 0
    %s21 = scalar_lea.sflag [#allocation3], 1
    %22 = vsyncpa %s21, 0
    %23 = vsyncpa [#allocation6], 0
    %s24 = scalar_lea.sflag [#allocation6], 1
    %25 = vsyncpa %s24, 0
    %26 = vsyncpa [#allocation9], 0
    %27 = vsyncpa [#allocation4], 0
    %s28 = scalar_lea.sflag [#allocation4], 1
    %29 = vsyncpa %s28, 0
    loop: start=0, step=1, limit=6
    $region2: #{edge_func.1} parent=1 // loop_pre_header
      _
    $region3: #{edge_func.1} parent=1 // loop_header
      %s31 = sphi 0, %s35
      %p32 = scmp.ge.s32.totalorder %s31, 6
      %s41 = sphi 0, %s43
      %s44 = sphi 0, %s41
      %s45 = sphi 0, %s44
      %s61 = sphi 0, %s45
      %s67 = sphi 0, %s69
      %s70 = sphi 0, %s67
      %s71 = sphi 0, %s70
      %s87 = sphi 0, %s71
      %s93 = sphi 0, %s95
      %s96 = sphi 0, %s93
      %s97 = sphi 0, %s96
      %s113 = sphi 0, %s97
      %s117 = sphi 0, %s117
      %s119 = sphi 0, %s117
      %s120 = sphi 0, %s119
      %s134 = sphi 0, %s120
      %s138 = sphi 0, %s138
      %s140 = sphi 0, %s138
      %s141 = sphi 0, %s140
      %s155 = sphi 0, %s141
      %s159 = sphi 0, %s159
      %s161 = sphi 0, %s159
      %s162 = sphi 0, %s161
      %s176 = sphi 0, %s162
      %s180 = sphi 0, %s180
      %s182 = sphi 0, %s180
      %s183 = sphi 0, %s182
      %s197 = sphi 0, %s183
      %s201 = sphi 0, %s201
      %s203 = sphi 0, %s201
      %s204 = sphi 0, %s203
      %s218 = sphi 0, %s204
      %s222 = sphi 0, %s222
      %s224 = sphi 0, %s222
      %s225 = sphi 0, %s224
      %s239 = sphi 0, %s225
      %s243 = sphi 0, %s243
      %s245 = sphi 0, %s243
      %s246 = sphi 0, %s245
      %s260 = sphi 0, %s246
      %s264 = sphi 0, %s264
      %s266 = sphi 0, %s264
      %s267 = sphi 0, %s266
      %s281 = sphi 0, %s267
      %s285 = sphi 0, %s285
      %s287 = sphi 0, %s285
      %s288 = sphi 0, %s287
      %s302 = sphi 0, %s288
      %s306 = sphi 0, %s306
      %s308 = sphi 0, %s306
      %s309 = sphi 0, %s308
      %s323 = sphi 0, %s309
      %s327 = sphi 0, %s327
      %s329 = sphi 0, %s327
      %s330 = sphi 0, %s329
      %s344 = sphi 0, %s330
      %s348 = sphi 0, %s348
      %s350 = sphi 0, %s348
      %s351 = sphi 0, %s350
      %s365 = sphi 0, %s351
      %s371 = sphi 0, %s373
      %s374 = sphi 0, %s371
      %s375 = sphi 0, %s374
      %s391 = sphi 0, %s375
    $region4: #{edge_func.1} parent=1 // loop_header_branch
      %34 = sbr.rel (%p32) target = $region8
    $region5: #{edge_func.1} parent=1 // loop_body
      %s36 = ssub.s32 %s31, 1
      %s37 = ssub.s32 %s31, 2
      %s38 = sadd.s32 %s31, 1
      %s39 = ssub.s32 %s31, %s38
      %p40 = scmp.eq.s32.totalorder %s39, 0
      %s42 = sadd.s32 %s41, 1
      %s43 = scalar_select %p40, %s41, %s42
      %p46 = pneg %p40
      %p47 = scmp.eq.s32.totalorder %s31, 3
      %p48 = por %p46, %p47
      %p49 = scmp.ne.s32.totalorder %s41, %s44
      %p50 = scmp.eq.s32.totalorder %s31, 0
      %p51 = por %p49, %p50
      %p52 = scmp.ne.s32.totalorder %s41, %s44
      %p53 = scmp.eq.s32.totalorder %s36, 3
      %p54 = por %p52, %p53
      %p55 = scmp.ne.s32.totalorder %s44, %s45
      %p56 = scmp.eq.s32.totalorder %s36, 0
      %p57 = por %p55, %p56
      %p58 = scmp.ne.s32.totalorder %s44, %s45
      %p59 = scmp.eq.s32.totalorder %s37, 3
      %p60 = por %p58, %p59
      %p62 = scmp.ne.s32.totalorder %s45, %s61
      %p63 = scmp.eq.s32.totalorder %s37, 0
      %p64 = por %p62, %p63
      %s65 = ssub.s32 %s31, %s38
      %p66 = scmp.eq.s32.totalorder %s65, 0
      %s68 = sadd.s32 %s67, 1
      %s69 = scalar_select %p66, %s67, %s68
      %p72 = pneg %p66
      %p73 = scmp.eq.s32.totalorder %s31, 3
      %p74 = por %p72, %p73
      %p75 = scmp.ne.s32.totalorder %s67, %s70
      %p76 = scmp.eq.s32.totalorder %s31, 0
      %p77 = por %p75, %p76
      %p78 = scmp.ne.s32.totalorder %s67, %s70
      %p79 = scmp.eq.s32.totalorder %s36, 3
      %p80 = por %p78, %p79
      %p81 = scmp.ne.s32.totalorder %s70, %s71
      %p82 = scmp.eq.s32.totalorder %s36, 0
      %p83 = por %p81, %p82
      %p84 = scmp.ne.s32.totalorder %s70, %s71
      %p85 = scmp.eq.s32.totalorder %s37, 3
      %p86 = por %p84, %p85
      %p88 = scmp.ne.s32.totalorder %s71, %s87
      %p89 = scmp.eq.s32.totalorder %s37, 0
      %p90 = por %p88, %p89
      %s91 = ssub.s32 %s31, %s38
      %p92 = scmp.eq.s32.totalorder %s91, 0
      %s94 = sadd.s32 %s93, 1
      %s95 = scalar_select %p92, %s93, %s94
      %p98 = pneg %p92
      %p99 = scmp.eq.s32.totalorder %s31, 3
      %p100 = por %p98, %p99
      %p101 = scmp.ne.s32.totalorder %s93, %s96
      %p102 = scmp.eq.s32.totalorder %s31, 0
      %p103 = por %p101, %p102
      %p104 = scmp.ne.s32.totalorder %s93, %s96
      %p105 = scmp.eq.s32.totalorder %s36, 3
      %p106 = por %p104, %p105
      %p107 = scmp.ne.s32.totalorder %s96, %s97
      %p108 = scmp.eq.s32.totalorder %s36, 0
      %p109 = por %p107, %p108
      %p110 = scmp.ne.s32.totalorder %s96, %s97
      %p111 = scmp.eq.s32.totalorder %s37, 3
      %p112 = por %p110, %p111
      %p114 = scmp.ne.s32.totalorder %s97, %s113
      %p115 = scmp.eq.s32.totalorder %s37, 0
      %p116 = por %p114, %p115
      %s118 = sadd.s32 %s117, 1
      %p121 = scmp.eq.s32.totalorder %s31, 3
      %p122 = scmp.ne.s32.totalorder %s117, %s119
      %p123 = scmp.eq.s32.totalorder %s31, 0
      %p124 = por %p122, %p123
      %p125 = scmp.ne.s32.totalorder %s117, %s119
      %p126 = scmp.eq.s32.totalorder %s36, 3
      %p127 = por %p125, %p126
      %p128 = scmp.ne.s32.totalorder %s119, %s120
      %p129 = scmp.eq.s32.totalorder %s36, 0
      %p130 = por %p128, %p129
      %p131 = scmp.ne.s32.totalorder %s119, %s120
      %p132 = scmp.eq.s32.totalorder %s37, 3
      %p133 = por %p131, %p132
      %p135 = scmp.ne.s32.totalorder %s120, %s134
      %p136 = scmp.eq.s32.totalorder %s37, 0
      %p137 = por %p135, %p136
      %s139 = sadd.s32 %s138, 1
      %p142 = scmp.eq.s32.totalorder %s31, 3
      %p143 = scmp.ne.s32.totalorder %s138, %s140
      %p144 = scmp.eq.s32.totalorder %s31, 0
      %p145 = por %p143, %p144
      %p146 = scmp.ne.s32.totalorder %s138, %s140
      %p147 = scmp.eq.s32.totalorder %s36, 3
      %p148 = por %p146, %p147
      %p149 = scmp.ne.s32.totalorder %s140, %s141
      %p150 = scmp.eq.s32.totalorder %s36, 0
      %p151 = por %p149, %p150
      %p152 = scmp.ne.s32.totalorder %s140, %s141
      %p153 = scmp.eq.s32.totalorder %s37, 3
      %p154 = por %p152, %p153
      %p156 = scmp.ne.s32.totalorder %s141, %s155
      %p157 = scmp.eq.s32.totalorder %s37, 0
      %p158 = por %p156, %p157
      %s160 = sadd.s32 %s159, 1
      %p163 = scmp.eq.s32.totalorder %s31, 3
      %p164 = scmp.ne.s32.totalorder %s159, %s161
      %p165 = scmp.eq.s32.totalorder %s31, 0
      %p166 = por %p164, %p165
      %p167 = scmp.ne.s32.totalorder %s159, %s161
      %p168 = scmp.eq.s32.totalorder %s36, 3
      %p169 = por %p167, %p168
      %p170 = scmp.ne.s32.totalorder %s161, %s162
      %p171 = scmp.eq.s32.totalorder %s36, 0
      %p172 = por %p170, %p171
      %p173 = scmp.ne.s32.totalorder %s161, %s162
      %p174 = scmp.eq.s32.totalorder %s37, 3
      %p175 = por %p173, %p174
      %p177 = scmp.ne.s32.totalorder %s162, %s176
      %p178 = scmp.eq.s32.totalorder %s37, 0
      %p179 = por %p177, %p178
      %s181 = sadd.s32 %s180, 1
      %p184 = scmp.eq.s32.totalorder %s31, 3
      %p185 = scmp.ne.s32.totalorder %s180, %s182
      %p186 = scmp.eq.s32.totalorder %s31, 0
      %p187 = por %p185, %p186
      %p188 = scmp.ne.s32.totalorder %s180, %s182
      %p189 = scmp.eq.s32.totalorder %s36, 3
      %p190 = por %p188, %p189
      %p191 = scmp.ne.s32.totalorder %s182, %s183
      %p192 = scmp.eq.s32.totalorder %s36, 0
      %p193 = por %p191, %p192
      %p194 = scmp.ne.s32.totalorder %s182, %s183
      %p195 = scmp.eq.s32.totalorder %s37, 3
      %p196 = por %p194, %p195
      %p198 = scmp.ne.s32.totalorder %s183, %s197
      %p199 = scmp.eq.s32.totalorder %s37, 0
      %p200 = por %p198, %p199
      %s202 = sadd.s32 %s201, 1
      %p205 = scmp.eq.s32.totalorder %s31, 3
      %p206 = scmp.ne.s32.totalorder %s201, %s203
      %p207 = scmp.eq.s32.totalorder %s31, 0
      %p208 = por %p206, %p207
      %p209 = scmp.ne.s32.totalorder %s201, %s203
      %p210 = scmp.eq.s32.totalorder %s36, 3
      %p211 = por %p209, %p210
      %p212 = scmp.ne.s32.totalorder %s203, %s204
      %p213 = scmp.eq.s32.totalorder %s36, 0
      %p214 = por %p212, %p213
      %p215 = scmp.ne.s32.totalorder %s203, %s204
      %p216 = scmp.eq.s32.totalorder %s37, 3
      %p217 = por %p215, %p216
      %p219 = scmp.ne.s32.totalorder %s204, %s218
      %p220 = scmp.eq.s32.totalorder %s37, 0
      %p221 = por %p219, %p220
      %s223 = sadd.s32 %s222, 1
      %p226 = scmp.eq.s32.totalorder %s31, 3
      %p227 = scmp.ne.s32.totalorder %s222, %s224
      %p228 = scmp.eq.s32.totalorder %s31, 0
      %p229 = por %p227, %p228
      %p230 = scmp.ne.s32.totalorder %s222, %s224
      %p231 = scmp.eq.s32.totalorder %s36, 3
      %p232 = por %p230, %p231
      %p233 = scmp.ne.s32.totalorder %s224, %s225
      %p234 = scmp.eq.s32.totalorder %s36, 0
      %p235 = por %p233, %p234
      %p236 = scmp.ne.s32.totalorder %s224, %s225
      %p237 = scmp.eq.s32.totalorder %s37, 3
      %p238 = por %p236, %p237
      %p240 = scmp.ne.s32.totalorder %s225, %s239
      %p241 = scmp.eq.s32.totalorder %s37, 0
      %p242 = por %p240, %p241
      %s244 = sadd.s32 %s243, 1
      %p247 = scmp.eq.s32.totalorder %s31, 3
      %p248 = scmp.ne.s32.totalorder %s243, %s245
      %p249 = scmp.eq.s32.totalorder %s31, 0
      %p250 = por %p248, %p249
      %p251 = scmp.ne.s32.totalorder %s243, %s245
      %p252 = scmp.eq.s32.totalorder %s36, 3
      %p253 = por %p251, %p252
      %p254 = scmp.ne.s32.totalorder %s245, %s246
      %p255 = scmp.eq.s32.totalorder %s36, 0
      %p256 = por %p254, %p255
      %p257 = scmp.ne.s32.totalorder %s245, %s246
      %p258 = scmp.eq.s32.totalorder %s37, 3
      %p259 = por %p257, %p258
      %p261 = scmp.ne.s32.totalorder %s246, %s260
      %p262 = scmp.eq.s32.totalorder %s37, 0
      %p263 = por %p261, %p262
      %s265 = sadd.s32 %s264, 1
      %p268 = scmp.eq.s32.totalorder %s31, 3
      %p269 = scmp.ne.s32.totalorder %s264, %s266
      %p270 = scmp.eq.s32.totalorder %s31, 0
      %p271 = por %p269, %p270
      %p272 = scmp.ne.s32.totalorder %s264, %s266
      %p273 = scmp.eq.s32.totalorder %s36, 3
      %p274 = por %p272, %p273
      %p275 = scmp.ne.s32.totalorder %s266, %s267
      %p276 = scmp.eq.s32.totalorder %s36, 0
      %p277 = por %p275, %p276
      %p278 = scmp.ne.s32.totalorder %s266, %s267
      %p279 = scmp.eq.s32.totalorder %s37, 3
      %p280 = por %p278, %p279
      %p282 = scmp.ne.s32.totalorder %s267, %s281
      %p283 = scmp.eq.s32.totalorder %s37, 0
      %p284 = por %p282, %p283
      %s286 = sadd.s32 %s285, 1
      %p289 = scmp.eq.s32.totalorder %s31, 3
      %p290 = scmp.ne.s32.totalorder %s285, %s287
      %p291 = scmp.eq.s32.totalorder %s31, 0
      %p292 = por %p290, %p291
      %p293 = scmp.ne.s32.totalorder %s285, %s287
      %p294 = scmp.eq.s32.totalorder %s36, 3
      %p295 = por %p293, %p294
      %p296 = scmp.ne.s32.totalorder %s287, %s288
      %p297 = scmp.eq.s32.totalorder %s36, 0
      %p298 = por %p296, %p297
      %p299 = scmp.ne.s32.totalorder %s287, %s288
      %p300 = scmp.eq.s32.totalorder %s37, 3
      %p301 = por %p299, %p300
      %p303 = scmp.ne.s32.totalorder %s288, %s302
      %p304 = scmp.eq.s32.totalorder %s37, 0
      %p305 = por %p303, %p304
      %s307 = sadd.s32 %s306, 1
      %p310 = scmp.eq.s32.totalorder %s31, 3
      %p311 = scmp.ne.s32.totalorder %s306, %s308
      %p312 = scmp.eq.s32.totalorder %s31, 0
      %p313 = por %p311, %p312
      %p314 = scmp.ne.s32.totalorder %s306, %s308
      %p315 = scmp.eq.s32.totalorder %s36, 3
      %p316 = por %p314, %p315
      %p317 = scmp.ne.s32.totalorder %s308, %s309
      %p318 = scmp.eq.s32.totalorder %s36, 0
      %p319 = por %p317, %p318
      %p320 = scmp.ne.s32.totalorder %s308, %s309
      %p321 = scmp.eq.s32.totalorder %s37, 3
      %p322 = por %p320, %p321
      %p324 = scmp.ne.s32.totalorder %s309, %s323
      %p325 = scmp.eq.s32.totalorder %s37, 0
      %p326 = por %p324, %p325
      %s328 = sadd.s32 %s327, 1
      %p331 = scmp.eq.s32.totalorder %s31, 3
      %p332 = scmp.ne.s32.totalorder %s327, %s329
      %p333 = scmp.eq.s32.totalorder %s31, 0
      %p334 = por %p332, %p333
      %p335 = scmp.ne.s32.totalorder %s327, %s329
      %p336 = scmp.eq.s32.totalorder %s36, 3
      %p337 = por %p335, %p336
      %p338 = scmp.ne.s32.totalorder %s329, %s330
      %p339 = scmp.eq.s32.totalorder %s36, 0
      %p340 = por %p338, %p339
      %p341 = scmp.ne.s32.totalorder %s329, %s330
      %p342 = scmp.eq.s32.totalorder %s37, 3
      %p343 = por %p341, %p342
      %p345 = scmp.ne.s32.totalorder %s330, %s344
      %p346 = scmp.eq.s32.totalorder %s37, 0
      %p347 = por %p345, %p346
      %s349 = sadd.s32 %s348, 1
      %p352 = scmp.eq.s32.totalorder %s31, 3
      %p353 = scmp.ne.s32.totalorder %s348, %s350
      %p354 = scmp.eq.s32.totalorder %s31, 0
      %p355 = por %p353, %p354
      %p356 = scmp.ne.s32.totalorder %s348, %s350
      %p357 = scmp.eq.s32.totalorder %s36, 3
      %p358 = por %p356, %p357
      %p359 = scmp.ne.s32.totalorder %s350, %s351
      %p360 = scmp.eq.s32.totalorder %s36, 0
      %p361 = por %p359, %p360
      %p362 = scmp.ne.s32.totalorder %s350, %s351
      %p363 = scmp.eq.s32.totalorder %s37, 3
      %p364 = por %p362, %p363
      %p366 = scmp.ne.s32.totalorder %s351, %s365
      %p367 = scmp.eq.s32.totalorder %s37, 0
      %p368 = por %p366, %p367
      %s369 = ssub.s32 %s31, %s38
      %p370 = scmp.eq.s32.totalorder %s369, 0
      %s372 = sadd.s32 %s371, 1
      %s373 = scalar_select %p370, %s371, %s372
      %p376 = pneg %p370
      %p377 = scmp.eq.s32.totalorder %s31, 3
      %p378 = por %p376, %p377
      %p379 = scmp.ne.s32.totalorder %s371, %s374
      %p380 = scmp.eq.s32.totalorder %s31, 0
      %p381 = por %p379, %p380
      %p382 = scmp.ne.s32.totalorder %s371, %s374
      %p383 = scmp.eq.s32.totalorder %s36, 3
      %p384 = por %p382, %p383
      %p385 = scmp.ne.s32.totalorder %s374, %s375
      %p386 = scmp.eq.s32.totalorder %s36, 0
      %p387 = por %p385, %p386
      %p388 = scmp.ne.s32.totalorder %s374, %s375
      %p389 = scmp.eq.s32.totalorder %s37, 3
      %p390 = por %p388, %p389
      %p392 = scmp.ne.s32.totalorder %s375, %s391
      %p393 = scmp.eq.s32.totalorder %s37, 0
      %p394 = por %p392, %p393
      %p395 = scmp.le.s32.totalorder 1, %s31
      %p396 = scmp.lt.s32.totalorder %s31, 5
      %p397 = pnand %p395, %p396
      %p398 = pneg %p397
      // Predicated region
      $region9: #{edge_func.1} parent=5 // pred_check
        _
      $region10: #{edge_func.1} parent=5 // pred_check_branch
        %400 = sbr.rel (%p397) target = $region12
      $region11: #{edge_func.1} parent=5 // pred_region
        %s401 = ssub.s32 %s31, 1
        // Predicated region
        $region13: #{edge_func.1} parent=11 // pred_check
          %p402 = pneg %p130
        $region14: #{edge_func.1} parent=11 // pred_check_branch
          %404 = sbr.rel (%p402) target = $region16
        $region15: #{edge_func.1} parent=11 // pred_region
          _
        $region16: #{edge_func.1} parent=11 // pred_fallthru
          _
        // Predicated region
        $region17: #{edge_func.1} parent=11 // pred_check
          %p405 = pneg %p151
        $region18: #{edge_func.1} parent=11 // pred_check_branch
          %407 = sbr.rel (%p405) target = $region20
        $region19: #{edge_func.1} parent=11 // pred_region
          %s409 = ssub.s32 768, 768
          %410 = vsyncadd [#allocation6], %s409
          %s411 = sshll.u32 [#allocation7], 4
          %s412 = int_to_ptr.vmem [resolvable:$true] %s411
          %417 = dma.hbm_to_vmem [thread:$0]  %s4, 768, %s412, [#allocation6], 128, 128, 8
        $region20: #{edge_func.1} parent=11 // pred_fallthru
          _
        // Predicated region
        $region21: #{edge_func.1} parent=11 // pred_check
          %p418 = pneg %p172
        $region22: #{edge_func.1} parent=11 // pred_check_branch
          %420 = sbr.rel (%p418) target = $region24
        $region23: #{edge_func.1} parent=11 // pred_region
          %s422 = ssub.s32 768, 768
          %423 = vsyncadd [#allocation9], %s422
          %s424 = sshll.u32 [#allocation8], 4
          %s425 = int_to_ptr.vmem [resolvable:$true] %s424
          %430 = dma.hbm_to_vmem [thread:$0]  %s5, 768, %s425, [#allocation9], 128, 128, 8
        $region24: #{edge_func.1} parent=11 // pred_fallthru
          _
        // Predicated region
        $region25: #{edge_func.1} parent=11 // pred_check
          %p431 = pneg %p193
        $region26: #{edge_func.1} parent=11 // pred_check_branch
          %433 = sbr.rel (%p431) target = $region28
        $region27: #{edge_func.1} parent=11 // pred_region
          _
        $region28: #{edge_func.1} parent=11 // pred_fallthru
          _
        // Predicated region
        $region29: #{edge_func.1} parent=11 // pred_check
          %p434 = pneg %p214
        $region30: #{edge_func.1} parent=11 // pred_check_branch
          %436 = sbr.rel (%p434) target = $region32
        $region31: #{edge_func.1} parent=11 // pred_region
          _
        $region32: #{edge_func.1} parent=11 // pred_fallthru
          _
        // Predicated region
        $region33: #{edge_func.1} parent=11 // pred_check
          %p437 = pneg %p235
        $region34: #{edge_func.1} parent=11 // pred_check_branch
          %439 = sbr.rel (%p437) target = $region36
        $region35: #{edge_func.1} parent=11 // pred_region
          %s441 = ssub.s32 16, 16
          %442 = vsyncadd [#allocation9], %s441
          %s444 = sshll.u32 [#allocation10], 4
          %s445 = int_to_ptr.vmem [resolvable:$true] %s444
          %447 = dma.hbm_to_vmem [thread:$0]  %s8, 16, %s445, [#allocation9]
        $region36: #{edge_func.1} parent=11 // pred_fallthru
          _
        // Predicated region
        $region37: #{edge_func.1} parent=11 // pred_check
          %p448 = pneg %p256
        $region38: #{edge_func.1} parent=11 // pred_check_branch
          %450 = sbr.rel (%p448) target = $region40
        $region39: #{edge_func.1} parent=11 // pred_region
          _
        $region40: #{edge_func.1} parent=11 // pred_fallthru
          _
        // Predicated region
        $region41: #{edge_func.1} parent=11 // pred_check
          %p451 = pneg %p277
        $region42: #{edge_func.1} parent=11 // pred_check_branch
          %453 = sbr.rel (%p451) target = $region44
        $region43: #{edge_func.1} parent=11 // pred_region
          _
        $region44: #{edge_func.1} parent=11 // pred_fallthru
          _
        // Predicated region
        $region45: #{edge_func.1} parent=11 // pred_check
          %p454 = pneg %p298
        $region46: #{edge_func.1} parent=11 // pred_check_branch
          %456 = sbr.rel (%p454) target = $region48
        $region47: #{edge_func.1} parent=11 // pred_region
          _
        $region48: #{edge_func.1} parent=11 // pred_fallthru
          _
        // Predicated region
        $region49: #{edge_func.1} parent=11 // pred_check
          %p457 = pneg %p319
        $region50: #{edge_func.1} parent=11 // pred_check_branch
          %459 = sbr.rel (%p457) target = $region52
        $region51: #{edge_func.1} parent=11 // pred_region
          _
        $region52: #{edge_func.1} parent=11 // pred_fallthru
          _
        // Predicated region
        $region53: #{edge_func.1} parent=11 // pred_check
          %p460 = pneg %p340
        $region54: #{edge_func.1} parent=11 // pred_check_branch
          %462 = sbr.rel (%p460) target = $region56
        $region55: #{edge_func.1} parent=11 // pred_region
          _
        $region56: #{edge_func.1} parent=11 // pred_fallthru
          _
        // Predicated region
        $region57: #{edge_func.1} parent=11 // pred_check
          %p463 = pneg %p361
        $region58: #{edge_func.1} parent=11 // pred_check_branch
          %465 = sbr.rel (%p463) target = $region60
        $region59: #{edge_func.1} parent=11 // pred_region
          _
        $region60: #{edge_func.1} parent=11 // pred_fallthru
          _
      $region12: #{edge_func.1} parent=5 // pred_fallthru
        _
      %p466 = scmp.lt.s32.totalorder %s31, 4
      // Predicated region
      $region61: #{edge_func.1} parent=5 // pred_check
        %p467 = pneg %p466
      $region62: #{edge_func.1} parent=5 // pred_check_branch
        %469 = sbr.rel (%p467) target = $region64
      $region63: #{edge_func.1} parent=5 // pred_region
        // Predicated region
        $region65: #{edge_func.1} parent=63 // pred_check
          %p470 = pneg %p51
        $region66: #{edge_func.1} parent=63 // pred_check_branch
          %472 = sbr.rel (%p470) target = $region68
        $region67: #{edge_func.1} parent=63 // pred_region
          %s473 = smul.u32 10, %s31
          %s474 = ssub.s32 38, %s473
          %p475 = scmp.lt.s32.totalorder %s474, 10
          %s476 = scalar_select %p475, %s474, 10
          %s477 = smul.u32 128, %s476
          %p478 = scmp.lt.s32.totalorder %s473, 37
          %s479 = scalar_select %p478, %s473, 37
          %s480 = smul.addr %s479, 8
          %s481 = scalar_lea.vmem %s0, %s480
          %s482 = smul.u32 10, %s31
          %s483 = ssub.s32 38, %s482
          %p484 = scmp.lt.s32.totalorder %s483, 10
          %s485 = scalar_select %p484, %s483, 10
          %s486 = smul.u32 128, %s485
        $region68: #{edge_func.1} parent=63 // pred_fallthru
          _
        // Predicated region
        $region69: #{edge_func.1} parent=63 // pred_check
          %p487 = pneg %p77
        $region70: #{edge_func.1} parent=63 // pred_check_branch
          %489 = sbr.rel (%p487) target = $region72
        $region71: #{edge_func.1} parent=63 // pred_region
          %s490 = sand.u32 %s67, 1
          %s491 = scalar_lea.sflag [#allocation3], %s490
          %s492 = sand.u32 %s67, 1
          %s493 = smul.addr %s492, 80
          %s494 = scalar_lea.vmem [#allocation2], %s493
          %s495 = smul.u32 10, %s31
          %s496 = ssub.s32 38, %s495
          %p497 = scmp.lt.s32.totalorder %s496, 10
          %s498 = scalar_select %p497, %s496, 10
          %s499 = smul.u32 128, %s498
          %s501 = ssub.s32 1280, %s499
          %502 = vsyncadd %s491, %s501
          %p503 = scmp.ne.s32.totalorder 0, %s499
          %s504 = smul.addr %s495, 128
          %s505 = scalar_lea.hbm %s1, %s504
          %s506 = smul.u32 8, %s498
          %s507 = sshll.u32 %s494, 4
          %s508 = int_to_ptr.vmem [resolvable:$true] %s507
          %s509 = sshll.u32 %s506, 4
          %513 = dma.hbm_to_vmem [thread:$0]  (%p503), %s505, %s509, %s508, %s491, 128, 128, 8
        $region72: #{edge_func.1} parent=63 // pred_fallthru
          _
        // Predicated region
        $region73: #{edge_func.1} parent=63 // pred_check
          %p514 = pneg %p103
        $region74: #{edge_func.1} parent=63 // pred_check_branch
          %516 = sbr.rel (%p514) target = $region76
        $region75: #{edge_func.1} parent=63 // pred_region
          %s517 = sand.u32 %s31, 1
          %s518 = scalar_lea.sflag [#allocation6], %s517
          %s519 = sand.u32 %s93, 1
          %s520 = smul.addr %s519, 80
          %s521 = scalar_lea.vmem [#allocation5], %s520
          %s522 = smul.u32 10, %s31
          %s523 = ssub.s32 38, %s522
          %p524 = scmp.lt.s32.totalorder %s523, 10
          %s525 = scalar_select %p524, %s523, 10
          %s526 = smul.u32 128, %s525
          %s528 = ssub.s32 1280, %s526
          %529 = vsyncadd %s518, %s528
          %p530 = scmp.ne.s32.totalorder 0, %s526
          %s531 = smul.addr %s522, 128
          %s532 = scalar_lea.hbm %s2, %s531
          %s533 = smul.u32 8, %s525
          %s534 = sshll.u32 %s521, 4
          %s535 = int_to_ptr.vmem [resolvable:$true] %s534
          %s536 = sshll.u32 %s533, 4
          %540 = dma.hbm_to_vmem [thread:$0]  (%p530), %s532, %s536, %s535, %s518, 128, 128, 8
        $region76: #{edge_func.1} parent=63 // pred_fallthru
          _
      $region64: #{edge_func.1} parent=5 // pred_fallthru
        _
      %p541 = scmp.le.s32.totalorder 1, %s31
      %p542 = scmp.lt.s32.totalorder %s31, 5
      %p543 = pnand %p541, %p542
      %p544 = pneg %p543
      // Predicated region
      $region77: #{edge_func.1} parent=5 // pred_check
        _
      $region78: #{edge_func.1} parent=5 // pred_check_branch
        %546 = sbr.rel (%p543) target = $region80
      $region79: #{edge_func.1} parent=5 // pred_region
        %s547 = ssub.s32 %s31, 1
        %s548 = sand.u32 %s70, 1
        %s549 = scalar_lea.sflag [#allocation3], %s548
        %s550 = sand.u32 %s70, 1
        %s551 = smul.addr %s550, 80
        %s552 = scalar_lea.vmem [#allocation2], %s551
        // Predicated region
        $region81: #{edge_func.1} parent=79 // pred_check
          %p553 = pneg %p83
        $region82: #{edge_func.1} parent=79 // pred_check_branch
          %555 = sbr.rel (%p553) target = $region84
        $region83: #{edge_func.1} parent=79 // pred_region
          %556 = dma.done %s549, 1280
        $region84: #{edge_func.1} parent=79 // pred_fallthru
          _
        %s557 = sand.u32 %s36, 1
        %s558 = scalar_lea.sflag [#allocation6], %s557
        %s559 = sand.u32 %s96, 1
        %s560 = smul.addr %s559, 80
        %s561 = scalar_lea.vmem [#allocation5], %s560
        // Predicated region
        $region85: #{edge_func.1} parent=79 // pred_check
          %p562 = pneg %p109
        $region86: #{edge_func.1} parent=79 // pred_check_branch
          %564 = sbr.rel (%p562) target = $region88
        $region87: #{edge_func.1} parent=79 // pred_region
          %565 = dma.done %s558, 1280
        $region88: #{edge_func.1} parent=79 // pred_fallthru
          _
        // Predicated region
        $region89: #{edge_func.1} parent=79 // pred_check
          %p566 = pneg %p151
        $region90: #{edge_func.1} parent=79 // pred_check_branch
          %568 = sbr.rel (%p566) target = $region92
        $region91: #{edge_func.1} parent=79 // pred_region
          %569 = dma.done [#allocation6], 768
        $region92: #{edge_func.1} parent=79 // pred_fallthru
          _
        // Predicated region
        $region93: #{edge_func.1} parent=79 // pred_check
          %p570 = pneg %p172
        $region94: #{edge_func.1} parent=79 // pred_check_branch
          %572 = sbr.rel (%p570) target = $region96
        $region95: #{edge_func.1} parent=79 // pred_region
          %573 = dma.done [#allocation9], 768
        $region96: #{edge_func.1} parent=79 // pred_fallthru
          _
        // Predicated region
        $region97: #{edge_func.1} parent=79 // pred_check
          %p574 = pneg %p235
        $region98: #{edge_func.1} parent=79 // pred_check_branch
          %576 = sbr.rel (%p574) target = $region100
        $region99: #{edge_func.1} parent=79 // pred_region
          %577 = dma.done [#allocation9], 16
        $region100: #{edge_func.1} parent=79 // pred_fallthru
          _
        %s578 = smul.u32 10, %s36
        %s579 = ssub.s32 38, %s578
        %p580 = scmp.lt.s32.totalorder %s579, 10
        %s581 = scalar_select %p580, %s579, 10
        %s582 = smul.u32 128, %s581
        %p583 = scmp.lt.s32.totalorder %s578, 37
        %s584 = scalar_select %p583, %s578, 37
        %s585 = smul.addr %s584, 8
        %s586 = scalar_lea.vmem %s0, %s585
        %p587 = pneg %p57
        %p588 = pneg %p54
        %s589 = sand.u32 %s70, 1
        %s590 = scalar_lea.sflag [#allocation3], %s589
        %s591 = sand.u32 %s70, 1
        %s592 = smul.addr %s591, 80
        %s593 = scalar_lea.vmem [#allocation2], %s592
        %p594 = pneg %p83
        %p595 = pneg %p80
        %s596 = sand.u32 %s36, 1
        %s597 = scalar_lea.sflag [#allocation6], %s596
        %s598 = sand.u32 %s96, 1
        %s599 = smul.addr %s598, 80
        %s600 = scalar_lea.vmem [#allocation5], %s599
        %p601 = pneg %p109
        %p602 = pneg %p106
        %p603 = pneg %p130
        %p604 = pneg %p127
        %p605 = pneg %p151
        %p606 = pneg %p148
        %p607 = pneg %p172
        %p608 = pneg %p169
        %p609 = pneg %p193
        %p610 = pneg %p190
        %p611 = pneg %p214
        %p612 = pneg %p211
        %p613 = pneg %p235
        %p614 = pneg %p232
        %p615 = pneg %p256
        %p616 = pneg %p253
        %p617 = pneg %p277
        %p618 = pneg %p274
        %p619 = pneg %p298
        %p620 = pneg %p295
        %p621 = pneg %p319
        %p622 = pneg %p316
        %p623 = pneg %p340
        %p624 = pneg %p337
        %p625 = pneg %p361
        %p626 = pneg %p358
        %p627 = pneg %p387
        %p628 = pneg %p384
        %s629 = sand.u32 %s374, 1
        %s630 = scalar_lea.sflag [#allocation4], %s629
        %s631 = sand.u32 %s374, 1
        %s632 = smul.addr %s631, 80
        %s633 = scalar_lea.vmem [#allocation11], %s632
        %s634 = smul.u32 10, %s36
        %s635 = ssub.s32 38, %s634
        %p636 = scmp.lt.s32.totalorder %s635, 10
        %s637 = scalar_select %p636, %s635, 10
        %s638 = smul.u32 128, %s637
        %p639 = scmp.lt.s32.totalorder %s634, 37
        %s640 = scalar_select %p639, %s634, 37
        %s641 = smul.addr %s640, 8
        %s642 = scalar_lea.vmem %s0, %s641
        %s643 = smul.u32 10, %s36
        %s644 = ssub.s32 38, %s643
        %p645 = scmp.lt.s32.totalorder %s644, 10
        %s646 = scalar_select %p645, %s644, 10
        %s647 = smul.u32 128, %s646
        %s648 = smul.u32 10, %s36
        %s649 = ssub.s32 38, %s648
        %p650 = scmp.lt.s32.totalorder %s649, 10
        %s651 = scalar_select %p650, %s649, 10
        %s652 = smul.u32 128, %s651
        %s653 = smul.u32 10, %s36
        %s654 = ssub.s32 38, %s653
        %p655 = scmp.lt.s32.totalorder %s654, 10
        %s656 = scalar_select %p655, %s654, 10
        %s657 = smul.u32 128, %s656
        %s658 = smul.u32 10, %s36
        %s659 = ssub.s32 38, %s658
        %p660 = scmp.lt.s32.totalorder %s659, 10
        %s661 = scalar_select %p660, %s659, 10
        %s662 = smul.u32 128, %s661
        %v664 = vld [vmem:[%s561] sm:$0xff]
        %v665 = vld [vmem:[%s561 + $0x8] sm:$0xff]
        %v666 = vld [vmem:[%s561 + $0x10] sm:$0xff]
        %v667 = vld [vmem:[%s561 + $0x18] sm:$0xff]
        %v668 = vld [vmem:[%s561 + $0x20] sm:$0xff]
        %v669 = vld [vmem:[%s561 + $0x28] sm:$0xff]
        %v670 = vld [vmem:[%s561 + $0x30] sm:$0xff]
        %v671 = vld [vmem:[%s561 + $0x38] sm:$0xff]
        %v672 = vld [vmem:[%s561 + $0x40] sm:$0xff]
        %v673 = vld [vmem:[%s561 + $0x48] sm:$0xff]
        %v674 = vld [vmem:[%s642] sm:$0xff]
        %v675 = vld [vmem:[%s642 + $0x8] sm:$0xff]
        %v676 = vld [vmem:[%s642 + $0x10] sm:$0xff]
        %v677 = vld [vmem:[%s642 + $0x18] sm:$0xff]
        %v678 = vld [vmem:[%s642 + $0x20] sm:$0xff]
        %v679 = vld [vmem:[%s642 + $0x28] sm:$0xff]
        %v680 = vld [vmem:[%s642 + $0x30] sm:$0xff]
        %v681 = vld [vmem:[%s642 + $0x38] sm:$0xff]
        %v682 = vld [vmem:[%s642 + $0x40] sm:$0xff]
        %v683 = vld [vmem:[%s642 + $0x48] sm:$0xff]
        %v684 = vld [vmem:[%s552] sm:$0xff]
        %v685 = vld [vmem:[%s552 + $0x8] sm:$0xff]
        %v686 = vld [vmem:[%s552 + $0x10] sm:$0xff]
        %v687 = vld [vmem:[%s552 + $0x18] sm:$0xff]
        %v688 = vld [vmem:[%s552 + $0x20] sm:$0xff]
        %v689 = vld [vmem:[%s552 + $0x28] sm:$0xff]
        %v690 = vld [vmem:[%s552 + $0x30] sm:$0xff]
        %v691 = vld [vmem:[%s552 + $0x38] sm:$0xff]
        %v692 = vld [vmem:[%s552 + $0x40] sm:$0xff]
        %v693 = vld [vmem:[%s552 + $0x48] sm:$0xff]
        %v694 = vld [vmem:[%s3] sm:$0xff]
        %v695 = vld [vmem:[%s3 + $0x8] sm:$0xff]
        %v696 = vld [vmem:[%s3 + $0x10] sm:$0xff]
        %v697 = vld [vmem:[%s3 + $0x18] sm:$0xff]
        %v698 = vld [vmem:[%s3 + $0x20] sm:$0xff]
        %v699 = vld [vmem:[%s3 + $0x28] sm:$0xff]
        %v700 = vld [vmem:[%s3 + $0x30] sm:$0xff]
        %v701 = vld [vmem:[%s3 + $0x38] sm:$0xff]
        %v702 = vld [vmem:[%s3 + $0x40] sm:$0xff]
        %v703 = vld [vmem:[%s3 + $0x48] sm:$0xff]
        %v704 = vld [vmem:[%s3 + $0x50] sm:$0xff]
        %v705 = vld [vmem:[%s3 + $0x58] sm:$0xff]
        %v706 = vld [vmem:[%s3 + $0x60] sm:$0xff]
        %v707 = vld [vmem:[%s3 + $0x68] sm:$0xff]
        %v708 = vld [vmem:[%s3 + $0x70] sm:$0xff]
        %v709 = vld [vmem:[%s3 + $0x78] sm:$0xff]
        %s710 = scalar_lea.vmem %s3, 128
        %v711 = vld [vmem:[%s710] sm:$0xff]
        %v712 = vld [vmem:[%s710 + $0x8] sm:$0xff]
        %v713 = vld [vmem:[%s710 + $0x10] sm:$0xff]
        %v714 = vld [vmem:[%s710 + $0x18] sm:$0xff]
        %v715 = vld [vmem:[%s710 + $0x20] sm:$0xff]
        %v716 = vld [vmem:[%s710 + $0x28] sm:$0xff]
        %v717 = vld [vmem:[%s710 + $0x30] sm:$0xff]
        %v718 = vld [vmem:[%s710 + $0x38] sm:$0xff]
        %v719 = vld [vmem:[%s710 + $0x40] sm:$0xff]
        %v720 = vld [vmem:[%s710 + $0x48] sm:$0xff]
        %v721 = vld [vmem:[%s710 + $0x50] sm:$0xff]
        %v722 = vld [vmem:[%s710 + $0x58] sm:$0xff]
        %v723 = vld [vmem:[%s710 + $0x60] sm:$0xff]
        %v724 = vld [vmem:[%s710 + $0x68] sm:$0xff]
        %v725 = vld [vmem:[%s710 + $0x70] sm:$0xff]
        %v726 = vld [vmem:[%s710 + $0x78] sm:$0xff]
        %727 = vmatprep.subr.mxu0 0.0
        %728 = vmatpush1.msra.mxu0 %v726
        %729 = vmatprep.subr.mxu0 0.0
        %730 = vmatpush1.msra.mxu0 %v725
        %731 = vmatprep.subr.mxu0 0.0
        %732 = vmatpush1.msra.mxu0 %v724
        %733 = vmatprep.subr.mxu0 0.0
        %734 = vmatpush1.msra.mxu0 %v723
        %735 = vmatprep.subr.mxu0 0.0
        %736 = vmatpush1.msra.mxu0 %v722
        %737 = vmatprep.subr.mxu0 0.0
        %738 = vmatpush1.msra.mxu0 %v721
        %739 = vmatprep.subr.mxu0 0.0
        %740 = vmatpush1.msra.mxu0 %v720
        %741 = vmatprep.subr.mxu0 0.0
        %742 = vmatpush1.msra.mxu0 %v719
        %743 = vmatprep.subr.mxu0 0.0
        %744 = vmatpush1.msra.mxu0 %v718
        %745 = vmatprep.subr.mxu0 0.0
        %746 = vmatpush1.msra.mxu0 %v717
        %747 = vmatprep.subr.mxu0 0.0
        %748 = vmatpush1.msra.mxu0 %v716
        %749 = vmatprep.subr.mxu0 0.0
        %750 = vmatpush1.msra.mxu0 %v715
        %751 = vmatprep.subr.mxu0 0.0
        %752 = vmatpush1.msra.mxu0 %v714
        %753 = vmatprep.subr.mxu0 0.0
        %754 = vmatpush1.msra.mxu0 %v713
        %755 = vmatprep.subr.mxu0 0.0
        %756 = vmatpush1.msra.mxu0 %v712
        %757 = vmatprep.subr.mxu0 0.0
        %758 = vmatpush1.msra.mxu0 %v711
        %759 = vmatprep.subr.mxu0 0.0
        %760 = vmatpush2.msra.mxu0 0.0
        %761 = vmatprep.subr.mxu0 0.0
        %762 = vmatpush2.msra.mxu0 0.0
        %763 = vmatprep.subr.mxu0 0.0
        %764 = vmatpush2.msra.mxu0 0.0
        %765 = vmatprep.subr.mxu0 0.0
        %766 = vmatpush2.msra.mxu0 0.0
        %767 = vmatprep.subr.mxu0 0.0
        %768 = vmatpush2.msra.mxu0 0.0
        %769 = vmatprep.subr.mxu0 0.0
        %770 = vmatpush2.msra.mxu0 0.0
        %771 = vmatprep.subr.mxu0 0.0
        %772 = vmatpush2.msra.mxu0 0.0
        %773 = vmatprep.subr.mxu0 0.0
        %774 = vmatpush2.msra.mxu0 0.0
        %775 = vmatprep.subr.mxu0 0.0
        %776 = vmatpush2.msra.mxu0 0.0
        %777 = vmatprep.subr.mxu0 0.0
        %778 = vmatpush2.msra.mxu0 0.0
        %779 = vmatprep.subr.mxu0 0.0
        %780 = vmatpush2.msra.mxu0 0.0
        %781 = vmatprep.subr.mxu0 0.0
        %782 = vmatpush2.msra.mxu0 0.0
        %783 = vmatprep.subr.mxu0 0.0
        %784 = vmatpush2.msra.mxu0 0.0
        %785 = vmatprep.subr.mxu0 0.0
        %786 = vmatpush2.msra.mxu0 0.0
        %787 = vmatprep.subr.mxu0 0.0
        %788 = vmatpush2.msra.mxu0 0.0
        %789 = vmatprep.subr.mxu0 0.0
        %790 = vmatpush2.msra.mxu0 0.0
        %791 = vmatprep.mubr.f32.mxu0 0.0
        %792 = vmatmul.mubr.f32.gmra.mxu0 %v684
        %v793 = vpop.f32.mrf.mxu0
        %v794 = vadd.f32 0.0, %v793
        %v795 = vpop.f32.mrf.mxu0
        %796 = vmatprep.mubr.f32.mxu0 0.0
        %797 = vmatmul.mubr.f32.gmra.mxu0 %v685
        %v798 = vpop.f32.mrf.mxu0
        %v799 = vadd.f32 0.0, %v798
        %v800 = vpop.f32.mrf.mxu0
        %801 = vmatprep.mubr.f32.mxu0 0.0
        %802 = vmatmul.mubr.f32.gmra.mxu0 %v686
        %v803 = vpop.f32.mrf.mxu0
        %v804 = vadd.f32 0.0, %v803
        %v805 = vpop.f32.mrf.mxu0
        %806 = vmatprep.mubr.f32.mxu0 0.0
        %807 = vmatmul.mubr.f32.gmra.mxu0 %v687
        %v808 = vpop.f32.mrf.mxu0
        %v809 = vadd.f32 0.0, %v808
        %v810 = vpop.f32.mrf.mxu0
        %811 = vmatprep.mubr.f32.mxu0 0.0
        %812 = vmatmul.mubr.f32.gmra.mxu0 %v688
        %v813 = vpop.f32.mrf.mxu0
        %v814 = vadd.f32 0.0, %v813
        %v815 = vpop.f32.mrf.mxu0
        %816 = vmatprep.mubr.f32.mxu0 0.0
        %817 = vmatmul.mubr.f32.gmra.mxu0 %v689
        %v818 = vpop.f32.mrf.mxu0
        %v819 = vadd.f32 0.0, %v818
        %v820 = vpop.f32.mrf.mxu0
        %821 = vmatprep.mubr.f32.mxu0 0.0
        %822 = vmatmul.mubr.f32.gmra.mxu0 %v690
        %v823 = vpop.f32.mrf.mxu0
        %v824 = vadd.f32 0.0, %v823
        %v825 = vpop.f32.mrf.mxu0
        %826 = vmatprep.mubr.f32.mxu0 0.0
        %827 = vmatmul.mubr.f32.gmra.mxu0 %v691
        %v828 = vpop.f32.mrf.mxu0
        %v829 = vadd.f32 0.0, %v828
        %v830 = vpop.f32.mrf.mxu0
        %831 = vmatprep.mubr.f32.mxu0 0.0
        %832 = vmatmul.mubr.f32.gmra.mxu0 %v692
        %v833 = vpop.f32.mrf.mxu0
        %v834 = vadd.f32 0.0, %v833
        %v835 = vpop.f32.mrf.mxu0
        %836 = vmatprep.mubr.f32.mxu0 0.0
        %837 = vmatmul.mubr.f32.gmra.mxu0 %v693
        %v838 = vpop.f32.mrf.mxu0
        %v839 = vadd.f32 0.0, %v838
        %v840 = vpop.f32.mrf.mxu0
        %841 = vdwg.mxu0
        %842 = vmatprep.subr.mxu0 0.0
        %843 = vmatpush1.msra.mxu0 %v709
        %844 = vmatprep.subr.mxu0 0.0
        %845 = vmatpush1.msra.mxu0 %v708
        %846 = vmatprep.subr.mxu0 0.0
        %847 = vmatpush1.msra.mxu0 %v707
        %848 = vmatprep.subr.mxu0 0.0
        %849 = vmatpush1.msra.mxu0 %v706
        %850 = vmatprep.subr.mxu0 0.0
        %851 = vmatpush1.msra.mxu0 %v705
        %852 = vmatprep.subr.mxu0 0.0
        %853 = vmatpush1.msra.mxu0 %v704
        %854 = vmatprep.subr.mxu0 0.0
        %855 = vmatpush1.msra.mxu0 %v703
        %856 = vmatprep.subr.mxu0 0.0
        %857 = vmatpush1.msra.mxu0 %v702
        %858 = vmatprep.subr.mxu0 0.0
        %859 = vmatpush1.msra.mxu0 %v701
        %860 = vmatprep.subr.mxu0 0.0
        %861 = vmatpush1.msra.mxu0 %v700
        %862 = vmatprep.subr.mxu0 0.0
        %863 = vmatpush1.msra.mxu0 %v699
        %864 = vmatprep.subr.mxu0 0.0
        %865 = vmatpush1.msra.mxu0 %v698
        %866 = vmatprep.subr.mxu0 0.0
        %867 = vmatpush1.msra.mxu0 %v697
        %868 = vmatprep.subr.mxu0 0.0
        %869 = vmatpush1.msra.mxu0 %v696
        %870 = vmatprep.subr.mxu0 0.0
        %871 = vmatpush1.msra.mxu0 %v695
        %872 = vmatprep.subr.mxu0 0.0
        %873 = vmatpush1.msra.mxu0 %v694
        %874 = vmatprep.subr.mxu0 0.0
        %875 = vmatpush2.msra.mxu0 0.0
        %876 = vmatprep.subr.mxu0 0.0
        %877 = vmatpush2.msra.mxu0 0.0
        %878 = vmatprep.subr.mxu0 0.0
        %879 = vmatpush2.msra.mxu0 0.0
        %880 = vmatprep.subr.mxu0 0.0
        %881 = vmatpush2.msra.mxu0 0.0
        %882 = vmatprep.subr.mxu0 0.0
        %883 = vmatpush2.msra.mxu0 0.0
        %884 = vmatprep.subr.mxu0 0.0
        %885 = vmatpush2.msra.mxu0 0.0
        %886 = vmatprep.subr.mxu0 0.0
        %887 = vmatpush2.msra.mxu0 0.0
        %888 = vmatprep.subr.mxu0 0.0
        %889 = vmatpush2.msra.mxu0 0.0
        %890 = vmatprep.subr.mxu0 0.0
        %891 = vmatpush2.msra.mxu0 0.0
        %892 = vmatprep.subr.mxu0 0.0
        %893 = vmatpush2.msra.mxu0 0.0
        %894 = vmatprep.subr.mxu0 0.0
        %895 = vmatpush2.msra.mxu0 0.0
        %896 = vmatprep.subr.mxu0 0.0
        %897 = vmatpush2.msra.mxu0 0.0
        %898 = vmatprep.subr.mxu0 0.0
        %899 = vmatpush2.msra.mxu0 0.0
        %900 = vmatprep.subr.mxu0 0.0
        %901 = vmatpush2.msra.mxu0 0.0
        %902 = vmatprep.subr.mxu0 0.0
        %903 = vmatpush2.msra.mxu0 0.0
        %904 = vmatprep.subr.mxu0 0.0
        %905 = vmatpush2.msra.mxu0 0.0
        %906 = vmatprep.mubr.f32.mxu0 0.0
        %907 = vmatmul.mubr.f32.gmra.mxu0 %v674
        %v908 = vpop.f32.mrf.mxu0
        %v909 = vadd.f32 %v794, %v908
        %v910 = vpop.f32.mrf.mxu0
        %911 = vmatprep.mubr.f32.mxu0 0.0
        %912 = vmatmul.mubr.f32.gmra.mxu0 %v675
        %v913 = vpop.f32.mrf.mxu0
        %v914 = vadd.f32 %v799, %v913
        %v915 = vpop.f32.mrf.mxu0
        %916 = vmatprep.mubr.f32.mxu0 0.0
        %917 = vmatmul.mubr.f32.gmra.mxu0 %v676
        %v918 = vpop.f32.mrf.mxu0
        %v919 = vadd.f32 %v804, %v918
        %v920 = vpop.f32.mrf.mxu0
        %921 = vmatprep.mubr.f32.mxu0 0.0
        %922 = vmatmul.mubr.f32.gmra.mxu0 %v677
        %v923 = vpop.f32.mrf.mxu0
        %v924 = vadd.f32 %v809, %v923
        %v925 = vpop.f32.mrf.mxu0
        %926 = vmatprep.mubr.f32.mxu0 0.0
        %927 = vmatmul.mubr.f32.gmra.mxu0 %v678
        %v928 = vpop.f32.mrf.mxu0
        %v929 = vadd.f32 %v814, %v928
        %v930 = vpop.f32.mrf.mxu0
        %931 = vmatprep.mubr.f32.mxu0 0.0
        %932 = vmatmul.mubr.f32.gmra.mxu0 %v679
        %v933 = vpop.f32.mrf.mxu0
        %v934 = vadd.f32 %v819, %v933
        %v935 = vpop.f32.mrf.mxu0
        %936 = vmatprep.mubr.f32.mxu0 0.0
        %937 = vmatmul.mubr.f32.gmra.mxu0 %v680
        %v938 = vpop.f32.mrf.mxu0
        %v939 = vadd.f32 %v824, %v938
        %v940 = vpop.f32.mrf.mxu0
        %941 = vmatprep.mubr.f32.mxu0 0.0
        %942 = vmatmul.mubr.f32.gmra.mxu0 %v681
        %v943 = vpop.f32.mrf.mxu0
        %v944 = vadd.f32 %v829, %v943
        %v945 = vpop.f32.mrf.mxu0
        %946 = vmatprep.mubr.f32.mxu0 0.0
        %947 = vmatmul.mubr.f32.gmra.mxu0 %v682
        %v948 = vpop.f32.mrf.mxu0
        %v949 = vadd.f32 %v834, %v948
        %v950 = vpop.f32.mrf.mxu0
        %951 = vmatprep.mubr.f32.mxu0 0.0
        %952 = vmatmul.mubr.f32.gmra.mxu0 %v683
        %v953 = vpop.f32.mrf.mxu0
        %v954 = vadd.f32 %v839, %v953
        %v955 = vpop.f32.mrf.mxu0
        %956 = vdwg.mxu0
        %s957 = scalar_lea.vmem %s3, 256
        %v958 = vld [vmem:[%s957] sm:$0xff]
        %v959 = vld [vmem:[%s957 + $0x8] sm:$0xff]
        %v960 = vld [vmem:[%s957 + $0x10] sm:$0xff]
        %v961 = vld [vmem:[%s957 + $0x18] sm:$0xff]
        %v962 = vld [vmem:[%s957 + $0x20] sm:$0xff]
        %v963 = vld [vmem:[%s957 + $0x28] sm:$0xff]
        %v964 = vld [vmem:[%s957 + $0x30] sm:$0xff]
        %v965 = vld [vmem:[%s957 + $0x38] sm:$0xff]
        %v966 = vld [vmem:[%s957 + $0x40] sm:$0xff]
        %v967 = vld [vmem:[%s957 + $0x48] sm:$0xff]
        %v968 = vld [vmem:[%s957 + $0x50] sm:$0xff]
        %v969 = vld [vmem:[%s957 + $0x58] sm:$0xff]
        %v970 = vld [vmem:[%s957 + $0x60] sm:$0xff]
        %v971 = vld [vmem:[%s957 + $0x68] sm:$0xff]
        %v972 = vld [vmem:[%s957 + $0x70] sm:$0xff]
        %v973 = vld [vmem:[%s957 + $0x78] sm:$0xff]
        %974 = vmatprep.subr.mxu0 0.0
        %975 = vmatpush1.msra.mxu0 %v973
        %976 = vmatprep.subr.mxu0 0.0
        %977 = vmatpush1.msra.mxu0 %v972
        %978 = vmatprep.subr.mxu0 0.0
        %979 = vmatpush1.msra.mxu0 %v971
        %980 = vmatprep.subr.mxu0 0.0
        %981 = vmatpush1.msra.mxu0 %v970
        %982 = vmatprep.subr.mxu0 0.0
        %983 = vmatpush1.msra.mxu0 %v969
        %984 = vmatprep.subr.mxu0 0.0
        %985 = vmatpush1.msra.mxu0 %v968
        %986 = vmatprep.subr.mxu0 0.0
        %987 = vmatpush1.msra.mxu0 %v967
        %988 = vmatprep.subr.mxu0 0.0
        %989 = vmatpush1.msra.mxu0 %v966
        %990 = vmatprep.subr.mxu0 0.0
        %991 = vmatpush1.msra.mxu0 %v965
        %992 = vmatprep.subr.mxu0 0.0
        %993 = vmatpush1.msra.mxu0 %v964
        %994 = vmatprep.subr.mxu0 0.0
        %995 = vmatpush1.msra.mxu0 %v963
        %996 = vmatprep.subr.mxu0 0.0
        %997 = vmatpush1.msra.mxu0 %v962
        %998 = vmatprep.subr.mxu0 0.0
        %999 = vmatpush1.msra.mxu0 %v961
        %1000 = vmatprep.subr.mxu0 0.0
        %1001 = vmatpush1.msra.mxu0 %v960
        %1002 = vmatprep.subr.mxu0 0.0
        %1003 = vmatpush1.msra.mxu0 %v959
        %1004 = vmatprep.subr.mxu0 0.0
        %1005 = vmatpush1.msra.mxu0 %v958
        %1006 = vmatprep.subr.mxu0 0.0
        %1007 = vmatpush2.msra.mxu0 0.0
        %1008 = vmatprep.subr.mxu0 0.0
        %1009 = vmatpush2.msra.mxu0 0.0
        %1010 = vmatprep.subr.mxu0 0.0
        %1011 = vmatpush2.msra.mxu0 0.0
        %1012 = vmatprep.subr.mxu0 0.0
        %1013 = vmatpush2.msra.mxu0 0.0
        %1014 = vmatprep.subr.mxu0 0.0
        %1015 = vmatpush2.msra.mxu0 0.0
        %1016 = vmatprep.subr.mxu0 0.0
        %1017 = vmatpush2.msra.mxu0 0.0
        %1018 = vmatprep.subr.mxu0 0.0
        %1019 = vmatpush2.msra.mxu0 0.0
        %1020 = vmatprep.subr.mxu0 0.0
        %1021 = vmatpush2.msra.mxu0 0.0
        %1022 = vmatprep.subr.mxu0 0.0
        %1023 = vmatpush2.msra.mxu0 0.0
        %1024 = vmatprep.subr.mxu0 0.0
        %1025 = vmatpush2.msra.mxu0 0.0
        %1026 = vmatprep.subr.mxu0 0.0
        %1027 = vmatpush2.msra.mxu0 0.0
        %1028 = vmatprep.subr.mxu0 0.0
        %1029 = vmatpush2.msra.mxu0 0.0
        %1030 = vmatprep.subr.mxu0 0.0
        %1031 = vmatpush2.msra.mxu0 0.0
        %1032 = vmatprep.subr.mxu0 0.0
        %1033 = vmatpush2.msra.mxu0 0.0
        %1034 = vmatprep.subr.mxu0 0.0
        %1035 = vmatpush2.msra.mxu0 0.0
        %1036 = vmatprep.subr.mxu0 0.0
        %1037 = vmatpush2.msra.mxu0 0.0
        %1038 = vmatprep.mubr.f32.mxu0 0.0
        %1039 = vmatmul.mubr.f32.gmra.mxu0 %v664
        %v1040 = vpop.f32.mrf.mxu0
        %v1041 = vadd.f32 0.0, %v1040
        %v1042 = vpop.f32.mrf.mxu0
        %1043 = vmatprep.mubr.f32.mxu0 0.0
        %1044 = vmatmul.mubr.f32.gmra.mxu0 %v665
        %v1045 = vpop.f32.mrf.mxu0
        %v1046 = vadd.f32 0.0, %v1045
        %v1047 = vpop.f32.mrf.mxu0
        %1048 = vmatprep.mubr.f32.mxu0 0.0
        %1049 = vmatmul.mubr.f32.gmra.mxu0 %v666
        %v1050 = vpop.f32.mrf.mxu0
        %v1051 = vadd.f32 0.0, %v1050
        %v1052 = vpop.f32.mrf.mxu0
        %1053 = vmatprep.mubr.f32.mxu0 0.0
        %1054 = vmatmul.mubr.f32.gmra.mxu0 %v667
        %v1055 = vpop.f32.mrf.mxu0
        %v1056 = vadd.f32 0.0, %v1055
        %v1057 = vpop.f32.mrf.mxu0
        %1058 = vmatprep.mubr.f32.mxu0 0.0
        %1059 = vmatmul.mubr.f32.gmra.mxu0 %v668
        %v1060 = vpop.f32.mrf.mxu0
        %v1061 = vadd.f32 0.0, %v1060
        %v1062 = vpop.f32.mrf.mxu0
        %1063 = vmatprep.mubr.f32.mxu0 0.0
        %1064 = vmatmul.mubr.f32.gmra.mxu0 %v669
        %v1065 = vpop.f32.mrf.mxu0
        %v1066 = vadd.f32 0.0, %v1065
        %v1067 = vpop.f32.mrf.mxu0
        %1068 = vmatprep.mubr.f32.mxu0 0.0
        %1069 = vmatmul.mubr.f32.gmra.mxu0 %v670
        %v1070 = vpop.f32.mrf.mxu0
        %v1071 = vadd.f32 0.0, %v1070
        %v1072 = vpop.f32.mrf.mxu0
        %1073 = vmatprep.mubr.f32.mxu0 0.0
        %1074 = vmatmul.mubr.f32.gmra.mxu0 %v671
        %v1075 = vpop.f32.mrf.mxu0
        %v1076 = vadd.f32 0.0, %v1075
        %v1077 = vpop.f32.mrf.mxu0
        %1078 = vmatprep.mubr.f32.mxu0 0.0
        %1079 = vmatmul.mubr.f32.gmra.mxu0 %v672
        %v1080 = vpop.f32.mrf.mxu0
        %v1081 = vadd.f32 0.0, %v1080
        %v1082 = vpop.f32.mrf.mxu0
        %1083 = vmatprep.mubr.f32.mxu0 0.0
        %1084 = vmatmul.mubr.f32.gmra.mxu0 %v673
        %v1085 = vpop.f32.mrf.mxu0
        %v1086 = vadd.f32 0.0, %v1085
        %v1087 = vpop.f32.mrf.mxu0
        %1088 = vdwg.mxu0
        %v1089 = vadd.f32 %v909, %v1041
        %v1090 = vadd.f32 %v914, %v1046
        %v1091 = vadd.f32 %v919, %v1051
        %v1092 = vadd.f32 %v924, %v1056
        %v1093 = vadd.f32 %v929, %v1061
        %v1094 = vadd.f32 %v934, %v1066
        %v1095 = vadd.f32 %v939, %v1071
        %v1096 = vadd.f32 %v944, %v1076
        %v1097 = vadd.f32 %v949, %v1081
        %v1098 = vadd.f32 %v954, %v1086
        %v1099 = vld [vmem:[#allocation7] sm:$0xff]
        %v1100 = vld [vmem:[#allocation7 + $0x8] sm:$0xff]
        %vm1101 = vcmask 130048
        %v1103 = vsel %vm1101, %v1089, 0
        %v1106 = vsel %vm1101, %v1090, 0
        %v1109 = vsel %vm1101, %v1091, 0
        %v1112 = vsel %vm1101, %v1092, 0
        %v1115 = vsel %vm1101, %v1093, 0
        %v1118 = vsel %vm1101, %v1094, 0
        %v1121 = vsel %vm1101, %v1095, 0
        %v1124 = vsel %vm1101, %v1096, 0
        %v1127 = vsel %vm1101, %v1097, 0
        %v1130 = vsel %vm1101, %v1098, 0
        %1132 = vmatprep.subr.mxu0 0.0
        %1133 = vmatpush1.msra.mxu0 0.0
        %1134 = vmatprep.subr.mxu0 0.0
        %1135 = vmatpush1.msra.mxu0 0.0
        %1136 = vmatprep.subr.mxu0 0.0
        %1137 = vmatpush1.msra.mxu0 0.0
        %1138 = vmatprep.subr.mxu0 0.0
        %1139 = vmatpush1.msra.mxu0 0.0
        %1140 = vmatprep.subr.mxu0 0.0
        %1141 = vmatpush1.msra.mxu0 0.0
        %1142 = vmatprep.subr.mxu0 0.0
        %1143 = vmatpush1.msra.mxu0 0.0
        %1144 = vmatprep.subr.mxu0 0.0
        %1145 = vmatpush1.msra.mxu0 0.0
        %1146 = vmatprep.subr.mxu0 0.0
        %1147 = vmatpush1.msra.mxu0 0.0
        %1148 = vmatprep.subr.mxu0 0.0
        %1149 = vmatpush1.msra.mxu0 0.0
        %1150 = vmatprep.subr.mxu0 0.0
        %1151 = vmatpush1.msra.mxu0 0.0
        %1152 = vmatprep.subr.mxu0 0.0
        %1153 = vmatpush1.msra.mxu0 0.0
        %1154 = vmatprep.subr.mxu0 0.0
        %1155 = vmatpush1.msra.mxu0 0.0
        %1156 = vmatprep.subr.mxu0 0.0
        %1157 = vmatpush1.msra.mxu0 0.0
        %1158 = vmatprep.subr.mxu0 0.0
        %1159 = vmatpush1.msra.mxu0 0.0
        %1160 = vmatprep.subr.mxu0 0.0
        %1161 = vmatpush1.msra.mxu0 %v1100
        %1162 = vmatprep.subr.mxu0 0.0
        %1163 = vmatpush1.msra.mxu0 %v1099
        %1164 = vmatprep.subr.mxu0 0.0
        %1165 = vmatpush2.msra.mxu0 0.0
        %1166 = vmatprep.subr.mxu0 0.0
        %1167 = vmatpush2.msra.mxu0 0.0
        %1168 = vmatprep.subr.mxu0 0.0
        %1169 = vmatpush2.msra.mxu0 0.0
        %1170 = vmatprep.subr.mxu0 0.0
        %1171 = vmatpush2.msra.mxu0 0.0
        %1172 = vmatprep.subr.mxu0 0.0
        %1173 = vmatpush2.msra.mxu0 0.0
        %1174 = vmatprep.subr.mxu0 0.0
        %1175 = vmatpush2.msra.mxu0 0.0
        %1176 = vmatprep.subr.mxu0 0.0
        %1177 = vmatpush2.msra.mxu0 0.0
        %1178 = vmatprep.subr.mxu0 0.0
        %1179 = vmatpush2.msra.mxu0 0.0
        %1180 = vmatprep.subr.mxu0 0.0
        %1181 = vmatpush2.msra.mxu0 0.0
        %1182 = vmatprep.subr.mxu0 0.0
        %1183 = vmatpush2.msra.mxu0 0.0
        %1184 = vmatprep.subr.mxu0 0.0
        %1185 = vmatpush2.msra.mxu0 0.0
        %1186 = vmatprep.subr.mxu0 0.0
        %1187 = vmatpush2.msra.mxu0 0.0
        %1188 = vmatprep.subr.mxu0 0.0
        %1189 = vmatpush2.msra.mxu0 0.0
        %1190 = vmatprep.subr.mxu0 0.0
        %1191 = vmatpush2.msra.mxu0 0.0
        %1192 = vmatprep.subr.mxu0 0.0
        %1193 = vmatpush2.msra.mxu0 0.0
        %1194 = vmatprep.subr.mxu0 0.0
        %1195 = vmatpush2.msra.mxu0 0.0
        %1196 = vmatprep.mubr.f32.mxu0 0.0
        %1197 = vmatmul.mubr.f32.gmra.mxu0 %v1103
        %v1198 = vpop.f32.mrf.mxu0
        %v1199 = vadd.f32 0.0, %v1198
        %v1200 = vpop.f32.mrf.mxu0
        %1201 = vmatprep.mubr.f32.mxu0 0.0
        %1202 = vmatmul.mubr.f32.gmra.mxu0 %v1106
        %v1203 = vpop.f32.mrf.mxu0
        %v1204 = vadd.f32 0.0, %v1203
        %v1205 = vpop.f32.mrf.mxu0
        %1206 = vmatprep.mubr.f32.mxu0 0.0
        %1207 = vmatmul.mubr.f32.gmra.mxu0 %v1109
        %v1208 = vpop.f32.mrf.mxu0
        %v1209 = vadd.f32 0.0, %v1208
        %v1210 = vpop.f32.mrf.mxu0
        %1211 = vmatprep.mubr.f32.mxu0 0.0
        %1212 = vmatmul.mubr.f32.gmra.mxu0 %v1112
        %v1213 = vpop.f32.mrf.mxu0
        %v1214 = vadd.f32 0.0, %v1213
        %v1215 = vpop.f32.mrf.mxu0
        %1216 = vmatprep.mubr.f32.mxu0 0.0
        %1217 = vmatmul.mubr.f32.gmra.mxu0 %v1115
        %v1218 = vpop.f32.mrf.mxu0
        %v1219 = vadd.f32 0.0, %v1218
        %v1220 = vpop.f32.mrf.mxu0
        %1221 = vmatprep.mubr.f32.mxu0 0.0
        %1222 = vmatmul.mubr.f32.gmra.mxu0 %v1118
        %v1223 = vpop.f32.mrf.mxu0
        %v1224 = vadd.f32 0.0, %v1223
        %v1225 = vpop.f32.mrf.mxu0
        %1226 = vmatprep.mubr.f32.mxu0 0.0
        %1227 = vmatmul.mubr.f32.gmra.mxu0 %v1121
        %v1228 = vpop.f32.mrf.mxu0
        %v1229 = vadd.f32 0.0, %v1228
        %v1230 = vpop.f32.mrf.mxu0
        %1231 = vmatprep.mubr.f32.mxu0 0.0
        %1232 = vmatmul.mubr.f32.gmra.mxu0 %v1124
        %v1233 = vpop.f32.mrf.mxu0
        %v1234 = vadd.f32 0.0, %v1233
        %v1235 = vpop.f32.mrf.mxu0
        %1236 = vmatprep.mubr.f32.mxu0 0.0
        %1237 = vmatmul.mubr.f32.gmra.mxu0 %v1127
        %v1238 = vpop.f32.mrf.mxu0
        %v1239 = vadd.f32 0.0, %v1238
        %v1240 = vpop.f32.mrf.mxu0
        %1241 = vmatprep.mubr.f32.mxu0 0.0
        %1242 = vmatmul.mubr.f32.gmra.mxu0 %v1130
        %v1243 = vpop.f32.mrf.mxu0
        %v1244 = vadd.f32 0.0, %v1243
        %v1245 = vpop.f32.mrf.mxu0
        %1246 = vdwg.mxu0
        %v1247 = vsub.f32 %v674, %v1199
        %v1248 = vsub.f32 %v675, %v1204
        %v1249 = vsub.f32 %v676, %v1209
        %v1250 = vsub.f32 %v677, %v1214
        %v1251 = vsub.f32 %v678, %v1219
        %v1252 = vsub.f32 %v679, %v1224
        %v1253 = vsub.f32 %v680, %v1229
        %v1254 = vsub.f32 %v681, %v1234
        %v1255 = vsub.f32 %v682, %v1239
        %v1256 = vsub.f32 %v683, %v1244
        %s1257 = scalar_lea.vmem [#allocation7], 16
        %v1258 = vld [vmem:[%s1257] sm:$0xff]
        %v1259 = vld [vmem:[%s1257 + $0x8] sm:$0xff]
        %1260 = vmatprep.subr.mxu0 0.0
        %1261 = vmatpush1.msra.mxu0 0.0
        %1262 = vmatprep.subr.mxu0 0.0
        %1263 = vmatpush1.msra.mxu0 0.0
        %1264 = vmatprep.subr.mxu0 0.0
        %1265 = vmatpush1.msra.mxu0 0.0
        %1266 = vmatprep.subr.mxu0 0.0
        %1267 = vmatpush1.msra.mxu0 0.0
        %1268 = vmatprep.subr.mxu0 0.0
        %1269 = vmatpush1.msra.mxu0 0.0
        %1270 = vmatprep.subr.mxu0 0.0
        %1271 = vmatpush1.msra.mxu0 0.0
        %1272 = vmatprep.subr.mxu0 0.0
        %1273 = vmatpush1.msra.mxu0 0.0
        %1274 = vmatprep.subr.mxu0 0.0
        %1275 = vmatpush1.msra.mxu0 0.0
        %1276 = vmatprep.subr.mxu0 0.0
        %1277 = vmatpush1.msra.mxu0 0.0
        %1278 = vmatprep.subr.mxu0 0.0
        %1279 = vmatpush1.msra.mxu0 0.0
        %1280 = vmatprep.subr.mxu0 0.0
        %1281 = vmatpush1.msra.mxu0 0.0
        %1282 = vmatprep.subr.mxu0 0.0
        %1283 = vmatpush1.msra.mxu0 0.0
        %1284 = vmatprep.subr.mxu0 0.0
        %1285 = vmatpush1.msra.mxu0 0.0
        %1286 = vmatprep.subr.mxu0 0.0
        %1287 = vmatpush1.msra.mxu0 0.0
        %1288 = vmatprep.subr.mxu0 0.0
        %1289 = vmatpush1.msra.mxu0 %v1259
        %1290 = vmatprep.subr.mxu0 0.0
        %1291 = vmatpush1.msra.mxu0 %v1258
        %1292 = vmatprep.subr.mxu0 0.0
        %1293 = vmatpush2.msra.mxu0 0.0
        %1294 = vmatprep.subr.mxu0 0.0
        %1295 = vmatpush2.msra.mxu0 0.0
        %1296 = vmatprep.subr.mxu0 0.0
        %1297 = vmatpush2.msra.mxu0 0.0
        %1298 = vmatprep.subr.mxu0 0.0
        %1299 = vmatpush2.msra.mxu0 0.0
        %1300 = vmatprep.subr.mxu0 0.0
        %1301 = vmatpush2.msra.mxu0 0.0
        %1302 = vmatprep.subr.mxu0 0.0
        %1303 = vmatpush2.msra.mxu0 0.0
        %1304 = vmatprep.subr.mxu0 0.0
        %1305 = vmatpush2.msra.mxu0 0.0
        %1306 = vmatprep.subr.mxu0 0.0
        %1307 = vmatpush2.msra.mxu0 0.0
        %1308 = vmatprep.subr.mxu0 0.0
        %1309 = vmatpush2.msra.mxu0 0.0
        %1310 = vmatprep.subr.mxu0 0.0
        %1311 = vmatpush2.msra.mxu0 0.0
        %1312 = vmatprep.subr.mxu0 0.0
        %1313 = vmatpush2.msra.mxu0 0.0
        %1314 = vmatprep.subr.mxu0 0.0
        %1315 = vmatpush2.msra.mxu0 0.0
        %1316 = vmatprep.subr.mxu0 0.0
        %1317 = vmatpush2.msra.mxu0 0.0
        %1318 = vmatprep.subr.mxu0 0.0
        %1319 = vmatpush2.msra.mxu0 0.0
        %1320 = vmatprep.subr.mxu0 0.0
        %1321 = vmatpush2.msra.mxu0 0.0
        %1322 = vmatprep.subr.mxu0 0.0
        %1323 = vmatpush2.msra.mxu0 0.0
        %1324 = vmatprep.mubr.f32.mxu0 0.0
        %1325 = vmatmul.mubr.f32.gmra.mxu0 %v1103
        %v1326 = vpop.f32.mrf.mxu0
        %v1327 = vadd.f32 0.0, %v1326
        %v1328 = vpop.f32.mrf.mxu0
        %1329 = vmatprep.mubr.f32.mxu0 0.0
        %1330 = vmatmul.mubr.f32.gmra.mxu0 %v1106
        %v1331 = vpop.f32.mrf.mxu0
        %v1332 = vadd.f32 0.0, %v1331
        %v1333 = vpop.f32.mrf.mxu0
        %1334 = vmatprep.mubr.f32.mxu0 0.0
        %1335 = vmatmul.mubr.f32.gmra.mxu0 %v1109
        %v1336 = vpop.f32.mrf.mxu0
        %v1337 = vadd.f32 0.0, %v1336
        %v1338 = vpop.f32.mrf.mxu0
        %1339 = vmatprep.mubr.f32.mxu0 0.0
        %1340 = vmatmul.mubr.f32.gmra.mxu0 %v1112
        %v1341 = vpop.f32.mrf.mxu0
        %v1342 = vadd.f32 0.0, %v1341
        %v1343 = vpop.f32.mrf.mxu0
        %1344 = vmatprep.mubr.f32.mxu0 0.0
        %1345 = vmatmul.mubr.f32.gmra.mxu0 %v1115
        %v1346 = vpop.f32.mrf.mxu0
        %v1347 = vadd.f32 0.0, %v1346
        %v1348 = vpop.f32.mrf.mxu0
        %1349 = vmatprep.mubr.f32.mxu0 0.0
        %1350 = vmatmul.mubr.f32.gmra.mxu0 %v1118
        %v1351 = vpop.f32.mrf.mxu0
        %v1352 = vadd.f32 0.0, %v1351
        %v1353 = vpop.f32.mrf.mxu0
        %1354 = vmatprep.mubr.f32.mxu0 0.0
        %1355 = vmatmul.mubr.f32.gmra.mxu0 %v1121
        %v1356 = vpop.f32.mrf.mxu0
        %v1357 = vadd.f32 0.0, %v1356
        %v1358 = vpop.f32.mrf.mxu0
        %1359 = vmatprep.mubr.f32.mxu0 0.0
        %1360 = vmatmul.mubr.f32.gmra.mxu0 %v1124
        %v1361 = vpop.f32.mrf.mxu0
        %v1362 = vadd.f32 0.0, %v1361
        %v1363 = vpop.f32.mrf.mxu0
        %1364 = vmatprep.mubr.f32.mxu0 0.0
        %1365 = vmatmul.mubr.f32.gmra.mxu0 %v1127
        %v1366 = vpop.f32.mrf.mxu0
        %v1367 = vadd.f32 0.0, %v1366
        %v1368 = vpop.f32.mrf.mxu0
        %1369 = vmatprep.mubr.f32.mxu0 0.0
        %1370 = vmatmul.mubr.f32.gmra.mxu0 %v1130
        %v1371 = vpop.f32.mrf.mxu0
        %v1372 = vadd.f32 0.0, %v1371
        %v1373 = vpop.f32.mrf.mxu0
        %1374 = vdwg.mxu0
        %v1375 = vsub.f32 %v684, %v1327
        %v1376 = vsub.f32 %v685, %v1332
        %v1377 = vsub.f32 %v686, %v1337
        %v1378 = vsub.f32 %v687, %v1342
        %v1379 = vsub.f32 %v688, %v1347
        %v1380 = vsub.f32 %v689, %v1352
        %v1381 = vsub.f32 %v690, %v1357
        %v1382 = vsub.f32 %v691, %v1362
        %v1383 = vsub.f32 %v692, %v1367
        %v1384 = vsub.f32 %v693, %v1372
        %s1385 = scalar_lea.vmem [#allocation7], 32
        %v1386 = vld [vmem:[%s1385] sm:$0xff]
        %v1387 = vld [vmem:[%s1385 + $0x8] sm:$0xff]
        %1388 = vmatprep.subr.mxu0 0.0
        %1389 = vmatpush1.msra.mxu0 0.0
        %1390 = vmatprep.subr.mxu0 0.0
        %1391 = vmatpush1.msra.mxu0 0.0
        %1392 = vmatprep.subr.mxu0 0.0
        %1393 = vmatpush1.msra.mxu0 0.0
        %1394 = vmatprep.subr.mxu0 0.0
        %1395 = vmatpush1.msra.mxu0 0.0
        %1396 = vmatprep.subr.mxu0 0.0
        %1397 = vmatpush1.msra.mxu0 0.0
        %1398 = vmatprep.subr.mxu0 0.0
        %1399 = vmatpush1.msra.mxu0 0.0
        %1400 = vmatprep.subr.mxu0 0.0
        %1401 = vmatpush1.msra.mxu0 0.0
        %1402 = vmatprep.subr.mxu0 0.0
        %1403 = vmatpush1.msra.mxu0 0.0
        %1404 = vmatprep.subr.mxu0 0.0
        %1405 = vmatpush1.msra.mxu0 0.0
        %1406 = vmatprep.subr.mxu0 0.0
        %1407 = vmatpush1.msra.mxu0 0.0
        %1408 = vmatprep.subr.mxu0 0.0
        %1409 = vmatpush1.msra.mxu0 0.0
        %1410 = vmatprep.subr.mxu0 0.0
        %1411 = vmatpush1.msra.mxu0 0.0
        %1412 = vmatprep.subr.mxu0 0.0
        %1413 = vmatpush1.msra.mxu0 0.0
        %1414 = vmatprep.subr.mxu0 0.0
        %1415 = vmatpush1.msra.mxu0 0.0
        %1416 = vmatprep.subr.mxu0 0.0
        %1417 = vmatpush1.msra.mxu0 %v1387
        %1418 = vmatprep.subr.mxu0 0.0
        %1419 = vmatpush1.msra.mxu0 %v1386
        %1420 = vmatprep.subr.mxu0 0.0
        %1421 = vmatpush2.msra.mxu0 0.0
        %1422 = vmatprep.subr.mxu0 0.0
        %1423 = vmatpush2.msra.mxu0 0.0
        %1424 = vmatprep.subr.mxu0 0.0
        %1425 = vmatpush2.msra.mxu0 0.0
        %1426 = vmatprep.subr.mxu0 0.0
        %1427 = vmatpush2.msra.mxu0 0.0
        %1428 = vmatprep.subr.mxu0 0.0
        %1429 = vmatpush2.msra.mxu0 0.0
        %1430 = vmatprep.subr.mxu0 0.0
        %1431 = vmatpush2.msra.mxu0 0.0
        %1432 = vmatprep.subr.mxu0 0.0
        %1433 = vmatpush2.msra.mxu0 0.0
        %1434 = vmatprep.subr.mxu0 0.0
        %1435 = vmatpush2.msra.mxu0 0.0
        %1436 = vmatprep.subr.mxu0 0.0
        %1437 = vmatpush2.msra.mxu0 0.0
        %1438 = vmatprep.subr.mxu0 0.0
        %1439 = vmatpush2.msra.mxu0 0.0
        %1440 = vmatprep.subr.mxu0 0.0
        %1441 = vmatpush2.msra.mxu0 0.0
        %1442 = vmatprep.subr.mxu0 0.0
        %1443 = vmatpush2.msra.mxu0 0.0
        %1444 = vmatprep.subr.mxu0 0.0
        %1445 = vmatpush2.msra.mxu0 0.0
        %1446 = vmatprep.subr.mxu0 0.0
        %1447 = vmatpush2.msra.mxu0 0.0
        %1448 = vmatprep.subr.mxu0 0.0
        %1449 = vmatpush2.msra.mxu0 0.0
        %1450 = vmatprep.subr.mxu0 0.0
        %1451 = vmatpush2.msra.mxu0 0.0
        %1452 = vmatprep.mubr.f32.mxu0 0.0
        %1453 = vmatmul.mubr.f32.gmra.mxu0 %v1103
        %v1454 = vpop.f32.mrf.mxu0
        %v1455 = vadd.f32 0.0, %v1454
        %v1456 = vpop.f32.mrf.mxu0
        %1457 = vmatprep.mubr.f32.mxu0 0.0
        %1458 = vmatmul.mubr.f32.gmra.mxu0 %v1106
        %v1459 = vpop.f32.mrf.mxu0
        %v1460 = vadd.f32 0.0, %v1459
        %v1461 = vpop.f32.mrf.mxu0
        %1462 = vmatprep.mubr.f32.mxu0 0.0
        %1463 = vmatmul.mubr.f32.gmra.mxu0 %v1109
        %v1464 = vpop.f32.mrf.mxu0
        %v1465 = vadd.f32 0.0, %v1464
        %v1466 = vpop.f32.mrf.mxu0
        %1467 = vmatprep.mubr.f32.mxu0 0.0
        %1468 = vmatmul.mubr.f32.gmra.mxu0 %v1112
        %v1469 = vpop.f32.mrf.mxu0
        %v1470 = vadd.f32 0.0, %v1469
        %v1471 = vpop.f32.mrf.mxu0
        %1472 = vmatprep.mubr.f32.mxu0 0.0
        %1473 = vmatmul.mubr.f32.gmra.mxu0 %v1115
        %v1474 = vpop.f32.mrf.mxu0
        %v1475 = vadd.f32 0.0, %v1474
        %v1476 = vpop.f32.mrf.mxu0
        %1477 = vmatprep.mubr.f32.mxu0 0.0
        %1478 = vmatmul.mubr.f32.gmra.mxu0 %v1118
        %v1479 = vpop.f32.mrf.mxu0
        %v1480 = vadd.f32 0.0, %v1479
        %v1481 = vpop.f32.mrf.mxu0
        %1482 = vmatprep.mubr.f32.mxu0 0.0
        %1483 = vmatmul.mubr.f32.gmra.mxu0 %v1121
        %v1484 = vpop.f32.mrf.mxu0
        %v1485 = vadd.f32 0.0, %v1484
        %v1486 = vpop.f32.mrf.mxu0
        %1487 = vmatprep.mubr.f32.mxu0 0.0
        %1488 = vmatmul.mubr.f32.gmra.mxu0 %v1124
        %v1489 = vpop.f32.mrf.mxu0
        %v1490 = vadd.f32 0.0, %v1489
        %v1491 = vpop.f32.mrf.mxu0
        %1492 = vmatprep.mubr.f32.mxu0 0.0
        %1493 = vmatmul.mubr.f32.gmra.mxu0 %v1127
        %v1494 = vpop.f32.mrf.mxu0
        %v1495 = vadd.f32 0.0, %v1494
        %v1496 = vpop.f32.mrf.mxu0
        %1497 = vmatprep.mubr.f32.mxu0 0.0
        %1498 = vmatmul.mubr.f32.gmra.mxu0 %v1130
        %v1499 = vpop.f32.mrf.mxu0
        %v1500 = vadd.f32 0.0, %v1499
        %v1501 = vpop.f32.mrf.mxu0
        %1502 = vdwg.mxu0
        %v1503 = vsub.f32 %v664, %v1455
        %v1504 = vsub.f32 %v665, %v1460
        %v1505 = vsub.f32 %v666, %v1465
        %v1506 = vsub.f32 %v667, %v1470
        %v1507 = vsub.f32 %v668, %v1475
        %v1508 = vsub.f32 %v669, %v1480
        %v1509 = vsub.f32 %v670, %v1485
        %v1510 = vsub.f32 %v671, %v1490
        %v1511 = vsub.f32 %v672, %v1495
        %v1512 = vsub.f32 %v673, %v1500
        %v1513 = vmul.f32 %v1247, %v1247
        %v1514 = vmul.f32 %v1248, %v1248
        %v1515 = vmul.f32 %v1249, %v1249
        %v1516 = vmul.f32 %v1250, %v1250
        %v1517 = vmul.f32 %v1251, %v1251
        %v1518 = vmul.f32 %v1252, %v1252
        %v1519 = vmul.f32 %v1253, %v1253
        %v1520 = vmul.f32 %v1254, %v1254
        %v1521 = vmul.f32 %v1255, %v1255
        %v1522 = vmul.f32 %v1256, %v1256
        %v1523 = vmul.f32 %v1375, %v1375
        %v1524 = vmul.f32 %v1376, %v1376
        %v1525 = vmul.f32 %v1377, %v1377
        %v1526 = vmul.f32 %v1378, %v1378
        %v1527 = vmul.f32 %v1379, %v1379
        %v1528 = vmul.f32 %v1380, %v1380
        %v1529 = vmul.f32 %v1381, %v1381
        %v1530 = vmul.f32 %v1382, %v1382
        %v1531 = vmul.f32 %v1383, %v1383
        %v1532 = vmul.f32 %v1384, %v1384
        %1533 = vmatprep.subr.mxu0 0.0
        %1534 = vmatpush1.msra.mxu0 %v726
        %1535 = vmatprep.subr.mxu0 0.0
        %1536 = vmatpush1.msra.mxu0 %v725
        %1537 = vmatprep.subr.mxu0 0.0
        %1538 = vmatpush1.msra.mxu0 %v724
        %1539 = vmatprep.subr.mxu0 0.0
        %1540 = vmatpush1.msra.mxu0 %v723
        %1541 = vmatprep.subr.mxu0 0.0
        %1542 = vmatpush1.msra.mxu0 %v722
        %1543 = vmatprep.subr.mxu0 0.0
        %1544 = vmatpush1.msra.mxu0 %v721
        %1545 = vmatprep.subr.mxu0 0.0
        %1546 = vmatpush1.msra.mxu0 %v720
        %1547 = vmatprep.subr.mxu0 0.0
        %1548 = vmatpush1.msra.mxu0 %v719
        %1549 = vmatprep.subr.mxu0 0.0
        %1550 = vmatpush1.msra.mxu0 %v718
        %1551 = vmatprep.subr.mxu0 0.0
        %1552 = vmatpush1.msra.mxu0 %v717
        %1553 = vmatprep.subr.mxu0 0.0
        %1554 = vmatpush1.msra.mxu0 %v716
        %1555 = vmatprep.subr.mxu0 0.0
        %1556 = vmatpush1.msra.mxu0 %v715
        %1557 = vmatprep.subr.mxu0 0.0
        %1558 = vmatpush1.msra.mxu0 %v714
        %1559 = vmatprep.subr.mxu0 0.0
        %1560 = vmatpush1.msra.mxu0 %v713
        %1561 = vmatprep.subr.mxu0 0.0
        %1562 = vmatpush1.msra.mxu0 %v712
        %1563 = vmatprep.subr.mxu0 0.0
        %1564 = vmatpush1.msra.mxu0 %v711
        %1565 = vmatprep.subr.mxu0 0.0
        %1566 = vmatpush2.msra.mxu0 0.0
        %1567 = vmatprep.subr.mxu0 0.0
        %1568 = vmatpush2.msra.mxu0 0.0
        %1569 = vmatprep.subr.mxu0 0.0
        %1570 = vmatpush2.msra.mxu0 0.0
        %1571 = vmatprep.subr.mxu0 0.0
        %1572 = vmatpush2.msra.mxu0 0.0
        %1573 = vmatprep.subr.mxu0 0.0
        %1574 = vmatpush2.msra.mxu0 0.0
        %1575 = vmatprep.subr.mxu0 0.0
        %1576 = vmatpush2.msra.mxu0 0.0
        %1577 = vmatprep.subr.mxu0 0.0
        %1578 = vmatpush2.msra.mxu0 0.0
        %1579 = vmatprep.subr.mxu0 0.0
        %1580 = vmatpush2.msra.mxu0 0.0
        %1581 = vmatprep.subr.mxu0 0.0
        %1582 = vmatpush2.msra.mxu0 0.0
        %1583 = vmatprep.subr.mxu0 0.0
        %1584 = vmatpush2.msra.mxu0 0.0
        %1585 = vmatprep.subr.mxu0 0.0
        %1586 = vmatpush2.msra.mxu0 0.0
        %1587 = vmatprep.subr.mxu0 0.0
        %1588 = vmatpush2.msra.mxu0 0.0
        %1589 = vmatprep.subr.mxu0 0.0
        %1590 = vmatpush2.msra.mxu0 0.0
        %1591 = vmatprep.subr.mxu0 0.0
        %1592 = vmatpush2.msra.mxu0 0.0
        %1593 = vmatprep.subr.mxu0 0.0
        %1594 = vmatpush2.msra.mxu0 0.0
        %1595 = vmatprep.subr.mxu0 0.0
        %1596 = vmatpush2.msra.mxu0 0.0
        %1597 = vmatprep.mubr.f32.mxu0 0.0
        %1598 = vmatmul.mubr.f32.gmra.mxu0 %v1523
        %v1599 = vpop.f32.mrf.mxu0
        %v1600 = vadd.f32 0.0, %v1599
        %v1601 = vpop.f32.mrf.mxu0
        %1602 = vmatprep.mubr.f32.mxu0 0.0
        %1603 = vmatmul.mubr.f32.gmra.mxu0 %v1524
        %v1604 = vpop.f32.mrf.mxu0
        %v1605 = vadd.f32 0.0, %v1604
        %v1606 = vpop.f32.mrf.mxu0
        %1607 = vmatprep.mubr.f32.mxu0 0.0
        %1608 = vmatmul.mubr.f32.gmra.mxu0 %v1525
        %v1609 = vpop.f32.mrf.mxu0
        %v1610 = vadd.f32 0.0, %v1609
        %v1611 = vpop.f32.mrf.mxu0
        %1612 = vmatprep.mubr.f32.mxu0 0.0
        %1613 = vmatmul.mubr.f32.gmra.mxu0 %v1526
        %v1614 = vpop.f32.mrf.mxu0
        %v1615 = vadd.f32 0.0, %v1614
        %v1616 = vpop.f32.mrf.mxu0
        %1617 = vmatprep.mubr.f32.mxu0 0.0
        %1618 = vmatmul.mubr.f32.gmra.mxu0 %v1527
        %v1619 = vpop.f32.mrf.mxu0
        %v1620 = vadd.f32 0.0, %v1619
        %v1621 = vpop.f32.mrf.mxu0
        %1622 = vmatprep.mubr.f32.mxu0 0.0
        %1623 = vmatmul.mubr.f32.gmra.mxu0 %v1528
        %v1624 = vpop.f32.mrf.mxu0
        %v1625 = vadd.f32 0.0, %v1624
        %v1626 = vpop.f32.mrf.mxu0
        %1627 = vmatprep.mubr.f32.mxu0 0.0
        %1628 = vmatmul.mubr.f32.gmra.mxu0 %v1529
        %v1629 = vpop.f32.mrf.mxu0
        %v1630 = vadd.f32 0.0, %v1629
        %v1631 = vpop.f32.mrf.mxu0
        %1632 = vmatprep.mubr.f32.mxu0 0.0
        %1633 = vmatmul.mubr.f32.gmra.mxu0 %v1530
        %v1634 = vpop.f32.mrf.mxu0
        %v1635 = vadd.f32 0.0, %v1634
        %v1636 = vpop.f32.mrf.mxu0
        %1637 = vmatprep.mubr.f32.mxu0 0.0
        %1638 = vmatmul.mubr.f32.gmra.mxu0 %v1531
        %v1639 = vpop.f32.mrf.mxu0
        %v1640 = vadd.f32 0.0, %v1639
        %v1641 = vpop.f32.mrf.mxu0
        %1642 = vmatprep.mubr.f32.mxu0 0.0
        %1643 = vmatmul.mubr.f32.gmra.mxu0 %v1532
        %v1644 = vpop.f32.mrf.mxu0
        %v1645 = vadd.f32 0.0, %v1644
        %v1646 = vpop.f32.mrf.mxu0
        %1647 = vdwg.mxu0
        %1648 = vmatprep.subr.mxu0 0.0
        %1649 = vmatpush1.msra.mxu0 %v709
        %1650 = vmatprep.subr.mxu0 0.0
        %1651 = vmatpush1.msra.mxu0 %v708
        %1652 = vmatprep.subr.mxu0 0.0
        %1653 = vmatpush1.msra.mxu0 %v707
        %1654 = vmatprep.subr.mxu0 0.0
        %1655 = vmatpush1.msra.mxu0 %v706
        %1656 = vmatprep.subr.mxu0 0.0
        %1657 = vmatpush1.msra.mxu0 %v705
        %1658 = vmatprep.subr.mxu0 0.0
        %1659 = vmatpush1.msra.mxu0 %v704
        %1660 = vmatprep.subr.mxu0 0.0
        %1661 = vmatpush1.msra.mxu0 %v703
        %1662 = vmatprep.subr.mxu0 0.0
        %1663 = vmatpush1.msra.mxu0 %v702
        %1664 = vmatprep.subr.mxu0 0.0
        %1665 = vmatpush1.msra.mxu0 %v701
        %1666 = vmatprep.subr.mxu0 0.0
        %1667 = vmatpush1.msra.mxu0 %v700
        %1668 = vmatprep.subr.mxu0 0.0
        %1669 = vmatpush1.msra.mxu0 %v699
        %1670 = vmatprep.subr.mxu0 0.0
        %1671 = vmatpush1.msra.mxu0 %v698
        %1672 = vmatprep.subr.mxu0 0.0
        %1673 = vmatpush1.msra.mxu0 %v697
        %1674 = vmatprep.subr.mxu0 0.0
        %1675 = vmatpush1.msra.mxu0 %v696
        %1676 = vmatprep.subr.mxu0 0.0
        %1677 = vmatpush1.msra.mxu0 %v695
        %1678 = vmatprep.subr.mxu0 0.0
        %1679 = vmatpush1.msra.mxu0 %v694
        %1680 = vmatprep.subr.mxu0 0.0
        %1681 = vmatpush2.msra.mxu0 0.0
        %1682 = vmatprep.subr.mxu0 0.0
        %1683 = vmatpush2.msra.mxu0 0.0
        %1684 = vmatprep.subr.mxu0 0.0
        %1685 = vmatpush2.msra.mxu0 0.0
        %1686 = vmatprep.subr.mxu0 0.0
        %1687 = vmatpush2.msra.mxu0 0.0
        %1688 = vmatprep.subr.mxu0 0.0
        %1689 = vmatpush2.msra.mxu0 0.0
        %1690 = vmatprep.subr.mxu0 0.0
        %1691 = vmatpush2.msra.mxu0 0.0
        %1692 = vmatprep.subr.mxu0 0.0
        %1693 = vmatpush2.msra.mxu0 0.0
        %1694 = vmatprep.subr.mxu0 0.0
        %1695 = vmatpush2.msra.mxu0 0.0
        %1696 = vmatprep.subr.mxu0 0.0
        %1697 = vmatpush2.msra.mxu0 0.0
        %1698 = vmatprep.subr.mxu0 0.0
        %1699 = vmatpush2.msra.mxu0 0.0
        %1700 = vmatprep.subr.mxu0 0.0
        %1701 = vmatpush2.msra.mxu0 0.0
        %1702 = vmatprep.subr.mxu0 0.0
        %1703 = vmatpush2.msra.mxu0 0.0
        %1704 = vmatprep.subr.mxu0 0.0
        %1705 = vmatpush2.msra.mxu0 0.0
        %1706 = vmatprep.subr.mxu0 0.0
        %1707 = vmatpush2.msra.mxu0 0.0
        %1708 = vmatprep.subr.mxu0 0.0
        %1709 = vmatpush2.msra.mxu0 0.0
        %1710 = vmatprep.subr.mxu0 0.0
        %1711 = vmatpush2.msra.mxu0 0.0
        %1712 = vmatprep.mubr.f32.mxu0 0.0
        %1713 = vmatmul.mubr.f32.gmra.mxu0 %v1513
        %v1714 = vpop.f32.mrf.mxu0
        %v1715 = vadd.f32 %v1600, %v1714
        %v1716 = vpop.f32.mrf.mxu0
        %1717 = vmatprep.mubr.f32.mxu0 0.0
        %1718 = vmatmul.mubr.f32.gmra.mxu0 %v1514
        %v1719 = vpop.f32.mrf.mxu0
        %v1720 = vadd.f32 %v1605, %v1719
        %v1721 = vpop.f32.mrf.mxu0
        %1722 = vmatprep.mubr.f32.mxu0 0.0
        %1723 = vmatmul.mubr.f32.gmra.mxu0 %v1515
        %v1724 = vpop.f32.mrf.mxu0
        %v1725 = vadd.f32 %v1610, %v1724
        %v1726 = vpop.f32.mrf.mxu0
        %1727 = vmatprep.mubr.f32.mxu0 0.0
        %1728 = vmatmul.mubr.f32.gmra.mxu0 %v1516
        %v1729 = vpop.f32.mrf.mxu0
        %v1730 = vadd.f32 %v1615, %v1729
        %v1731 = vpop.f32.mrf.mxu0
        %1732 = vmatprep.mubr.f32.mxu0 0.0
        %1733 = vmatmul.mubr.f32.gmra.mxu0 %v1517
        %v1734 = vpop.f32.mrf.mxu0
        %v1735 = vadd.f32 %v1620, %v1734
        %v1736 = vpop.f32.mrf.mxu0
        %1737 = vmatprep.mubr.f32.mxu0 0.0
        %1738 = vmatmul.mubr.f32.gmra.mxu0 %v1518
        %v1739 = vpop.f32.mrf.mxu0
        %v1740 = vadd.f32 %v1625, %v1739
        %v1741 = vpop.f32.mrf.mxu0
        %1742 = vmatprep.mubr.f32.mxu0 0.0
        %1743 = vmatmul.mubr.f32.gmra.mxu0 %v1519
        %v1744 = vpop.f32.mrf.mxu0
        %v1745 = vadd.f32 %v1630, %v1744
        %v1746 = vpop.f32.mrf.mxu0
        %1747 = vmatprep.mubr.f32.mxu0 0.0
        %1748 = vmatmul.mubr.f32.gmra.mxu0 %v1520
        %v1749 = vpop.f32.mrf.mxu0
        %v1750 = vadd.f32 %v1635, %v1749
        %v1751 = vpop.f32.mrf.mxu0
        %1752 = vmatprep.mubr.f32.mxu0 0.0
        %1753 = vmatmul.mubr.f32.gmra.mxu0 %v1521
        %v1754 = vpop.f32.mrf.mxu0
        %v1755 = vadd.f32 %v1640, %v1754
        %v1756 = vpop.f32.mrf.mxu0
        %1757 = vmatprep.mubr.f32.mxu0 0.0
        %1758 = vmatmul.mubr.f32.gmra.mxu0 %v1522
        %v1759 = vpop.f32.mrf.mxu0
        %v1760 = vadd.f32 %v1645, %v1759
        %v1761 = vpop.f32.mrf.mxu0
        %1762 = vdwg.mxu0
        %v1763 = vmul.f32 %v1503, %v1503
        %v1764 = vmul.f32 %v1504, %v1504
        %v1765 = vmul.f32 %v1505, %v1505
        %v1766 = vmul.f32 %v1506, %v1506
        %v1767 = vmul.f32 %v1507, %v1507
        %v1768 = vmul.f32 %v1508, %v1508
        %v1769 = vmul.f32 %v1509, %v1509
        %v1770 = vmul.f32 %v1510, %v1510
        %v1771 = vmul.f32 %v1511, %v1511
        %v1772 = vmul.f32 %v1512, %v1512
        %1773 = vmatprep.subr.mxu0 0.0
        %1774 = vmatpush1.msra.mxu0 %v973
        %1775 = vmatprep.subr.mxu0 0.0
        %1776 = vmatpush1.msra.mxu0 %v972
        %1777 = vmatprep.subr.mxu0 0.0
        %1778 = vmatpush1.msra.mxu0 %v971
        %1779 = vmatprep.subr.mxu0 0.0
        %1780 = vmatpush1.msra.mxu0 %v970
        %1781 = vmatprep.subr.mxu0 0.0
        %1782 = vmatpush1.msra.mxu0 %v969
        %1783 = vmatprep.subr.mxu0 0.0
        %1784 = vmatpush1.msra.mxu0 %v968
        %1785 = vmatprep.subr.mxu0 0.0
        %1786 = vmatpush1.msra.mxu0 %v967
        %1787 = vmatprep.subr.mxu0 0.0
        %1788 = vmatpush1.msra.mxu0 %v966
        %1789 = vmatprep.subr.mxu0 0.0
        %1790 = vmatpush1.msra.mxu0 %v965
        %1791 = vmatprep.subr.mxu0 0.0
        %1792 = vmatpush1.msra.mxu0 %v964
        %1793 = vmatprep.subr.mxu0 0.0
        %1794 = vmatpush1.msra.mxu0 %v963
        %1795 = vmatprep.subr.mxu0 0.0
        %1796 = vmatpush1.msra.mxu0 %v962
        %1797 = vmatprep.subr.mxu0 0.0
        %1798 = vmatpush1.msra.mxu0 %v961
        %1799 = vmatprep.subr.mxu0 0.0
        %1800 = vmatpush1.msra.mxu0 %v960
        %1801 = vmatprep.subr.mxu0 0.0
        %1802 = vmatpush1.msra.mxu0 %v959
        %1803 = vmatprep.subr.mxu0 0.0
        %1804 = vmatpush1.msra.mxu0 %v958
        %1805 = vmatprep.subr.mxu0 0.0
        %1806 = vmatpush2.msra.mxu0 0.0
        %1807 = vmatprep.subr.mxu0 0.0
        %1808 = vmatpush2.msra.mxu0 0.0
        %1809 = vmatprep.subr.mxu0 0.0
        %1810 = vmatpush2.msra.mxu0 0.0
        %1811 = vmatprep.subr.mxu0 0.0
        %1812 = vmatpush2.msra.mxu0 0.0
        %1813 = vmatprep.subr.mxu0 0.0
        %1814 = vmatpush2.msra.mxu0 0.0
        %1815 = vmatprep.subr.mxu0 0.0
        %1816 = vmatpush2.msra.mxu0 0.0
        %1817 = vmatprep.subr.mxu0 0.0
        %1818 = vmatpush2.msra.mxu0 0.0
        %1819 = vmatprep.subr.mxu0 0.0
        %1820 = vmatpush2.msra.mxu0 0.0
        %1821 = vmatprep.subr.mxu0 0.0
        %1822 = vmatpush2.msra.mxu0 0.0
        %1823 = vmatprep.subr.mxu0 0.0
        %1824 = vmatpush2.msra.mxu0 0.0
        %1825 = vmatprep.subr.mxu0 0.0
        %1826 = vmatpush2.msra.mxu0 0.0
        %1827 = vmatprep.subr.mxu0 0.0
        %1828 = vmatpush2.msra.mxu0 0.0
        %1829 = vmatprep.subr.mxu0 0.0
        %1830 = vmatpush2.msra.mxu0 0.0
        %1831 = vmatprep.subr.mxu0 0.0
        %1832 = vmatpush2.msra.mxu0 0.0
        %1833 = vmatprep.subr.mxu0 0.0
        %1834 = vmatpush2.msra.mxu0 0.0
        %1835 = vmatprep.subr.mxu0 0.0
        %1836 = vmatpush2.msra.mxu0 0.0
        %1837 = vmatprep.mubr.f32.mxu0 0.0
        %1838 = vmatmul.mubr.f32.gmra.mxu0 %v1763
        %v1839 = vpop.f32.mrf.mxu0
        %v1840 = vadd.f32 0.0, %v1839
        %v1841 = vpop.f32.mrf.mxu0
        %1842 = vmatprep.mubr.f32.mxu0 0.0
        %1843 = vmatmul.mubr.f32.gmra.mxu0 %v1764
        %v1844 = vpop.f32.mrf.mxu0
        %v1845 = vadd.f32 0.0, %v1844
        %v1846 = vpop.f32.mrf.mxu0
        %1847 = vmatprep.mubr.f32.mxu0 0.0
        %1848 = vmatmul.mubr.f32.gmra.mxu0 %v1765
        %v1849 = vpop.f32.mrf.mxu0
        %v1850 = vadd.f32 0.0, %v1849
        %v1851 = vpop.f32.mrf.mxu0
        %1852 = vmatprep.mubr.f32.mxu0 0.0
        %1853 = vmatmul.mubr.f32.gmra.mxu0 %v1766
        %v1854 = vpop.f32.mrf.mxu0
        %v1855 = vadd.f32 0.0, %v1854
        %v1856 = vpop.f32.mrf.mxu0
        %1857 = vmatprep.mubr.f32.mxu0 0.0
        %1858 = vmatmul.mubr.f32.gmra.mxu0 %v1767
        %v1859 = vpop.f32.mrf.mxu0
        %v1860 = vadd.f32 0.0, %v1859
        %v1861 = vpop.f32.mrf.mxu0
        %1862 = vmatprep.mubr.f32.mxu0 0.0
        %1863 = vmatmul.mubr.f32.gmra.mxu0 %v1768
        %v1864 = vpop.f32.mrf.mxu0
        %v1865 = vadd.f32 0.0, %v1864
        %v1866 = vpop.f32.mrf.mxu0
        %1867 = vmatprep.mubr.f32.mxu0 0.0
        %1868 = vmatmul.mubr.f32.gmra.mxu0 %v1769
        %v1869 = vpop.f32.mrf.mxu0
        %v1870 = vadd.f32 0.0, %v1869
        %v1871 = vpop.f32.mrf.mxu0
        %1872 = vmatprep.mubr.f32.mxu0 0.0
        %1873 = vmatmul.mubr.f32.gmra.mxu0 %v1770
        %v1874 = vpop.f32.mrf.mxu0
        %v1875 = vadd.f32 0.0, %v1874
        %v1876 = vpop.f32.mrf.mxu0
        %1877 = vmatprep.mubr.f32.mxu0 0.0
        %1878 = vmatmul.mubr.f32.gmra.mxu0 %v1771
        %v1879 = vpop.f32.mrf.mxu0
        %v1880 = vadd.f32 0.0, %v1879
        %v1881 = vpop.f32.mrf.mxu0
        %1882 = vmatprep.mubr.f32.mxu0 0.0
        %1883 = vmatmul.mubr.f32.gmra.mxu0 %v1772
        %v1884 = vpop.f32.mrf.mxu0
        %v1885 = vadd.f32 0.0, %v1884
        %v1886 = vpop.f32.mrf.mxu0
        %1887 = vdwg.mxu0
        %v1888 = vadd.f32 %v1715, %v1840
        %v1889 = vadd.f32 %v1720, %v1845
        %v1890 = vadd.f32 %v1725, %v1850
        %v1891 = vadd.f32 %v1730, %v1855
        %v1892 = vadd.f32 %v1735, %v1860
        %v1893 = vadd.f32 %v1740, %v1865
        %v1894 = vadd.f32 %v1745, %v1870
        %v1895 = vadd.f32 %v1750, %v1875
        %v1896 = vadd.f32 %v1755, %v1880
        %v1897 = vadd.f32 %v1760, %v1885
        %v1898 = vadd.f32 %v1888, 1e-05
        %v1899 = vadd.f32 %v1889, 1e-05
        %v1900 = vadd.f32 %v1890, 1e-05
        %v1901 = vadd.f32 %v1891, 1e-05
        %v1902 = vadd.f32 %v1892, 1e-05
        %v1903 = vadd.f32 %v1893, 1e-05
        %v1904 = vadd.f32 %v1894, 1e-05
        %v1905 = vadd.f32 %v1895, 1e-05
        %v1906 = vadd.f32 %v1896, 1e-05
        %v1907 = vadd.f32 %v1897, 1e-05
        %v1908 = vrsqrt.pop %v1898
        %v1909 = vrsqrt.pop %v1899
        %v1910 = vrsqrt.pop %v1900
        %v1911 = vrsqrt.pop %v1901
        %v1912 = vrsqrt.pop %v1902
        %v1913 = vrsqrt.pop %v1903
        %v1914 = vrsqrt.pop %v1904
        %v1915 = vrsqrt.pop %v1905
        %v1916 = vrsqrt.pop %v1906
        %v1917 = vrsqrt.pop %v1907
        %v1918 = vld [vmem:[#allocation8] sm:$0xff]
        %v1919 = vld [vmem:[#allocation8 + $0x8] sm:$0xff]
        %v1921 = vsel %vm1101, %v1908, 0
        %v1924 = vsel %vm1101, %v1909, 0
        %v1927 = vsel %vm1101, %v1910, 0
        %v1930 = vsel %vm1101, %v1911, 0
        %v1933 = vsel %vm1101, %v1912, 0
        %v1936 = vsel %vm1101, %v1913, 0
        %v1939 = vsel %vm1101, %v1914, 0
        %v1942 = vsel %vm1101, %v1915, 0
        %v1945 = vsel %vm1101, %v1916, 0
        %v1948 = vsel %vm1101, %v1917, 0
        %1950 = vmatprep.subr.mxu0 0.0
        %1951 = vmatpush1.msra.mxu0 0.0
        %1952 = vmatprep.subr.mxu0 0.0
        %1953 = vmatpush1.msra.mxu0 0.0
        %1954 = vmatprep.subr.mxu0 0.0
        %1955 = vmatpush1.msra.mxu0 0.0
        %1956 = vmatprep.subr.mxu0 0.0
        %1957 = vmatpush1.msra.mxu0 0.0
        %1958 = vmatprep.subr.mxu0 0.0
        %1959 = vmatpush1.msra.mxu0 0.0
        %1960 = vmatprep.subr.mxu0 0.0
        %1961 = vmatpush1.msra.mxu0 0.0
        %1962 = vmatprep.subr.mxu0 0.0
        %1963 = vmatpush1.msra.mxu0 0.0
        %1964 = vmatprep.subr.mxu0 0.0
        %1965 = vmatpush1.msra.mxu0 0.0
        %1966 = vmatprep.subr.mxu0 0.0
        %1967 = vmatpush1.msra.mxu0 0.0
        %1968 = vmatprep.subr.mxu0 0.0
        %1969 = vmatpush1.msra.mxu0 0.0
        %1970 = vmatprep.subr.mxu0 0.0
        %1971 = vmatpush1.msra.mxu0 0.0
        %1972 = vmatprep.subr.mxu0 0.0
        %1973 = vmatpush1.msra.mxu0 0.0
        %1974 = vmatprep.subr.mxu0 0.0
        %1975 = vmatpush1.msra.mxu0 0.0
        %1976 = vmatprep.subr.mxu0 0.0
        %1977 = vmatpush1.msra.mxu0 0.0
        %1978 = vmatprep.subr.mxu0 0.0
        %1979 = vmatpush1.msra.mxu0 %v1919
        %1980 = vmatprep.subr.mxu0 0.0
        %1981 = vmatpush1.msra.mxu0 %v1918
        %1982 = vmatprep.subr.mxu0 0.0
        %1983 = vmatpush2.msra.mxu0 0.0
        %1984 = vmatprep.subr.mxu0 0.0
        %1985 = vmatpush2.msra.mxu0 0.0
        %1986 = vmatprep.subr.mxu0 0.0
        %1987 = vmatpush2.msra.mxu0 0.0
        %1988 = vmatprep.subr.mxu0 0.0
        %1989 = vmatpush2.msra.mxu0 0.0
        %1990 = vmatprep.subr.mxu0 0.0
        %1991 = vmatpush2.msra.mxu0 0.0
        %1992 = vmatprep.subr.mxu0 0.0
        %1993 = vmatpush2.msra.mxu0 0.0
        %1994 = vmatprep.subr.mxu0 0.0
        %1995 = vmatpush2.msra.mxu0 0.0
        %1996 = vmatprep.subr.mxu0 0.0
        %1997 = vmatpush2.msra.mxu0 0.0
        %1998 = vmatprep.subr.mxu0 0.0
        %1999 = vmatpush2.msra.mxu0 0.0
        %2000 = vmatprep.subr.mxu0 0.0
        %2001 = vmatpush2.msra.mxu0 0.0
        %2002 = vmatprep.subr.mxu0 0.0
        %2003 = vmatpush2.msra.mxu0 0.0
        %2004 = vmatprep.subr.mxu0 0.0
        %2005 = vmatpush2.msra.mxu0 0.0
        %2006 = vmatprep.subr.mxu0 0.0
        %2007 = vmatpush2.msra.mxu0 0.0
        %2008 = vmatprep.subr.mxu0 0.0
        %2009 = vmatpush2.msra.mxu0 0.0
        %2010 = vmatprep.subr.mxu0 0.0
        %2011 = vmatpush2.msra.mxu0 0.0
        %2012 = vmatprep.subr.mxu0 0.0
        %2013 = vmatpush2.msra.mxu0 0.0
        %2014 = vmatprep.mubr.f32.mxu0 0.0
        %2015 = vmatmul.mubr.f32.gmra.mxu0 %v1921
        %v2016 = vpop.f32.mrf.mxu0
        %v2017 = vadd.f32 0.0, %v2016
        %v2018 = vpop.f32.mrf.mxu0
        %2019 = vmatprep.mubr.f32.mxu0 0.0
        %2020 = vmatmul.mubr.f32.gmra.mxu0 %v1924
        %v2021 = vpop.f32.mrf.mxu0
        %v2022 = vadd.f32 0.0, %v2021
        %v2023 = vpop.f32.mrf.mxu0
        %2024 = vmatprep.mubr.f32.mxu0 0.0
        %2025 = vmatmul.mubr.f32.gmra.mxu0 %v1927
        %v2026 = vpop.f32.mrf.mxu0
        %v2027 = vadd.f32 0.0, %v2026
        %v2028 = vpop.f32.mrf.mxu0
        %2029 = vmatprep.mubr.f32.mxu0 0.0
        %2030 = vmatmul.mubr.f32.gmra.mxu0 %v1930
        %v2031 = vpop.f32.mrf.mxu0
        %v2032 = vadd.f32 0.0, %v2031
        %v2033 = vpop.f32.mrf.mxu0
        %2034 = vmatprep.mubr.f32.mxu0 0.0
        %2035 = vmatmul.mubr.f32.gmra.mxu0 %v1933
        %v2036 = vpop.f32.mrf.mxu0
        %v2037 = vadd.f32 0.0, %v2036
        %v2038 = vpop.f32.mrf.mxu0
        %2039 = vmatprep.mubr.f32.mxu0 0.0
        %2040 = vmatmul.mubr.f32.gmra.mxu0 %v1936
        %v2041 = vpop.f32.mrf.mxu0
        %v2042 = vadd.f32 0.0, %v2041
        %v2043 = vpop.f32.mrf.mxu0
        %2044 = vmatprep.mubr.f32.mxu0 0.0
        %2045 = vmatmul.mubr.f32.gmra.mxu0 %v1939
        %v2046 = vpop.f32.mrf.mxu0
        %v2047 = vadd.f32 0.0, %v2046
        %v2048 = vpop.f32.mrf.mxu0
        %2049 = vmatprep.mubr.f32.mxu0 0.0
        %2050 = vmatmul.mubr.f32.gmra.mxu0 %v1942
        %v2051 = vpop.f32.mrf.mxu0
        %v2052 = vadd.f32 0.0, %v2051
        %v2053 = vpop.f32.mrf.mxu0
        %2054 = vmatprep.mubr.f32.mxu0 0.0
        %2055 = vmatmul.mubr.f32.gmra.mxu0 %v1945
        %v2056 = vpop.f32.mrf.mxu0
        %v2057 = vadd.f32 0.0, %v2056
        %v2058 = vpop.f32.mrf.mxu0
        %2059 = vmatprep.mubr.f32.mxu0 0.0
        %2060 = vmatmul.mubr.f32.gmra.mxu0 %v1948
        %v2061 = vpop.f32.mrf.mxu0
        %v2062 = vadd.f32 0.0, %v2061
        %v2063 = vpop.f32.mrf.mxu0
        %2064 = vdwg.mxu0
        %v2065 = vmul.f32 %v1247, %v2017
        %v2066 = vmul.f32 %v1248, %v2022
        %v2067 = vmul.f32 %v1249, %v2027
        %v2068 = vmul.f32 %v1250, %v2032
        %v2069 = vmul.f32 %v1251, %v2037
        %v2070 = vmul.f32 %v1252, %v2042
        %v2071 = vmul.f32 %v1253, %v2047
        %v2072 = vmul.f32 %v1254, %v2052
        %v2073 = vmul.f32 %v1255, %v2057
        %v2074 = vmul.f32 %v1256, %v2062
        %v2075 = vld [vmem:[%s6] sm:$0x1]
        %v2077 = vlaneseq
        %v2078 = vshrl.u32 %v2077, 7
        %v2079 = vsub.s32 0, %v2078
        %v2080 = vrot.slane %v2075, %v2079
        %v2082 = vadd.f32 %v2065, %v2080
        %v2083 = vadd.f32 %v2066, %v2080
        %v2084 = vadd.f32 %v2067, %v2080
        %v2085 = vadd.f32 %v2068, %v2080
        %v2086 = vadd.f32 %v2069, %v2080
        %v2087 = vadd.f32 %v2070, %v2080
        %v2088 = vadd.f32 %v2071, %v2080
        %v2089 = vadd.f32 %v2072, %v2080
        %v2090 = vadd.f32 %v2073, %v2080
        %v2091 = vadd.f32 %v2074, %v2080
        %v2092 = vmax.f32 %v2082, 0.0
        %v2093 = vmax.f32 %v2083, 0.0
        %v2094 = vmax.f32 %v2084, 0.0
        %v2095 = vmax.f32 %v2085, 0.0
        %v2096 = vmax.f32 %v2086, 0.0
        %v2097 = vmax.f32 %v2087, 0.0
        %v2098 = vmax.f32 %v2088, 0.0
        %v2099 = vmax.f32 %v2089, 0.0
        %v2100 = vmax.f32 %v2090, 0.0
        %v2101 = vmax.f32 %v2091, 0.0
        %v2102 = vpack.c.bf16 %v2093, %v2092
        %v2103 = vpack.c.bf16 %v2095, %v2094
        %v2104 = vpack.c.bf16 %v2097, %v2096
        %v2105 = vpack.c.bf16 %v2099, %v2098
        %v2106 = vpack.c.bf16 %v2101, %v2100
        %v2107 = vld [vmem:[%s7] sm:$0xf]
        %v2108 = vld [vmem:[%s7 + $0x4] sm:$0xf]
        %v2109 = vld [vmem:[%s7 + $0x8] sm:$0xf]
        %v2110 = vld [vmem:[%s7 + $0xc] sm:$0xf]
        %v2111 = vld [vmem:[%s7 + $0x10] sm:$0xf]
        %v2112 = vld [vmem:[%s7 + $0x14] sm:$0xf]
        %v2113 = vld [vmem:[%s7 + $0x18] sm:$0xf]
        %v2114 = vld [vmem:[%s7 + $0x1c] sm:$0xf]
        %v2115 = vld [vmem:[%s7 + $0x20] sm:$0xf]
        %v2116 = vld [vmem:[%s7 + $0x24] sm:$0xf]
        %v2117 = vld [vmem:[%s7 + $0x28] sm:$0xf]
        %v2118 = vld [vmem:[%s7 + $0x2c] sm:$0xf]
        %v2119 = vld [vmem:[%s7 + $0x30] sm:$0xf]
        %v2120 = vld [vmem:[%s7 + $0x34] sm:$0xf]
        %v2121 = vld [vmem:[%s7 + $0x38] sm:$0xf]
        %v2122 = vld [vmem:[%s7 + $0x3c] sm:$0xf]
        %s2123 = scalar_lea.vmem [#allocation8], 16
        %v2124 = vld [vmem:[%s2123] sm:$0xff]
        %v2125 = vld [vmem:[%s2123 + $0x8] sm:$0xff]
        %2126 = vmatprep.subr.mxu0 0.0
        %2127 = vmatpush1.msra.mxu0 0.0
        %2128 = vmatprep.subr.mxu0 0.0
        %2129 = vmatpush1.msra.mxu0 0.0
        %2130 = vmatprep.subr.mxu0 0.0
        %2131 = vmatpush1.msra.mxu0 0.0
        %2132 = vmatprep.subr.mxu0 0.0
        %2133 = vmatpush1.msra.mxu0 0.0
        %2134 = vmatprep.subr.mxu0 0.0
        %2135 = vmatpush1.msra.mxu0 0.0
        %2136 = vmatprep.subr.mxu0 0.0
        %2137 = vmatpush1.msra.mxu0 0.0
        %2138 = vmatprep.subr.mxu0 0.0
        %2139 = vmatpush1.msra.mxu0 0.0
        %2140 = vmatprep.subr.mxu0 0.0
        %2141 = vmatpush1.msra.mxu0 0.0
        %2142 = vmatprep.subr.mxu0 0.0
        %2143 = vmatpush1.msra.mxu0 0.0
        %2144 = vmatprep.subr.mxu0 0.0
        %2145 = vmatpush1.msra.mxu0 0.0
        %2146 = vmatprep.subr.mxu0 0.0
        %2147 = vmatpush1.msra.mxu0 0.0
        %2148 = vmatprep.subr.mxu0 0.0
        %2149 = vmatpush1.msra.mxu0 0.0
        %2150 = vmatprep.subr.mxu0 0.0
        %2151 = vmatpush1.msra.mxu0 0.0
        %2152 = vmatprep.subr.mxu0 0.0
        %2153 = vmatpush1.msra.mxu0 0.0
        %2154 = vmatprep.subr.mxu0 0.0
        %2155 = vmatpush1.msra.mxu0 %v2125
        %2156 = vmatprep.subr.mxu0 0.0
        %2157 = vmatpush1.msra.mxu0 %v2124
        %2158 = vmatprep.subr.mxu0 0.0
        %2159 = vmatpush2.msra.mxu0 0.0
        %2160 = vmatprep.subr.mxu0 0.0
        %2161 = vmatpush2.msra.mxu0 0.0
        %2162 = vmatprep.subr.mxu0 0.0
        %2163 = vmatpush2.msra.mxu0 0.0
        %2164 = vmatprep.subr.mxu0 0.0
        %2165 = vmatpush2.msra.mxu0 0.0
        %2166 = vmatprep.subr.mxu0 0.0
        %2167 = vmatpush2.msra.mxu0 0.0
        %2168 = vmatprep.subr.mxu0 0.0
        %2169 = vmatpush2.msra.mxu0 0.0
        %2170 = vmatprep.subr.mxu0 0.0
        %2171 = vmatpush2.msra.mxu0 0.0
        %2172 = vmatprep.subr.mxu0 0.0
        %2173 = vmatpush2.msra.mxu0 0.0
        %2174 = vmatprep.subr.mxu0 0.0
        %2175 = vmatpush2.msra.mxu0 0.0
        %2176 = vmatprep.subr.mxu0 0.0
        %2177 = vmatpush2.msra.mxu0 0.0
        %2178 = vmatprep.subr.mxu0 0.0
        %2179 = vmatpush2.msra.mxu0 0.0
        %2180 = vmatprep.subr.mxu0 0.0
        %2181 = vmatpush2.msra.mxu0 0.0
        %2182 = vmatprep.subr.mxu0 0.0
        %2183 = vmatpush2.msra.mxu0 0.0
        %2184 = vmatprep.subr.mxu0 0.0
        %2185 = vmatpush2.msra.mxu0 0.0
        %2186 = vmatprep.subr.mxu0 0.0
        %2187 = vmatpush2.msra.mxu0 0.0
        %2188 = vmatprep.subr.mxu0 0.0
        %2189 = vmatpush2.msra.mxu0 0.0
        %2190 = vmatprep.mubr.f32.mxu0 0.0
        %2191 = vmatmul.mubr.f32.gmra.mxu0 %v1921
        %v2192 = vpop.f32.mrf.mxu0
        %v2193 = vadd.f32 0.0, %v2192
        %v2194 = vpop.f32.mrf.mxu0
        %2195 = vmatprep.mubr.f32.mxu0 0.0
        %2196 = vmatmul.mubr.f32.gmra.mxu0 %v1924
        %v2197 = vpop.f32.mrf.mxu0
        %v2198 = vadd.f32 0.0, %v2197
        %v2199 = vpop.f32.mrf.mxu0
        %2200 = vmatprep.mubr.f32.mxu0 0.0
        %2201 = vmatmul.mubr.f32.gmra.mxu0 %v1927
        %v2202 = vpop.f32.mrf.mxu0
        %v2203 = vadd.f32 0.0, %v2202
        %v2204 = vpop.f32.mrf.mxu0
        %2205 = vmatprep.mubr.f32.mxu0 0.0
        %2206 = vmatmul.mubr.f32.gmra.mxu0 %v1930
        %v2207 = vpop.f32.mrf.mxu0
        %v2208 = vadd.f32 0.0, %v2207
        %v2209 = vpop.f32.mrf.mxu0
        %2210 = vmatprep.mubr.f32.mxu0 0.0
        %2211 = vmatmul.mubr.f32.gmra.mxu0 %v1933
        %v2212 = vpop.f32.mrf.mxu0
        %v2213 = vadd.f32 0.0, %v2212
        %v2214 = vpop.f32.mrf.mxu0
        %2215 = vmatprep.mubr.f32.mxu0 0.0
        %2216 = vmatmul.mubr.f32.gmra.mxu0 %v1936
        %v2217 = vpop.f32.mrf.mxu0
        %v2218 = vadd.f32 0.0, %v2217
        %v2219 = vpop.f32.mrf.mxu0
        %2220 = vmatprep.mubr.f32.mxu0 0.0
        %2221 = vmatmul.mubr.f32.gmra.mxu0 %v1939
        %v2222 = vpop.f32.mrf.mxu0
        %v2223 = vadd.f32 0.0, %v2222
        %v2224 = vpop.f32.mrf.mxu0
        %2225 = vmatprep.mubr.f32.mxu0 0.0
        %2226 = vmatmul.mubr.f32.gmra.mxu0 %v1942
        %v2227 = vpop.f32.mrf.mxu0
        %v2228 = vadd.f32 0.0, %v2227
        %v2229 = vpop.f32.mrf.mxu0
        %2230 = vmatprep.mubr.f32.mxu0 0.0
        %2231 = vmatmul.mubr.f32.gmra.mxu0 %v1945
        %v2232 = vpop.f32.mrf.mxu0
        %v2233 = vadd.f32 0.0, %v2232
        %v2234 = vpop.f32.mrf.mxu0
        %2235 = vmatprep.mubr.f32.mxu0 0.0
        %2236 = vmatmul.mubr.f32.gmra.mxu0 %v1948
        %v2237 = vpop.f32.mrf.mxu0
        %v2238 = vadd.f32 0.0, %v2237
        %v2239 = vpop.f32.mrf.mxu0
        %2240 = vdwg.mxu0
        %v2241 = vmul.f32 %v1375, %v2193
        %v2242 = vmul.f32 %v1376, %v2198
        %v2243 = vmul.f32 %v1377, %v2203
        %v2244 = vmul.f32 %v1378, %v2208
        %v2245 = vmul.f32 %v1379, %v2213
        %v2246 = vmul.f32 %v1380, %v2218
        %v2247 = vmul.f32 %v1381, %v2223
        %v2248 = vmul.f32 %v1382, %v2228
        %v2249 = vmul.f32 %v1383, %v2233
        %v2250 = vmul.f32 %v1384, %v2238
        %s2251 = scalar_lea.vmem %s6, 1
        %v2252 = vld [vmem:[%s2251] sm:$0x1]
        %v2254 = vlaneseq
        %v2255 = vshrl.u32 %v2254, 7
        %v2256 = vsub.s32 0, %v2255
        %v2257 = vrot.slane %v2252, %v2256
        %v2259 = vadd.f32 %v2241, %v2257
        %v2260 = vadd.f32 %v2242, %v2257
        %v2261 = vadd.f32 %v2243, %v2257
        %v2262 = vadd.f32 %v2244, %v2257
        %v2263 = vadd.f32 %v2245, %v2257
        %v2264 = vadd.f32 %v2246, %v2257
        %v2265 = vadd.f32 %v2247, %v2257
        %v2266 = vadd.f32 %v2248, %v2257
        %v2267 = vadd.f32 %v2249, %v2257
        %v2268 = vadd.f32 %v2250, %v2257
        %v2269 = vmax.f32 %v2259, 0.0
        %v2270 = vmax.f32 %v2260, 0.0
        %v2271 = vmax.f32 %v2261, 0.0
        %v2272 = vmax.f32 %v2262, 0.0
        %v2273 = vmax.f32 %v2263, 0.0
        %v2274 = vmax.f32 %v2264, 0.0
        %v2275 = vmax.f32 %v2265, 0.0
        %v2276 = vmax.f32 %v2266, 0.0
        %v2277 = vmax.f32 %v2267, 0.0
        %v2278 = vmax.f32 %v2268, 0.0
        %v2279 = vpack.c.bf16 %v2270, %v2269
        %v2280 = vpack.c.bf16 %v2272, %v2271
        %v2281 = vpack.c.bf16 %v2274, %v2273
        %v2282 = vpack.c.bf16 %v2276, %v2275
        %v2283 = vpack.c.bf16 %v2278, %v2277
        %s2284 = scalar_lea.vmem %s7, 64
        %v2285 = vld [vmem:[%s2284] sm:$0xf]
        %v2286 = vld [vmem:[%s2284 + $0x4] sm:$0xf]
        %v2287 = vld [vmem:[%s2284 + $0x8] sm:$0xf]
        %v2288 = vld [vmem:[%s2284 + $0xc] sm:$0xf]
        %v2289 = vld [vmem:[%s2284 + $0x10] sm:$0xf]
        %v2290 = vld [vmem:[%s2284 + $0x14] sm:$0xf]
        %v2291 = vld [vmem:[%s2284 + $0x18] sm:$0xf]
        %v2292 = vld [vmem:[%s2284 + $0x1c] sm:$0xf]
        %v2293 = vld [vmem:[%s2284 + $0x20] sm:$0xf]
        %v2294 = vld [vmem:[%s2284 + $0x24] sm:$0xf]
        %v2295 = vld [vmem:[%s2284 + $0x28] sm:$0xf]
        %v2296 = vld [vmem:[%s2284 + $0x2c] sm:$0xf]
        %v2297 = vld [vmem:[%s2284 + $0x30] sm:$0xf]
        %v2298 = vld [vmem:[%s2284 + $0x34] sm:$0xf]
        %v2299 = vld [vmem:[%s2284 + $0x38] sm:$0xf]
        %v2300 = vld [vmem:[%s2284 + $0x3c] sm:$0xf]
        %v2317 = vunpack.c.l.b16 %v2285
        %v2318 = vunpack.c.l.b16 %v2286
        %v2319 = vunpack.c.l.b16 %v2287
        %v2320 = vunpack.c.l.b16 %v2288
        %v2321 = vunpack.c.l.b16 %v2289
        %v2322 = vunpack.c.l.b16 %v2290
        %v2323 = vunpack.c.l.b16 %v2291
        %v2324 = vunpack.c.l.b16 %v2292
        %v2325 = vunpack.c.l.b16 %v2293
        %v2326 = vunpack.c.l.b16 %v2294
        %v2327 = vunpack.c.l.b16 %v2295
        %v2328 = vunpack.c.l.b16 %v2296
        %v2329 = vunpack.c.l.b16 %v2297
        %v2330 = vunpack.c.l.b16 %v2298
        %v2331 = vunpack.c.l.b16 %v2299
        %v2332 = vunpack.c.l.b16 %v2300
        %v2333 = vpack.c.b16 %v2318, %v2317
        %v2334 = vpack.c.b16 %v2320, %v2319
        %v2335 = vpack.c.b16 %v2322, %v2321
        %v2336 = vpack.c.b16 %v2324, %v2323
        %v2337 = vpack.c.b16 %v2326, %v2325
        %v2338 = vpack.c.b16 %v2328, %v2327
        %v2339 = vpack.c.b16 %v2330, %v2329
        %v2340 = vpack.c.b16 %v2332, %v2331
        %2349 = vmatprep.subr.bf16.mxu0 0
        %2350 = vmatpush1.bf16.msra.mxu0 %v2340
        %2351 = vmatprep.subr.bf16.mxu0 0
        %2352 = vmatpush1.bf16.msra.mxu0 %v2339
        %2353 = vmatprep.subr.bf16.mxu0 0
        %2354 = vmatpush1.bf16.msra.mxu0 %v2338
        %2355 = vmatprep.subr.bf16.mxu0 0
        %2356 = vmatpush1.bf16.msra.mxu0 %v2337
        %2357 = vmatprep.subr.bf16.mxu0 0
        %2358 = vmatpush1.bf16.msra.mxu0 %v2336
        %2359 = vmatprep.subr.bf16.mxu0 0
        %2360 = vmatpush1.bf16.msra.mxu0 %v2335
        %2361 = vmatprep.subr.bf16.mxu0 0
        %2362 = vmatpush1.bf16.msra.mxu0 %v2334
        %2363 = vmatprep.subr.bf16.mxu0 0
        %2364 = vmatpush1.bf16.msra.mxu0 %v2333
        %2365 = vmatprep.subr.bf16.mxu0 0
        %2366 = vmatpush2.bf16.msra.mxu0 0
        %2367 = vmatprep.subr.bf16.mxu0 0
        %2368 = vmatpush2.bf16.msra.mxu0 0
        %2369 = vmatprep.subr.bf16.mxu0 0
        %2370 = vmatpush2.bf16.msra.mxu0 0
        %2371 = vmatprep.subr.bf16.mxu0 0
        %2372 = vmatpush2.bf16.msra.mxu0 0
        %2373 = vmatprep.subr.bf16.mxu0 0
        %2374 = vmatpush2.bf16.msra.mxu0 0
        %2375 = vmatprep.subr.bf16.mxu0 0
        %2376 = vmatpush2.bf16.msra.mxu0 0
        %2377 = vmatprep.subr.bf16.mxu0 0
        %2378 = vmatpush2.bf16.msra.mxu0 0
        %2379 = vmatprep.subr.bf16.mxu0 0
        %2380 = vmatpush2.bf16.msra.mxu0 0
        %2381 = vmatprep.mubr.bf16.mxu0 0
        %2382 = vmatmul.mubr.bf16.gmra.mxu0 %v2279
        %v2383 = vpop.f32.mrf.mxu0
        %v2384 = vadd.f32 0.0, %v2383
        %v2385 = vpop.f32.mrf.mxu0
        %v2386 = vpop.f32.mrf.mxu0
        %v2387 = vadd.f32 0.0, %v2386
        %v2388 = vpop.f32.mrf.mxu0
        %2389 = vmatprep.mubr.bf16.mxu0 0
        %2390 = vmatmul.mubr.bf16.gmra.mxu0 %v2280
        %v2391 = vpop.f32.mrf.mxu0
        %v2392 = vadd.f32 0.0, %v2391
        %v2393 = vpop.f32.mrf.mxu0
        %v2394 = vpop.f32.mrf.mxu0
        %v2395 = vadd.f32 0.0, %v2394
        %v2396 = vpop.f32.mrf.mxu0
        %2397 = vmatprep.mubr.bf16.mxu0 0
        %2398 = vmatmul.mubr.bf16.gmra.mxu0 %v2281
        %v2399 = vpop.f32.mrf.mxu0
        %v2400 = vadd.f32 0.0, %v2399
        %v2401 = vpop.f32.mrf.mxu0
        %v2402 = vpop.f32.mrf.mxu0
        %v2403 = vadd.f32 0.0, %v2402
        %v2404 = vpop.f32.mrf.mxu0
        %2405 = vmatprep.mubr.bf16.mxu0 0
        %2406 = vmatmul.mubr.bf16.gmra.mxu0 %v2282
        %v2407 = vpop.f32.mrf.mxu0
        %v2408 = vadd.f32 0.0, %v2407
        %v2409 = vpop.f32.mrf.mxu0
        %v2410 = vpop.f32.mrf.mxu0
        %v2411 = vadd.f32 0.0, %v2410
        %v2412 = vpop.f32.mrf.mxu0
        %2413 = vmatprep.mubr.bf16.mxu0 0
        %2414 = vmatmul.mubr.bf16.gmra.mxu0 %v2283
        %v2415 = vpop.f32.mrf.mxu0
        %v2416 = vadd.f32 0.0, %v2415
        %v2417 = vpop.f32.mrf.mxu0
        %v2418 = vpop.f32.mrf.mxu0
        %v2419 = vadd.f32 0.0, %v2418
        %v2420 = vpop.f32.mrf.mxu0
        %2421 = vdwg.mxu0
        %v2438 = vunpack.c.l.b16 %v2107
        %v2439 = vunpack.c.l.b16 %v2108
        %v2440 = vunpack.c.l.b16 %v2109
        %v2441 = vunpack.c.l.b16 %v2110
        %v2442 = vunpack.c.l.b16 %v2111
        %v2443 = vunpack.c.l.b16 %v2112
        %v2444 = vunpack.c.l.b16 %v2113
        %v2445 = vunpack.c.l.b16 %v2114
        %v2446 = vunpack.c.l.b16 %v2115
        %v2447 = vunpack.c.l.b16 %v2116
        %v2448 = vunpack.c.l.b16 %v2117
        %v2449 = vunpack.c.l.b16 %v2118
        %v2450 = vunpack.c.l.b16 %v2119
        %v2451 = vunpack.c.l.b16 %v2120
        %v2452 = vunpack.c.l.b16 %v2121
        %v2453 = vunpack.c.l.b16 %v2122
        %v2454 = vpack.c.b16 %v2439, %v2438
        %v2455 = vpack.c.b16 %v2441, %v2440
        %v2456 = vpack.c.b16 %v2443, %v2442
        %v2457 = vpack.c.b16 %v2445, %v2444
        %v2458 = vpack.c.b16 %v2447, %v2446
        %v2459 = vpack.c.b16 %v2449, %v2448
        %v2460 = vpack.c.b16 %v2451, %v2450
        %v2461 = vpack.c.b16 %v2453, %v2452
        %2470 = vmatprep.subr.bf16.mxu0 0
        %2471 = vmatpush1.bf16.msra.mxu0 %v2461
        %2472 = vmatprep.subr.bf16.mxu0 0
        %2473 = vmatpush1.bf16.msra.mxu0 %v2460
        %2474 = vmatprep.subr.bf16.mxu0 0
        %2475 = vmatpush1.bf16.msra.mxu0 %v2459
        %2476 = vmatprep.subr.bf16.mxu0 0
        %2477 = vmatpush1.bf16.msra.mxu0 %v2458
        %2478 = vmatprep.subr.bf16.mxu0 0
        %2479 = vmatpush1.bf16.msra.mxu0 %v2457
        %2480 = vmatprep.subr.bf16.mxu0 0
        %2481 = vmatpush1.bf16.msra.mxu0 %v2456
        %2482 = vmatprep.subr.bf16.mxu0 0
        %2483 = vmatpush1.bf16.msra.mxu0 %v2455
        %2484 = vmatprep.subr.bf16.mxu0 0
        %2485 = vmatpush1.bf16.msra.mxu0 %v2454
        %2486 = vmatprep.subr.bf16.mxu0 0
        %2487 = vmatpush2.bf16.msra.mxu0 0
        %2488 = vmatprep.subr.bf16.mxu0 0
        %2489 = vmatpush2.bf16.msra.mxu0 0
        %2490 = vmatprep.subr.bf16.mxu0 0
        %2491 = vmatpush2.bf16.msra.mxu0 0
        %2492 = vmatprep.subr.bf16.mxu0 0
        %2493 = vmatpush2.bf16.msra.mxu0 0
        %2494 = vmatprep.subr.bf16.mxu0 0
        %2495 = vmatpush2.bf16.msra.mxu0 0
        %2496 = vmatprep.subr.bf16.mxu0 0
        %2497 = vmatpush2.bf16.msra.mxu0 0
        %2498 = vmatprep.subr.bf16.mxu0 0
        %2499 = vmatpush2.bf16.msra.mxu0 0
        %2500 = vmatprep.subr.bf16.mxu0 0
        %2501 = vmatpush2.bf16.msra.mxu0 0
        %2502 = vmatprep.mubr.bf16.mxu0 0
        %2503 = vmatmul.mubr.bf16.gmra.mxu0 %v2102
        %v2504 = vpop.f32.mrf.mxu0
        %v2505 = vadd.f32 %v2384, %v2504
        %v2506 = vpop.f32.mrf.mxu0
        %v2507 = vpop.f32.mrf.mxu0
        %v2508 = vadd.f32 %v2387, %v2507
        %v2509 = vpop.f32.mrf.mxu0
        %2510 = vmatprep.mubr.bf16.mxu0 0
        %2511 = vmatmul.mubr.bf16.gmra.mxu0 %v2103
        %v2512 = vpop.f32.mrf.mxu0
        %v2513 = vadd.f32 %v2392, %v2512
        %v2514 = vpop.f32.mrf.mxu0
        %v2515 = vpop.f32.mrf.mxu0
        %v2516 = vadd.f32 %v2395, %v2515
        %v2517 = vpop.f32.mrf.mxu0
        %2518 = vmatprep.mubr.bf16.mxu0 0
        %2519 = vmatmul.mubr.bf16.gmra.mxu0 %v2104
        %v2520 = vpop.f32.mrf.mxu0
        %v2521 = vadd.f32 %v2400, %v2520
        %v2522 = vpop.f32.mrf.mxu0
        %v2523 = vpop.f32.mrf.mxu0
        %v2524 = vadd.f32 %v2403, %v2523
        %v2525 = vpop.f32.mrf.mxu0
        %2526 = vmatprep.mubr.bf16.mxu0 0
        %2527 = vmatmul.mubr.bf16.gmra.mxu0 %v2105
        %v2528 = vpop.f32.mrf.mxu0
        %v2529 = vadd.f32 %v2408, %v2528
        %v2530 = vpop.f32.mrf.mxu0
        %v2531 = vpop.f32.mrf.mxu0
        %v2532 = vadd.f32 %v2411, %v2531
        %v2533 = vpop.f32.mrf.mxu0
        %2534 = vmatprep.mubr.bf16.mxu0 0
        %2535 = vmatmul.mubr.bf16.gmra.mxu0 %v2106
        %v2536 = vpop.f32.mrf.mxu0
        %v2537 = vadd.f32 %v2416, %v2536
        %v2538 = vpop.f32.mrf.mxu0
        %v2539 = vpop.f32.mrf.mxu0
        %v2540 = vadd.f32 %v2419, %v2539
        %v2541 = vpop.f32.mrf.mxu0
        %2542 = vdwg.mxu0
        %s2543 = scalar_lea.vmem [#allocation8], 32
        %v2544 = vld [vmem:[%s2543] sm:$0xff]
        %v2545 = vld [vmem:[%s2543 + $0x8] sm:$0xff]
        %2546 = vmatprep.subr.mxu0 0.0
        %2547 = vmatpush1.msra.mxu0 0.0
        %2548 = vmatprep.subr.mxu0 0.0
        %2549 = vmatpush1.msra.mxu0 0.0
        %2550 = vmatprep.subr.mxu0 0.0
        %2551 = vmatpush1.msra.mxu0 0.0
        %2552 = vmatprep.subr.mxu0 0.0
        %2553 = vmatpush1.msra.mxu0 0.0
        %2554 = vmatprep.subr.mxu0 0.0
        %2555 = vmatpush1.msra.mxu0 0.0
        %2556 = vmatprep.subr.mxu0 0.0
        %2557 = vmatpush1.msra.mxu0 0.0
        %2558 = vmatprep.subr.mxu0 0.0
        %2559 = vmatpush1.msra.mxu0 0.0
        %2560 = vmatprep.subr.mxu0 0.0
        %2561 = vmatpush1.msra.mxu0 0.0
        %2562 = vmatprep.subr.mxu0 0.0
        %2563 = vmatpush1.msra.mxu0 0.0
        %2564 = vmatprep.subr.mxu0 0.0
        %2565 = vmatpush1.msra.mxu0 0.0
        %2566 = vmatprep.subr.mxu0 0.0
        %2567 = vmatpush1.msra.mxu0 0.0
        %2568 = vmatprep.subr.mxu0 0.0
        %2569 = vmatpush1.msra.mxu0 0.0
        %2570 = vmatprep.subr.mxu0 0.0
        %2571 = vmatpush1.msra.mxu0 0.0
        %2572 = vmatprep.subr.mxu0 0.0
        %2573 = vmatpush1.msra.mxu0 0.0
        %2574 = vmatprep.subr.mxu0 0.0
        %2575 = vmatpush1.msra.mxu0 %v2545
        %2576 = vmatprep.subr.mxu0 0.0
        %2577 = vmatpush1.msra.mxu0 %v2544
        %2578 = vmatprep.subr.mxu0 0.0
        %2579 = vmatpush2.msra.mxu0 0.0
        %2580 = vmatprep.subr.mxu0 0.0
        %2581 = vmatpush2.msra.mxu0 0.0
        %2582 = vmatprep.subr.mxu0 0.0
        %2583 = vmatpush2.msra.mxu0 0.0
        %2584 = vmatprep.subr.mxu0 0.0
        %2585 = vmatpush2.msra.mxu0 0.0
        %2586 = vmatprep.subr.mxu0 0.0
        %2587 = vmatpush2.msra.mxu0 0.0
        %2588 = vmatprep.subr.mxu0 0.0
        %2589 = vmatpush2.msra.mxu0 0.0
        %2590 = vmatprep.subr.mxu0 0.0
        %2591 = vmatpush2.msra.mxu0 0.0
        %2592 = vmatprep.subr.mxu0 0.0
        %2593 = vmatpush2.msra.mxu0 0.0
        %2594 = vmatprep.subr.mxu0 0.0
        %2595 = vmatpush2.msra.mxu0 0.0
        %2596 = vmatprep.subr.mxu0 0.0
        %2597 = vmatpush2.msra.mxu0 0.0
        %2598 = vmatprep.subr.mxu0 0.0
        %2599 = vmatpush2.msra.mxu0 0.0
        %2600 = vmatprep.subr.mxu0 0.0
        %2601 = vmatpush2.msra.mxu0 0.0
        %2602 = vmatprep.subr.mxu0 0.0
        %2603 = vmatpush2.msra.mxu0 0.0
        %2604 = vmatprep.subr.mxu0 0.0
        %2605 = vmatpush2.msra.mxu0 0.0
        %2606 = vmatprep.subr.mxu0 0.0
        %2607 = vmatpush2.msra.mxu0 0.0
        %2608 = vmatprep.subr.mxu0 0.0
        %2609 = vmatpush2.msra.mxu0 0.0
        %2610 = vmatprep.mubr.f32.mxu0 0.0
        %2611 = vmatmul.mubr.f32.gmra.mxu0 %v1921
        %v2612 = vpop.f32.mrf.mxu0
        %v2613 = vadd.f32 0.0, %v2612
        %v2614 = vpop.f32.mrf.mxu0
        %2615 = vmatprep.mubr.f32.mxu0 0.0
        %2616 = vmatmul.mubr.f32.gmra.mxu0 %v1924
        %v2617 = vpop.f32.mrf.mxu0
        %v2618 = vadd.f32 0.0, %v2617
        %v2619 = vpop.f32.mrf.mxu0
        %2620 = vmatprep.mubr.f32.mxu0 0.0
        %2621 = vmatmul.mubr.f32.gmra.mxu0 %v1927
        %v2622 = vpop.f32.mrf.mxu0
        %v2623 = vadd.f32 0.0, %v2622
        %v2624 = vpop.f32.mrf.mxu0
        %2625 = vmatprep.mubr.f32.mxu0 0.0
        %2626 = vmatmul.mubr.f32.gmra.mxu0 %v1930
        %v2627 = vpop.f32.mrf.mxu0
        %v2628 = vadd.f32 0.0, %v2627
        %v2629 = vpop.f32.mrf.mxu0
        %2630 = vmatprep.mubr.f32.mxu0 0.0
        %2631 = vmatmul.mubr.f32.gmra.mxu0 %v1933
        %v2632 = vpop.f32.mrf.mxu0
        %v2633 = vadd.f32 0.0, %v2632
        %v2634 = vpop.f32.mrf.mxu0
        %2635 = vmatprep.mubr.f32.mxu0 0.0
        %2636 = vmatmul.mubr.f32.gmra.mxu0 %v1936
        %v2637 = vpop.f32.mrf.mxu0
        %v2638 = vadd.f32 0.0, %v2637
        %v2639 = vpop.f32.mrf.mxu0
        %2640 = vmatprep.mubr.f32.mxu0 0.0
        %2641 = vmatmul.mubr.f32.gmra.mxu0 %v1939
        %v2642 = vpop.f32.mrf.mxu0
        %v2643 = vadd.f32 0.0, %v2642
        %v2644 = vpop.f32.mrf.mxu0
        %2645 = vmatprep.mubr.f32.mxu0 0.0
        %2646 = vmatmul.mubr.f32.gmra.mxu0 %v1942
        %v2647 = vpop.f32.mrf.mxu0
        %v2648 = vadd.f32 0.0, %v2647
        %v2649 = vpop.f32.mrf.mxu0
        %2650 = vmatprep.mubr.f32.mxu0 0.0
        %2651 = vmatmul.mubr.f32.gmra.mxu0 %v1945
        %v2652 = vpop.f32.mrf.mxu0
        %v2653 = vadd.f32 0.0, %v2652
        %v2654 = vpop.f32.mrf.mxu0
        %2655 = vmatprep.mubr.f32.mxu0 0.0
        %2656 = vmatmul.mubr.f32.gmra.mxu0 %v1948
        %v2657 = vpop.f32.mrf.mxu0
        %v2658 = vadd.f32 0.0, %v2657
        %v2659 = vpop.f32.mrf.mxu0
        %2660 = vdwg.mxu0
        %v2661 = vmul.f32 %v1503, %v2613
        %v2662 = vmul.f32 %v1504, %v2618
        %v2663 = vmul.f32 %v1505, %v2623
        %v2664 = vmul.f32 %v1506, %v2628
        %v2665 = vmul.f32 %v1507, %v2633
        %v2666 = vmul.f32 %v1508, %v2638
        %v2667 = vmul.f32 %v1509, %v2643
        %v2668 = vmul.f32 %v1510, %v2648
        %v2669 = vmul.f32 %v1511, %v2653
        %v2670 = vmul.f32 %v1512, %v2658
        %s2671 = scalar_lea.vmem %s6, 2
        %v2672 = vld [vmem:[%s2671] sm:$0x1]
        %v2674 = vlaneseq
        %v2675 = vshrl.u32 %v2674, 7
        %v2676 = vsub.s32 0, %v2675
        %v2677 = vrot.slane %v2672, %v2676
        %v2679 = vadd.f32 %v2661, %v2677
        %v2680 = vadd.f32 %v2662, %v2677
        %v2681 = vadd.f32 %v2663, %v2677
        %v2682 = vadd.f32 %v2664, %v2677
        %v2683 = vadd.f32 %v2665, %v2677
        %v2684 = vadd.f32 %v2666, %v2677
        %v2685 = vadd.f32 %v2667, %v2677
        %v2686 = vadd.f32 %v2668, %v2677
        %v2687 = vadd.f32 %v2669, %v2677
        %v2688 = vadd.f32 %v2670, %v2677
        %v2689 = vmax.f32 %v2679, 0.0
        %v2690 = vmax.f32 %v2680, 0.0
        %v2691 = vmax.f32 %v2681, 0.0
        %v2692 = vmax.f32 %v2682, 0.0
        %v2693 = vmax.f32 %v2683, 0.0
        %v2694 = vmax.f32 %v2684, 0.0
        %v2695 = vmax.f32 %v2685, 0.0
        %v2696 = vmax.f32 %v2686, 0.0
        %v2697 = vmax.f32 %v2687, 0.0
        %v2698 = vmax.f32 %v2688, 0.0
        %v2699 = vpack.c.bf16 %v2690, %v2689
        %v2700 = vpack.c.bf16 %v2692, %v2691
        %v2701 = vpack.c.bf16 %v2694, %v2693
        %v2702 = vpack.c.bf16 %v2696, %v2695
        %v2703 = vpack.c.bf16 %v2698, %v2697
        %s2704 = scalar_lea.vmem %s7, 128
        %v2705 = vld [vmem:[%s2704] sm:$0xf]
        %v2706 = vld [vmem:[%s2704 + $0x4] sm:$0xf]
        %v2707 = vld [vmem:[%s2704 + $0x8] sm:$0xf]
        %v2708 = vld [vmem:[%s2704 + $0xc] sm:$0xf]
        %v2709 = vld [vmem:[%s2704 + $0x10] sm:$0xf]
        %v2710 = vld [vmem:[%s2704 + $0x14] sm:$0xf]
        %v2711 = vld [vmem:[%s2704 + $0x18] sm:$0xf]
        %v2712 = vld [vmem:[%s2704 + $0x1c] sm:$0xf]
        %v2713 = vld [vmem:[%s2704 + $0x20] sm:$0xf]
        %v2714 = vld [vmem:[%s2704 + $0x24] sm:$0xf]
        %v2715 = vld [vmem:[%s2704 + $0x28] sm:$0xf]
        %v2716 = vld [vmem:[%s2704 + $0x2c] sm:$0xf]
        %v2717 = vld [vmem:[%s2704 + $0x30] sm:$0xf]
        %v2718 = vld [vmem:[%s2704 + $0x34] sm:$0xf]
        %v2719 = vld [vmem:[%s2704 + $0x38] sm:$0xf]
        %v2720 = vld [vmem:[%s2704 + $0x3c] sm:$0xf]
        %v2737 = vunpack.c.l.b16 %v2705
        %v2738 = vunpack.c.l.b16 %v2706
        %v2739 = vunpack.c.l.b16 %v2707
        %v2740 = vunpack.c.l.b16 %v2708
        %v2741 = vunpack.c.l.b16 %v2709
        %v2742 = vunpack.c.l.b16 %v2710
        %v2743 = vunpack.c.l.b16 %v2711
        %v2744 = vunpack.c.l.b16 %v2712
        %v2745 = vunpack.c.l.b16 %v2713
        %v2746 = vunpack.c.l.b16 %v2714
        %v2747 = vunpack.c.l.b16 %v2715
        %v2748 = vunpack.c.l.b16 %v2716
        %v2749 = vunpack.c.l.b16 %v2717
        %v2750 = vunpack.c.l.b16 %v2718
        %v2751 = vunpack.c.l.b16 %v2719
        %v2752 = vunpack.c.l.b16 %v2720
        %v2753 = vpack.c.b16 %v2738, %v2737
        %v2754 = vpack.c.b16 %v2740, %v2739
        %v2755 = vpack.c.b16 %v2742, %v2741
        %v2756 = vpack.c.b16 %v2744, %v2743
        %v2757 = vpack.c.b16 %v2746, %v2745
        %v2758 = vpack.c.b16 %v2748, %v2747
        %v2759 = vpack.c.b16 %v2750, %v2749
        %v2760 = vpack.c.b16 %v2752, %v2751
        %2769 = vmatprep.subr.bf16.mxu0 0
        %2770 = vmatpush1.bf16.msra.mxu0 %v2760
        %2771 = vmatprep.subr.bf16.mxu0 0
        %2772 = vmatpush1.bf16.msra.mxu0 %v2759
        %2773 = vmatprep.subr.bf16.mxu0 0
        %2774 = vmatpush1.bf16.msra.mxu0 %v2758
        %2775 = vmatprep.subr.bf16.mxu0 0
        %2776 = vmatpush1.bf16.msra.mxu0 %v2757
        %2777 = vmatprep.subr.bf16.mxu0 0
        %2778 = vmatpush1.bf16.msra.mxu0 %v2756
        %2779 = vmatprep.subr.bf16.mxu0 0
        %2780 = vmatpush1.bf16.msra.mxu0 %v2755
        %2781 = vmatprep.subr.bf16.mxu0 0
        %2782 = vmatpush1.bf16.msra.mxu0 %v2754
        %2783 = vmatprep.subr.bf16.mxu0 0
        %2784 = vmatpush1.bf16.msra.mxu0 %v2753
        %2785 = vmatprep.subr.bf16.mxu0 0
        %2786 = vmatpush2.bf16.msra.mxu0 0
        %2787 = vmatprep.subr.bf16.mxu0 0
        %2788 = vmatpush2.bf16.msra.mxu0 0
        %2789 = vmatprep.subr.bf16.mxu0 0
        %2790 = vmatpush2.bf16.msra.mxu0 0
        %2791 = vmatprep.subr.bf16.mxu0 0
        %2792 = vmatpush2.bf16.msra.mxu0 0
        %2793 = vmatprep.subr.bf16.mxu0 0
        %2794 = vmatpush2.bf16.msra.mxu0 0
        %2795 = vmatprep.subr.bf16.mxu0 0
        %2796 = vmatpush2.bf16.msra.mxu0 0
        %2797 = vmatprep.subr.bf16.mxu0 0
        %2798 = vmatpush2.bf16.msra.mxu0 0
        %2799 = vmatprep.subr.bf16.mxu0 0
        %2800 = vmatpush2.bf16.msra.mxu0 0
        %2801 = vmatprep.mubr.bf16.mxu0 0
        %2802 = vmatmul.mubr.bf16.gmra.mxu0 %v2699
        %v2803 = vpop.f32.mrf.mxu0
        %v2804 = vadd.f32 0.0, %v2803
        %v2805 = vpop.f32.mrf.mxu0
        %v2806 = vpop.f32.mrf.mxu0
        %v2807 = vadd.f32 0.0, %v2806
        %v2808 = vpop.f32.mrf.mxu0
        %2809 = vmatprep.mubr.bf16.mxu0 0
        %2810 = vmatmul.mubr.bf16.gmra.mxu0 %v2700
        %v2811 = vpop.f32.mrf.mxu0
        %v2812 = vadd.f32 0.0, %v2811
        %v2813 = vpop.f32.mrf.mxu0
        %v2814 = vpop.f32.mrf.mxu0
        %v2815 = vadd.f32 0.0, %v2814
        %v2816 = vpop.f32.mrf.mxu0
        %2817 = vmatprep.mubr.bf16.mxu0 0
        %2818 = vmatmul.mubr.bf16.gmra.mxu0 %v2701
        %v2819 = vpop.f32.mrf.mxu0
        %v2820 = vadd.f32 0.0, %v2819
        %v2821 = vpop.f32.mrf.mxu0
        %v2822 = vpop.f32.mrf.mxu0
        %v2823 = vadd.f32 0.0, %v2822
        %v2824 = vpop.f32.mrf.mxu0
        %2825 = vmatprep.mubr.bf16.mxu0 0
        %2826 = vmatmul.mubr.bf16.gmra.mxu0 %v2702
        %v2827 = vpop.f32.mrf.mxu0
        %v2828 = vadd.f32 0.0, %v2827
        %v2829 = vpop.f32.mrf.mxu0
        %v2830 = vpop.f32.mrf.mxu0
        %v2831 = vadd.f32 0.0, %v2830
        %v2832 = vpop.f32.mrf.mxu0
        %2833 = vmatprep.mubr.bf16.mxu0 0
        %2834 = vmatmul.mubr.bf16.gmra.mxu0 %v2703
        %v2835 = vpop.f32.mrf.mxu0
        %v2836 = vadd.f32 0.0, %v2835
        %v2837 = vpop.f32.mrf.mxu0
        %v2838 = vpop.f32.mrf.mxu0
        %v2839 = vadd.f32 0.0, %v2838
        %v2840 = vpop.f32.mrf.mxu0
        %2841 = vdwg.mxu0
        %v2842 = vadd.f32 %v2505, %v2804
        %v2843 = vadd.f32 %v2508, %v2807
        %v2844 = vadd.f32 %v2513, %v2812
        %v2845 = vadd.f32 %v2516, %v2815
        %v2846 = vadd.f32 %v2521, %v2820
        %v2847 = vadd.f32 %v2524, %v2823
        %v2848 = vadd.f32 %v2529, %v2828
        %v2849 = vadd.f32 %v2532, %v2831
        %v2850 = vadd.f32 %v2537, %v2836
        %v2851 = vadd.f32 %v2540, %v2839
        %v2852 = vld [vmem:[#allocation10] sm:$0x1]
        %v2854 = vlaneseq
        %v2855 = vshrl.u32 %v2854, 7
        %v2856 = vsub.s32 0, %v2855
        %v2857 = vrot.slane %v2852, %v2856
        %v2859 = vadd.f32 %v2842, %v2857
        %v2860 = vadd.f32 %v2843, %v2857
        %v2861 = vadd.f32 %v2844, %v2857
        %v2862 = vadd.f32 %v2845, %v2857
        %v2863 = vadd.f32 %v2846, %v2857
        %v2864 = vadd.f32 %v2847, %v2857
        %v2865 = vadd.f32 %v2848, %v2857
        %v2866 = vadd.f32 %v2849, %v2857
        %v2867 = vadd.f32 %v2850, %v2857
        %v2868 = vadd.f32 %v2851, %v2857
        %v2869 = vld [vmem:[%s9] sm:$0xff]
        %v2870 = vld [vmem:[%s9 + $0x8] sm:$0xff]
        %v2871 = vld [vmem:[%s9 + $0x10] sm:$0xff]
        %v2872 = vld [vmem:[%s9 + $0x18] sm:$0xff]
        %v2873 = vld [vmem:[%s9 + $0x20] sm:$0xff]
        %v2874 = vld [vmem:[%s9 + $0x28] sm:$0xff]
        %v2875 = vld [vmem:[%s9 + $0x30] sm:$0xff]
        %v2876 = vld [vmem:[%s9 + $0x38] sm:$0xff]
        %v2877 = vld [vmem:[%s9 + $0x40] sm:$0xff]
        %v2878 = vld [vmem:[%s9 + $0x48] sm:$0xff]
        %v2879 = vld [vmem:[%s9 + $0x50] sm:$0xff]
        %v2880 = vld [vmem:[%s9 + $0x58] sm:$0xff]
        %v2881 = vld [vmem:[%s9 + $0x60] sm:$0xff]
        %v2882 = vld [vmem:[%s9 + $0x68] sm:$0xff]
        %v2883 = vld [vmem:[%s9 + $0x70] sm:$0xff]
        %v2884 = vld [vmem:[%s9 + $0x78] sm:$0xff]
        %2885 = vmatprep.subr.mxu0 0.0
        %2886 = vmatpush1.msra.mxu0 %v2884
        %2887 = vmatprep.subr.mxu0 0.0
        %2888 = vmatpush1.msra.mxu0 %v2883
        %2889 = vmatprep.subr.mxu0 0.0
        %2890 = vmatpush1.msra.mxu0 %v2882
        %2891 = vmatprep.subr.mxu0 0.0
        %2892 = vmatpush1.msra.mxu0 %v2881
        %2893 = vmatprep.subr.mxu0 0.0
        %2894 = vmatpush1.msra.mxu0 %v2880
        %2895 = vmatprep.subr.mxu0 0.0
        %2896 = vmatpush1.msra.mxu0 %v2879
        %2897 = vmatprep.subr.mxu0 0.0
        %2898 = vmatpush1.msra.mxu0 %v2878
        %2899 = vmatprep.subr.mxu0 0.0
        %2900 = vmatpush1.msra.mxu0 %v2877
        %2901 = vmatprep.subr.mxu0 0.0
        %2902 = vmatpush1.msra.mxu0 %v2876
        %2903 = vmatprep.subr.mxu0 0.0
        %2904 = vmatpush1.msra.mxu0 %v2875
        %2905 = vmatprep.subr.mxu0 0.0
        %2906 = vmatpush1.msra.mxu0 %v2874
        %2907 = vmatprep.subr.mxu0 0.0
        %2908 = vmatpush1.msra.mxu0 %v2873
        %2909 = vmatprep.subr.mxu0 0.0
        %2910 = vmatpush1.msra.mxu0 %v2872
        %2911 = vmatprep.subr.mxu0 0.0
        %2912 = vmatpush1.msra.mxu0 %v2871
        %2913 = vmatprep.subr.mxu0 0.0
        %2914 = vmatpush1.msra.mxu0 %v2870
        %2915 = vmatprep.subr.mxu0 0.0
        %2916 = vmatpush1.msra.mxu0 %v2869
        %2917 = vmatprep.subr.mxu0 0.0
        %2918 = vmatpush2.msra.mxu0 0.0
        %2919 = vmatprep.subr.mxu0 0.0
        %2920 = vmatpush2.msra.mxu0 0.0
        %2921 = vmatprep.subr.mxu0 0.0
        %2922 = vmatpush2.msra.mxu0 0.0
        %2923 = vmatprep.subr.mxu0 0.0
        %2924 = vmatpush2.msra.mxu0 0.0
        %2925 = vmatprep.subr.mxu0 0.0
        %2926 = vmatpush2.msra.mxu0 0.0
        %2927 = vmatprep.subr.mxu0 0.0
        %2928 = vmatpush2.msra.mxu0 0.0
        %2929 = vmatprep.subr.mxu0 0.0
        %2930 = vmatpush2.msra.mxu0 0.0
        %2931 = vmatprep.subr.mxu0 0.0
        %2932 = vmatpush2.msra.mxu0 0.0
        %2933 = vmatprep.subr.mxu0 0.0
        %2934 = vmatpush2.msra.mxu0 0.0
        %2935 = vmatprep.subr.mxu0 0.0
        %2936 = vmatpush2.msra.mxu0 0.0
        %2937 = vmatprep.subr.mxu0 0.0
        %2938 = vmatpush2.msra.mxu0 0.0
        %2939 = vmatprep.subr.mxu0 0.0
        %2940 = vmatpush2.msra.mxu0 0.0
        %2941 = vmatprep.subr.mxu0 0.0
        %2942 = vmatpush2.msra.mxu0 0.0
        %2943 = vmatprep.subr.mxu0 0.0
        %2944 = vmatpush2.msra.mxu0 0.0
        %2945 = vmatprep.subr.mxu0 0.0
        %2946 = vmatpush2.msra.mxu0 0.0
        %2947 = vmatprep.subr.mxu0 0.0
        %2948 = vmatpush2.msra.mxu0 0.0
        %2949 = vmatprep.mubr.f32.mxu0 0.0
        %2950 = vmatmul.mubr.f32.gmra.mxu0 %v2859
        %v2951 = vpop.f32.mrf.mxu0
        %v2952 = vadd.f32 0.0, %v2951
        %v2953 = vpop.f32.mrf.mxu0
        %2954 = vmatprep.mubr.f32.mxu0 0.0
        %2955 = vmatmul.mubr.f32.gmra.mxu0 %v2860
        %v2956 = vpop.f32.mrf.mxu0
        %v2957 = vadd.f32 0.0, %v2956
        %v2958 = vpop.f32.mrf.mxu0
        %2959 = vmatprep.mubr.f32.mxu0 0.0
        %2960 = vmatmul.mubr.f32.gmra.mxu0 %v2861
        %v2961 = vpop.f32.mrf.mxu0
        %v2962 = vadd.f32 0.0, %v2961
        %v2963 = vpop.f32.mrf.mxu0
        %2964 = vmatprep.mubr.f32.mxu0 0.0
        %2965 = vmatmul.mubr.f32.gmra.mxu0 %v2862
        %v2966 = vpop.f32.mrf.mxu0
        %v2967 = vadd.f32 0.0, %v2966
        %v2968 = vpop.f32.mrf.mxu0
        %2969 = vmatprep.mubr.f32.mxu0 0.0
        %2970 = vmatmul.mubr.f32.gmra.mxu0 %v2863
        %v2971 = vpop.f32.mrf.mxu0
        %v2972 = vadd.f32 0.0, %v2971
        %v2973 = vpop.f32.mrf.mxu0
        %2974 = vmatprep.mubr.f32.mxu0 0.0
        %2975 = vmatmul.mubr.f32.gmra.mxu0 %v2864
        %v2976 = vpop.f32.mrf.mxu0
        %v2977 = vadd.f32 0.0, %v2976
        %v2978 = vpop.f32.mrf.mxu0
        %2979 = vmatprep.mubr.f32.mxu0 0.0
        %2980 = vmatmul.mubr.f32.gmra.mxu0 %v2865
        %v2981 = vpop.f32.mrf.mxu0
        %v2982 = vadd.f32 0.0, %v2981
        %v2983 = vpop.f32.mrf.mxu0
        %2984 = vmatprep.mubr.f32.mxu0 0.0
        %2985 = vmatmul.mubr.f32.gmra.mxu0 %v2866
        %v2986 = vpop.f32.mrf.mxu0
        %v2987 = vadd.f32 0.0, %v2986
        %v2988 = vpop.f32.mrf.mxu0
        %2989 = vmatprep.mubr.f32.mxu0 0.0
        %2990 = vmatmul.mubr.f32.gmra.mxu0 %v2867
        %v2991 = vpop.f32.mrf.mxu0
        %v2992 = vadd.f32 0.0, %v2991
        %v2993 = vpop.f32.mrf.mxu0
        %2994 = vmatprep.mubr.f32.mxu0 0.0
        %2995 = vmatmul.mubr.f32.gmra.mxu0 %v2868
        %v2996 = vpop.f32.mrf.mxu0
        %v2997 = vadd.f32 0.0, %v2996
        %v2998 = vpop.f32.mrf.mxu0
        %2999 = vdwg.mxu0
        %v3000 = vld [vmem:[%s10] sm:$0xff]
        %v3001 = vld [vmem:[%s10 + $0x8] sm:$0xff]
        %v3003 = vsel %vm1101, %v2952, 0
        %v3006 = vsel %vm1101, %v2957, 0
        %v3009 = vsel %vm1101, %v2962, 0
        %v3012 = vsel %vm1101, %v2967, 0
        %v3015 = vsel %vm1101, %v2972, 0
        %v3018 = vsel %vm1101, %v2977, 0
        %v3021 = vsel %vm1101, %v2982, 0
        %v3024 = vsel %vm1101, %v2987, 0
        %v3027 = vsel %vm1101, %v2992, 0
        %v3030 = vsel %vm1101, %v2997, 0
        %3032 = vmatprep.subr.mxu0 0.0
        %3033 = vmatpush1.msra.mxu0 0.0
        %3034 = vmatprep.subr.mxu0 0.0
        %3035 = vmatpush1.msra.mxu0 0.0
        %3036 = vmatprep.subr.mxu0 0.0
        %3037 = vmatpush1.msra.mxu0 0.0
        %3038 = vmatprep.subr.mxu0 0.0
        %3039 = vmatpush1.msra.mxu0 0.0
        %3040 = vmatprep.subr.mxu0 0.0
        %3041 = vmatpush1.msra.mxu0 0.0
        %3042 = vmatprep.subr.mxu0 0.0
        %3043 = vmatpush1.msra.mxu0 0.0
        %3044 = vmatprep.subr.mxu0 0.0
        %3045 = vmatpush1.msra.mxu0 0.0
        %3046 = vmatprep.subr.mxu0 0.0
        %3047 = vmatpush1.msra.mxu0 0.0
        %3048 = vmatprep.subr.mxu0 0.0
        %3049 = vmatpush1.msra.mxu0 0.0
        %3050 = vmatprep.subr.mxu0 0.0
        %3051 = vmatpush1.msra.mxu0 0.0
        %3052 = vmatprep.subr.mxu0 0.0
        %3053 = vmatpush1.msra.mxu0 0.0
        %3054 = vmatprep.subr.mxu0 0.0
        %3055 = vmatpush1.msra.mxu0 0.0
        %3056 = vmatprep.subr.mxu0 0.0
        %3057 = vmatpush1.msra.mxu0 0.0
        %3058 = vmatprep.subr.mxu0 0.0
        %3059 = vmatpush1.msra.mxu0 0.0
        %3060 = vmatprep.subr.mxu0 0.0
        %3061 = vmatpush1.msra.mxu0 %v3001
        %3062 = vmatprep.subr.mxu0 0.0
        %3063 = vmatpush1.msra.mxu0 %v3000
        %3064 = vmatprep.subr.mxu0 0.0
        %3065 = vmatpush2.msra.mxu0 0.0
        %3066 = vmatprep.subr.mxu0 0.0
        %3067 = vmatpush2.msra.mxu0 0.0
        %3068 = vmatprep.subr.mxu0 0.0
        %3069 = vmatpush2.msra.mxu0 0.0
        %3070 = vmatprep.subr.mxu0 0.0
        %3071 = vmatpush2.msra.mxu0 0.0
        %3072 = vmatprep.subr.mxu0 0.0
        %3073 = vmatpush2.msra.mxu0 0.0
        %3074 = vmatprep.subr.mxu0 0.0
        %3075 = vmatpush2.msra.mxu0 0.0
        %3076 = vmatprep.subr.mxu0 0.0
        %3077 = vmatpush2.msra.mxu0 0.0
        %3078 = vmatprep.subr.mxu0 0.0
        %3079 = vmatpush2.msra.mxu0 0.0
        %3080 = vmatprep.subr.mxu0 0.0
        %3081 = vmatpush2.msra.mxu0 0.0
        %3082 = vmatprep.subr.mxu0 0.0
        %3083 = vmatpush2.msra.mxu0 0.0
        %3084 = vmatprep.subr.mxu0 0.0
        %3085 = vmatpush2.msra.mxu0 0.0
        %3086 = vmatprep.subr.mxu0 0.0
        %3087 = vmatpush2.msra.mxu0 0.0
        %3088 = vmatprep.subr.mxu0 0.0
        %3089 = vmatpush2.msra.mxu0 0.0
        %3090 = vmatprep.subr.mxu0 0.0
        %3091 = vmatpush2.msra.mxu0 0.0
        %3092 = vmatprep.subr.mxu0 0.0
        %3093 = vmatpush2.msra.mxu0 0.0
        %3094 = vmatprep.subr.mxu0 0.0
        %3095 = vmatpush2.msra.mxu0 0.0
        %3096 = vmatprep.mubr.f32.mxu0 0.0
        %3097 = vmatmul.mubr.f32.gmra.mxu0 %v3003
        %v3098 = vpop.f32.mrf.mxu0
        %v3099 = vadd.f32 0.0, %v3098
        %v3100 = vpop.f32.mrf.mxu0
        %3101 = vmatprep.mubr.f32.mxu0 0.0
        %3102 = vmatmul.mubr.f32.gmra.mxu0 %v3006
        %v3103 = vpop.f32.mrf.mxu0
        %v3104 = vadd.f32 0.0, %v3103
        %v3105 = vpop.f32.mrf.mxu0
        %3106 = vmatprep.mubr.f32.mxu0 0.0
        %3107 = vmatmul.mubr.f32.gmra.mxu0 %v3009
        %v3108 = vpop.f32.mrf.mxu0
        %v3109 = vadd.f32 0.0, %v3108
        %v3110 = vpop.f32.mrf.mxu0
        %3111 = vmatprep.mubr.f32.mxu0 0.0
        %3112 = vmatmul.mubr.f32.gmra.mxu0 %v3012
        %v3113 = vpop.f32.mrf.mxu0
        %v3114 = vadd.f32 0.0, %v3113
        %v3115 = vpop.f32.mrf.mxu0
        %3116 = vmatprep.mubr.f32.mxu0 0.0
        %3117 = vmatmul.mubr.f32.gmra.mxu0 %v3015
        %v3118 = vpop.f32.mrf.mxu0
        %v3119 = vadd.f32 0.0, %v3118
        %v3120 = vpop.f32.mrf.mxu0
        %3121 = vmatprep.mubr.f32.mxu0 0.0
        %3122 = vmatmul.mubr.f32.gmra.mxu0 %v3018
        %v3123 = vpop.f32.mrf.mxu0
        %v3124 = vadd.f32 0.0, %v3123
        %v3125 = vpop.f32.mrf.mxu0
        %3126 = vmatprep.mubr.f32.mxu0 0.0
        %3127 = vmatmul.mubr.f32.gmra.mxu0 %v3021
        %v3128 = vpop.f32.mrf.mxu0
        %v3129 = vadd.f32 0.0, %v3128
        %v3130 = vpop.f32.mrf.mxu0
        %3131 = vmatprep.mubr.f32.mxu0 0.0
        %3132 = vmatmul.mubr.f32.gmra.mxu0 %v3024
        %v3133 = vpop.f32.mrf.mxu0
        %v3134 = vadd.f32 0.0, %v3133
        %v3135 = vpop.f32.mrf.mxu0
        %3136 = vmatprep.mubr.f32.mxu0 0.0
        %3137 = vmatmul.mubr.f32.gmra.mxu0 %v3027
        %v3138 = vpop.f32.mrf.mxu0
        %v3139 = vadd.f32 0.0, %v3138
        %v3140 = vpop.f32.mrf.mxu0
        %3141 = vmatprep.mubr.f32.mxu0 0.0
        %3142 = vmatmul.mubr.f32.gmra.mxu0 %v3030
        %v3143 = vpop.f32.mrf.mxu0
        %v3144 = vadd.f32 0.0, %v3143
        %v3145 = vpop.f32.mrf.mxu0
        %3146 = vdwg.mxu0
        %v3147 = vsub.f32 %v2859, %v3099
        %v3148 = vsub.f32 %v2860, %v3104
        %v3149 = vsub.f32 %v2861, %v3109
        %v3150 = vsub.f32 %v2862, %v3114
        %v3151 = vsub.f32 %v2863, %v3119
        %v3152 = vsub.f32 %v2864, %v3124
        %v3153 = vsub.f32 %v2865, %v3129
        %v3154 = vsub.f32 %v2866, %v3134
        %v3155 = vsub.f32 %v2867, %v3139
        %v3156 = vsub.f32 %v2868, %v3144
        %v3157 = vmul.f32 %v3147, %v3147
        %v3158 = vmul.f32 %v3148, %v3148
        %v3159 = vmul.f32 %v3149, %v3149
        %v3160 = vmul.f32 %v3150, %v3150
        %v3161 = vmul.f32 %v3151, %v3151
        %v3162 = vmul.f32 %v3152, %v3152
        %v3163 = vmul.f32 %v3153, %v3153
        %v3164 = vmul.f32 %v3154, %v3154
        %v3165 = vmul.f32 %v3155, %v3155
        %v3166 = vmul.f32 %v3156, %v3156
        %3167 = vmatprep.subr.mxu0 0.0
        %3168 = vmatpush1.msra.mxu0 %v2884
        %3169 = vmatprep.subr.mxu0 0.0
        %3170 = vmatpush1.msra.mxu0 %v2883
        %3171 = vmatprep.subr.mxu0 0.0
        %3172 = vmatpush1.msra.mxu0 %v2882
        %3173 = vmatprep.subr.mxu0 0.0
        %3174 = vmatpush1.msra.mxu0 %v2881
        %3175 = vmatprep.subr.mxu0 0.0
        %3176 = vmatpush1.msra.mxu0 %v2880
        %3177 = vmatprep.subr.mxu0 0.0
        %3178 = vmatpush1.msra.mxu0 %v2879
        %3179 = vmatprep.subr.mxu0 0.0
        %3180 = vmatpush1.msra.mxu0 %v2878
        %3181 = vmatprep.subr.mxu0 0.0
        %3182 = vmatpush1.msra.mxu0 %v2877
        %3183 = vmatprep.subr.mxu0 0.0
        %3184 = vmatpush1.msra.mxu0 %v2876
        %3185 = vmatprep.subr.mxu0 0.0
        %3186 = vmatpush1.msra.mxu0 %v2875
        %3187 = vmatprep.subr.mxu0 0.0
        %3188 = vmatpush1.msra.mxu0 %v2874
        %3189 = vmatprep.subr.mxu0 0.0
        %3190 = vmatpush1.msra.mxu0 %v2873
        %3191 = vmatprep.subr.mxu0 0.0
        %3192 = vmatpush1.msra.mxu0 %v2872
        %3193 = vmatprep.subr.mxu0 0.0
        %3194 = vmatpush1.msra.mxu0 %v2871
        %3195 = vmatprep.subr.mxu0 0.0
        %3196 = vmatpush1.msra.mxu0 %v2870
        %3197 = vmatprep.subr.mxu0 0.0
        %3198 = vmatpush1.msra.mxu0 %v2869
        %3199 = vmatprep.subr.mxu0 0.0
        %3200 = vmatpush2.msra.mxu0 0.0
        %3201 = vmatprep.subr.mxu0 0.0
        %3202 = vmatpush2.msra.mxu0 0.0
        %3203 = vmatprep.subr.mxu0 0.0
        %3204 = vmatpush2.msra.mxu0 0.0
        %3205 = vmatprep.subr.mxu0 0.0
        %3206 = vmatpush2.msra.mxu0 0.0
        %3207 = vmatprep.subr.mxu0 0.0
        %3208 = vmatpush2.msra.mxu0 0.0
        %3209 = vmatprep.subr.mxu0 0.0
        %3210 = vmatpush2.msra.mxu0 0.0
        %3211 = vmatprep.subr.mxu0 0.0
        %3212 = vmatpush2.msra.mxu0 0.0
        %3213 = vmatprep.subr.mxu0 0.0
        %3214 = vmatpush2.msra.mxu0 0.0
        %3215 = vmatprep.subr.mxu0 0.0
        %3216 = vmatpush2.msra.mxu0 0.0
        %3217 = vmatprep.subr.mxu0 0.0
        %3218 = vmatpush2.msra.mxu0 0.0
        %3219 = vmatprep.subr.mxu0 0.0
        %3220 = vmatpush2.msra.mxu0 0.0
        %3221 = vmatprep.subr.mxu0 0.0
        %3222 = vmatpush2.msra.mxu0 0.0
        %3223 = vmatprep.subr.mxu0 0.0
        %3224 = vmatpush2.msra.mxu0 0.0
        %3225 = vmatprep.subr.mxu0 0.0
        %3226 = vmatpush2.msra.mxu0 0.0
        %3227 = vmatprep.subr.mxu0 0.0
        %3228 = vmatpush2.msra.mxu0 0.0
        %3229 = vmatprep.subr.mxu0 0.0
        %3230 = vmatpush2.msra.mxu0 0.0
        %3231 = vmatprep.mubr.f32.mxu0 0.0
        %3232 = vmatmul.mubr.f32.gmra.mxu0 %v3157
        %v3233 = vpop.f32.mrf.mxu0
        %v3234 = vadd.f32 1e-05, %v3233
        %v3235 = vpop.f32.mrf.mxu0
        %3236 = vmatprep.mubr.f32.mxu0 0.0
        %3237 = vmatmul.mubr.f32.gmra.mxu0 %v3158
        %v3238 = vpop.f32.mrf.mxu0
        %v3239 = vadd.f32 1e-05, %v3238
        %v3240 = vpop.f32.mrf.mxu0
        %3241 = vmatprep.mubr.f32.mxu0 0.0
        %3242 = vmatmul.mubr.f32.gmra.mxu0 %v3159
        %v3243 = vpop.f32.mrf.mxu0
        %v3244 = vadd.f32 1e-05, %v3243
        %v3245 = vpop.f32.mrf.mxu0
        %3246 = vmatprep.mubr.f32.mxu0 0.0
        %3247 = vmatmul.mubr.f32.gmra.mxu0 %v3160
        %v3248 = vpop.f32.mrf.mxu0
        %v3249 = vadd.f32 1e-05, %v3248
        %v3250 = vpop.f32.mrf.mxu0
        %3251 = vmatprep.mubr.f32.mxu0 0.0
        %3252 = vmatmul.mubr.f32.gmra.mxu0 %v3161
        %v3253 = vpop.f32.mrf.mxu0
        %v3254 = vadd.f32 1e-05, %v3253
        %v3255 = vpop.f32.mrf.mxu0
        %3256 = vmatprep.mubr.f32.mxu0 0.0
        %3257 = vmatmul.mubr.f32.gmra.mxu0 %v3162
        %v3258 = vpop.f32.mrf.mxu0
        %v3259 = vadd.f32 1e-05, %v3258
        %v3260 = vpop.f32.mrf.mxu0
        %3261 = vmatprep.mubr.f32.mxu0 0.0
        %3262 = vmatmul.mubr.f32.gmra.mxu0 %v3163
        %v3263 = vpop.f32.mrf.mxu0
        %v3264 = vadd.f32 1e-05, %v3263
        %v3265 = vpop.f32.mrf.mxu0
        %3266 = vmatprep.mubr.f32.mxu0 0.0
        %3267 = vmatmul.mubr.f32.gmra.mxu0 %v3164
        %v3268 = vpop.f32.mrf.mxu0
        %v3269 = vadd.f32 1e-05, %v3268
        %v3270 = vpop.f32.mrf.mxu0
        %3271 = vmatprep.mubr.f32.mxu0 0.0
        %3272 = vmatmul.mubr.f32.gmra.mxu0 %v3165
        %v3273 = vpop.f32.mrf.mxu0
        %v3274 = vadd.f32 1e-05, %v3273
        %v3275 = vpop.f32.mrf.mxu0
        %3276 = vmatprep.mubr.f32.mxu0 0.0
        %3277 = vmatmul.mubr.f32.gmra.mxu0 %v3166
        %v3278 = vpop.f32.mrf.mxu0
        %v3279 = vadd.f32 1e-05, %v3278
        %v3280 = vpop.f32.mrf.mxu0
        %3281 = vdwg.mxu0
        %v3282 = vrsqrt.pop %v3234
        %v3283 = vrsqrt.pop %v3239
        %v3284 = vrsqrt.pop %v3244
        %v3285 = vrsqrt.pop %v3249
        %v3286 = vrsqrt.pop %v3254
        %v3287 = vrsqrt.pop %v3259
        %v3288 = vrsqrt.pop %v3264
        %v3289 = vrsqrt.pop %v3269
        %v3290 = vrsqrt.pop %v3274
        %v3291 = vrsqrt.pop %v3279
        %v3292 = vld [vmem:[%s11] sm:$0xff]
        %v3293 = vld [vmem:[%s11 + $0x8] sm:$0xff]
        %v3295 = vsel %vm1101, %v3282, 0
        %v3298 = vsel %vm1101, %v3283, 0
        %v3301 = vsel %vm1101, %v3284, 0
        %v3304 = vsel %vm1101, %v3285, 0
        %v3307 = vsel %vm1101, %v3286, 0
        %v3310 = vsel %vm1101, %v3287, 0
        %v3313 = vsel %vm1101, %v3288, 0
        %v3316 = vsel %vm1101, %v3289, 0
        %v3319 = vsel %vm1101, %v3290, 0
        %v3322 = vsel %vm1101, %v3291, 0
        %3324 = vmatprep.subr.mxu0 0.0
        %3325 = vmatpush1.msra.mxu0 0.0
        %3326 = vmatprep.subr.mxu0 0.0
        %3327 = vmatpush1.msra.mxu0 0.0
        %3328 = vmatprep.subr.mxu0 0.0
        %3329 = vmatpush1.msra.mxu0 0.0
        %3330 = vmatprep.subr.mxu0 0.0
        %3331 = vmatpush1.msra.mxu0 0.0
        %3332 = vmatprep.subr.mxu0 0.0
        %3333 = vmatpush1.msra.mxu0 0.0
        %3334 = vmatprep.subr.mxu0 0.0
        %3335 = vmatpush1.msra.mxu0 0.0
        %3336 = vmatprep.subr.mxu0 0.0
        %3337 = vmatpush1.msra.mxu0 0.0
        %3338 = vmatprep.subr.mxu0 0.0
        %3339 = vmatpush1.msra.mxu0 0.0
        %3340 = vmatprep.subr.mxu0 0.0
        %3341 = vmatpush1.msra.mxu0 0.0
        %3342 = vmatprep.subr.mxu0 0.0
        %3343 = vmatpush1.msra.mxu0 0.0
        %3344 = vmatprep.subr.mxu0 0.0
        %3345 = vmatpush1.msra.mxu0 0.0
        %3346 = vmatprep.subr.mxu0 0.0
        %3347 = vmatpush1.msra.mxu0 0.0
        %3348 = vmatprep.subr.mxu0 0.0
        %3349 = vmatpush1.msra.mxu0 0.0
        %3350 = vmatprep.subr.mxu0 0.0
        %3351 = vmatpush1.msra.mxu0 0.0
        %3352 = vmatprep.subr.mxu0 0.0
        %3353 = vmatpush1.msra.mxu0 %v3293
        %3354 = vmatprep.subr.mxu0 0.0
        %3355 = vmatpush1.msra.mxu0 %v3292
        %3356 = vmatprep.subr.mxu0 0.0
        %3357 = vmatpush2.msra.mxu0 0.0
        %3358 = vmatprep.subr.mxu0 0.0
        %3359 = vmatpush2.msra.mxu0 0.0
        %3360 = vmatprep.subr.mxu0 0.0
        %3361 = vmatpush2.msra.mxu0 0.0
        %3362 = vmatprep.subr.mxu0 0.0
        %3363 = vmatpush2.msra.mxu0 0.0
        %3364 = vmatprep.subr.mxu0 0.0
        %3365 = vmatpush2.msra.mxu0 0.0
        %3366 = vmatprep.subr.mxu0 0.0
        %3367 = vmatpush2.msra.mxu0 0.0
        %3368 = vmatprep.subr.mxu0 0.0
        %3369 = vmatpush2.msra.mxu0 0.0
        %3370 = vmatprep.subr.mxu0 0.0
        %3371 = vmatpush2.msra.mxu0 0.0
        %3372 = vmatprep.subr.mxu0 0.0
        %3373 = vmatpush2.msra.mxu0 0.0
        %3374 = vmatprep.subr.mxu0 0.0
        %3375 = vmatpush2.msra.mxu0 0.0
        %3376 = vmatprep.subr.mxu0 0.0
        %3377 = vmatpush2.msra.mxu0 0.0
        %3378 = vmatprep.subr.mxu0 0.0
        %3379 = vmatpush2.msra.mxu0 0.0
        %3380 = vmatprep.subr.mxu0 0.0
        %3381 = vmatpush2.msra.mxu0 0.0
        %3382 = vmatprep.subr.mxu0 0.0
        %3383 = vmatpush2.msra.mxu0 0.0
        %3384 = vmatprep.subr.mxu0 0.0
        %3385 = vmatpush2.msra.mxu0 0.0
        %3386 = vmatprep.subr.mxu0 0.0
        %3387 = vmatpush2.msra.mxu0 0.0
        %3388 = vmatprep.mubr.f32.mxu0 0.0
        %3389 = vmatmul.mubr.f32.gmra.mxu0 %v3295
        %v3390 = vpop.f32.mrf.mxu0
        %v3391 = vadd.f32 0.0, %v3390
        %v3392 = vpop.f32.mrf.mxu0
        %3393 = vmatprep.mubr.f32.mxu0 0.0
        %3394 = vmatmul.mubr.f32.gmra.mxu0 %v3298
        %v3395 = vpop.f32.mrf.mxu0
        %v3396 = vadd.f32 0.0, %v3395
        %v3397 = vpop.f32.mrf.mxu0
        %3398 = vmatprep.mubr.f32.mxu0 0.0
        %3399 = vmatmul.mubr.f32.gmra.mxu0 %v3301
        %v3400 = vpop.f32.mrf.mxu0
        %v3401 = vadd.f32 0.0, %v3400
        %v3402 = vpop.f32.mrf.mxu0
        %3403 = vmatprep.mubr.f32.mxu0 0.0
        %3404 = vmatmul.mubr.f32.gmra.mxu0 %v3304
        %v3405 = vpop.f32.mrf.mxu0
        %v3406 = vadd.f32 0.0, %v3405
        %v3407 = vpop.f32.mrf.mxu0
        %3408 = vmatprep.mubr.f32.mxu0 0.0
        %3409 = vmatmul.mubr.f32.gmra.mxu0 %v3307
        %v3410 = vpop.f32.mrf.mxu0
        %v3411 = vadd.f32 0.0, %v3410
        %v3412 = vpop.f32.mrf.mxu0
        %3413 = vmatprep.mubr.f32.mxu0 0.0
        %3414 = vmatmul.mubr.f32.gmra.mxu0 %v3310
        %v3415 = vpop.f32.mrf.mxu0
        %v3416 = vadd.f32 0.0, %v3415
        %v3417 = vpop.f32.mrf.mxu0
        %3418 = vmatprep.mubr.f32.mxu0 0.0
        %3419 = vmatmul.mubr.f32.gmra.mxu0 %v3313
        %v3420 = vpop.f32.mrf.mxu0
        %v3421 = vadd.f32 0.0, %v3420
        %v3422 = vpop.f32.mrf.mxu0
        %3423 = vmatprep.mubr.f32.mxu0 0.0
        %3424 = vmatmul.mubr.f32.gmra.mxu0 %v3316
        %v3425 = vpop.f32.mrf.mxu0
        %v3426 = vadd.f32 0.0, %v3425
        %v3427 = vpop.f32.mrf.mxu0
        %3428 = vmatprep.mubr.f32.mxu0 0.0
        %3429 = vmatmul.mubr.f32.gmra.mxu0 %v3319
        %v3430 = vpop.f32.mrf.mxu0
        %v3431 = vadd.f32 0.0, %v3430
        %v3432 = vpop.f32.mrf.mxu0
        %3433 = vmatprep.mubr.f32.mxu0 0.0
        %3434 = vmatmul.mubr.f32.gmra.mxu0 %v3322
        %v3435 = vpop.f32.mrf.mxu0
        %v3436 = vadd.f32 0.0, %v3435
        %v3437 = vpop.f32.mrf.mxu0
        %3438 = vdwg.mxu0
        %v3439 = vmul.f32 %v3147, %v3391
        %v3440 = vmul.f32 %v3148, %v3396
        %v3441 = vmul.f32 %v3149, %v3401
        %v3442 = vmul.f32 %v3150, %v3406
        %v3443 = vmul.f32 %v3151, %v3411
        %v3444 = vmul.f32 %v3152, %v3416
        %v3445 = vmul.f32 %v3153, %v3421
        %v3446 = vmul.f32 %v3154, %v3426
        %v3447 = vmul.f32 %v3155, %v3431
        %v3448 = vmul.f32 %v3156, %v3436
        %v3449 = vld [vmem:[%s12] sm:$0x1]
        %v3451 = vlaneseq
        %v3452 = vshrl.u32 %v3451, 7
        %v3453 = vsub.s32 0, %v3452
        %v3454 = vrot.slane %v3449, %v3453
        %v3456 = vadd.f32 %v3439, %v3454
        %v3457 = vadd.f32 %v3440, %v3454
        %v3458 = vadd.f32 %v3441, %v3454
        %v3459 = vadd.f32 %v3442, %v3454
        %v3460 = vadd.f32 %v3443, %v3454
        %v3461 = vadd.f32 %v3444, %v3454
        %v3462 = vadd.f32 %v3445, %v3454
        %v3463 = vadd.f32 %v3446, %v3454
        %v3464 = vadd.f32 %v3447, %v3454
        %v3465 = vadd.f32 %v3448, %v3454
        %v3466 = vmax.f32 %v3456, 0.0
        %v3467 = vmax.f32 %v3457, 0.0
        %v3468 = vmax.f32 %v3458, 0.0
        %v3469 = vmax.f32 %v3459, 0.0
        %v3470 = vmax.f32 %v3460, 0.0
        %v3471 = vmax.f32 %v3461, 0.0
        %v3472 = vmax.f32 %v3462, 0.0
        %v3473 = vmax.f32 %v3463, 0.0
        %v3474 = vmax.f32 %v3464, 0.0
        %v3475 = vmax.f32 %v3465, 0.0
        %v3476 = vpack.c.bf16 %v3467, %v3466
        %v3477 = vpack.c.bf16 %v3469, %v3468
        %v3478 = vpack.c.bf16 %v3471, %v3470
        %v3479 = vpack.c.bf16 %v3473, %v3472
        %v3480 = vpack.c.bf16 %v3475, %v3474
        %v3481 = vld [vmem:[%s13] sm:$0xf]
        %v3482 = vld [vmem:[%s13 + $0x4] sm:$0xf]
        %v3483 = vld [vmem:[%s13 + $0x8] sm:$0xf]
        %v3484 = vld [vmem:[%s13 + $0xc] sm:$0xf]
        %v3485 = vld [vmem:[%s13 + $0x10] sm:$0xf]
        %v3486 = vld [vmem:[%s13 + $0x14] sm:$0xf]
        %v3487 = vld [vmem:[%s13 + $0x18] sm:$0xf]
        %v3488 = vld [vmem:[%s13 + $0x1c] sm:$0xf]
        %v3489 = vld [vmem:[%s13 + $0x20] sm:$0xf]
        %v3490 = vld [vmem:[%s13 + $0x24] sm:$0xf]
        %v3491 = vld [vmem:[%s13 + $0x28] sm:$0xf]
        %v3492 = vld [vmem:[%s13 + $0x2c] sm:$0xf]
        %v3493 = vld [vmem:[%s13 + $0x30] sm:$0xf]
        %v3494 = vld [vmem:[%s13 + $0x34] sm:$0xf]
        %v3495 = vld [vmem:[%s13 + $0x38] sm:$0xf]
        %v3496 = vld [vmem:[%s13 + $0x3c] sm:$0xf]
        %v3497 = vld [vmem:[%s14] sm:$0x1]
        %v3499 = vlaneseq
        %v3500 = vshrl.u32 %v3499, 7
        %v3501 = vsub.s32 0, %v3500
        %v3502 = vrot.slane %v3497, %v3501
        %v3520 = vunpack.c.l.b16 %v3481
        %v3521 = vunpack.c.l.b16 %v3482
        %v3522 = vunpack.c.l.b16 %v3483
        %v3523 = vunpack.c.l.b16 %v3484
        %v3524 = vunpack.c.l.b16 %v3485
        %v3525 = vunpack.c.l.b16 %v3486
        %v3526 = vunpack.c.l.b16 %v3487
        %v3527 = vunpack.c.l.b16 %v3488
        %v3528 = vunpack.c.l.b16 %v3489
        %v3529 = vunpack.c.l.b16 %v3490
        %v3530 = vunpack.c.l.b16 %v3491
        %v3531 = vunpack.c.l.b16 %v3492
        %v3532 = vunpack.c.l.b16 %v3493
        %v3533 = vunpack.c.l.b16 %v3494
        %v3534 = vunpack.c.l.b16 %v3495
        %v3535 = vunpack.c.l.b16 %v3496
        %v3536 = vpack.c.b16 %v3521, %v3520
        %v3537 = vpack.c.b16 %v3523, %v3522
        %v3538 = vpack.c.b16 %v3525, %v3524
        %v3539 = vpack.c.b16 %v3527, %v3526
        %v3540 = vpack.c.b16 %v3529, %v3528
        %v3541 = vpack.c.b16 %v3531, %v3530
        %v3542 = vpack.c.b16 %v3533, %v3532
        %v3543 = vpack.c.b16 %v3535, %v3534
        %3552 = vmatprep.subr.bf16.mxu0 0
        %3553 = vmatpush1.bf16.msra.mxu0 %v3543
        %3554 = vmatprep.subr.bf16.mxu0 0
        %3555 = vmatpush1.bf16.msra.mxu0 %v3542
        %3556 = vmatprep.subr.bf16.mxu0 0
        %3557 = vmatpush1.bf16.msra.mxu0 %v3541
        %3558 = vmatprep.subr.bf16.mxu0 0
        %3559 = vmatpush1.bf16.msra.mxu0 %v3540
        %3560 = vmatprep.subr.bf16.mxu0 0
        %3561 = vmatpush1.bf16.msra.mxu0 %v3539
        %3562 = vmatprep.subr.bf16.mxu0 0
        %3563 = vmatpush1.bf16.msra.mxu0 %v3538
        %3564 = vmatprep.subr.bf16.mxu0 0
        %3565 = vmatpush1.bf16.msra.mxu0 %v3537
        %3566 = vmatprep.subr.bf16.mxu0 0
        %3567 = vmatpush1.bf16.msra.mxu0 %v3536
        %3568 = vmatprep.subr.bf16.mxu0 0
        %3569 = vmatpush2.bf16.msra.mxu0 0
        %3570 = vmatprep.subr.bf16.mxu0 0
        %3571 = vmatpush2.bf16.msra.mxu0 0
        %3572 = vmatprep.subr.bf16.mxu0 0
        %3573 = vmatpush2.bf16.msra.mxu0 0
        %3574 = vmatprep.subr.bf16.mxu0 0
        %3575 = vmatpush2.bf16.msra.mxu0 0
        %3576 = vmatprep.subr.bf16.mxu0 0
        %3577 = vmatpush2.bf16.msra.mxu0 0
        %3578 = vmatprep.subr.bf16.mxu0 0
        %3579 = vmatpush2.bf16.msra.mxu0 0
        %3580 = vmatprep.subr.bf16.mxu0 0
        %3581 = vmatpush2.bf16.msra.mxu0 0
        %3582 = vmatprep.subr.bf16.mxu0 0
        %3583 = vmatpush2.bf16.msra.mxu0 0
        %3584 = vmatprep.mubr.bf16.mxu0 0
        %3585 = vmatmul.mubr.bf16.gmra.mxu0 %v3476
        %v3586 = vpop.f32.mrf.mxu0
        %v3587 = vadd.f32 %v3502, %v3586
        %v3588 = vpop.f32.mrf.mxu0
        %v3589 = vpop.f32.mrf.mxu0
        %v3590 = vadd.f32 %v3502, %v3589
        %v3591 = vpop.f32.mrf.mxu0
        %3592 = vmatprep.mubr.bf16.mxu0 0
        %3593 = vmatmul.mubr.bf16.gmra.mxu0 %v3477
        %v3594 = vpop.f32.mrf.mxu0
        %v3595 = vadd.f32 %v3502, %v3594
        %v3596 = vpop.f32.mrf.mxu0
        %v3597 = vpop.f32.mrf.mxu0
        %v3598 = vadd.f32 %v3502, %v3597
        %v3599 = vpop.f32.mrf.mxu0
        %3600 = vmatprep.mubr.bf16.mxu0 0
        %3601 = vmatmul.mubr.bf16.gmra.mxu0 %v3478
        %v3602 = vpop.f32.mrf.mxu0
        %v3603 = vadd.f32 %v3502, %v3602
        %v3604 = vpop.f32.mrf.mxu0
        %v3605 = vpop.f32.mrf.mxu0
        %v3606 = vadd.f32 %v3502, %v3605
        %v3607 = vpop.f32.mrf.mxu0
        %3608 = vmatprep.mubr.bf16.mxu0 0
        %3609 = vmatmul.mubr.bf16.gmra.mxu0 %v3479
        %v3610 = vpop.f32.mrf.mxu0
        %v3611 = vadd.f32 %v3502, %v3610
        %v3612 = vpop.f32.mrf.mxu0
        %v3613 = vpop.f32.mrf.mxu0
        %v3614 = vadd.f32 %v3502, %v3613
        %v3615 = vpop.f32.mrf.mxu0
        %3616 = vmatprep.mubr.bf16.mxu0 0
        %3617 = vmatmul.mubr.bf16.gmra.mxu0 %v3480
        %v3618 = vpop.f32.mrf.mxu0
        %v3619 = vadd.f32 %v3502, %v3618
        %v3620 = vpop.f32.mrf.mxu0
        %v3621 = vpop.f32.mrf.mxu0
        %v3622 = vadd.f32 %v3502, %v3621
        %v3623 = vpop.f32.mrf.mxu0
        %3624 = vdwg.mxu0
        %v3625 = vadd.f32 %v3587, %v664
        %v3626 = vadd.f32 %v3590, %v665
        %v3627 = vadd.f32 %v3595, %v666
        %v3628 = vadd.f32 %v3598, %v667
        %v3629 = vadd.f32 %v3603, %v668
        %v3630 = vadd.f32 %v3606, %v669
        %v3631 = vadd.f32 %v3611, %v670
        %v3632 = vadd.f32 %v3614, %v671
        %v3633 = vadd.f32 %v3619, %v672
        %v3634 = vadd.f32 %v3622, %v673
        %3635 = vst [vmem:[%s633] sm:$0xff] %v3625
        %3636 = vst [vmem:[%s633 + $0x8] sm:$0xff] %v3626
        %3637 = vst [vmem:[%s633 + $0x10] sm:$0xff] %v3627
        %3638 = vst [vmem:[%s633 + $0x18] sm:$0xff] %v3628
        %3639 = vst [vmem:[%s633 + $0x20] sm:$0xff] %v3629
        %3640 = vst [vmem:[%s633 + $0x28] sm:$0xff] %v3630
        %3641 = vst [vmem:[%s633 + $0x30] sm:$0xff] %v3631
        %3642 = vst [vmem:[%s633 + $0x38] sm:$0xff] %v3632
        %3643 = vst [vmem:[%s633 + $0x40] sm:$0xff] %v3633
        %3644 = vst [vmem:[%s633 + $0x48] sm:$0xff] %v3634
        %s3645 = sand.u32 %s374, 1
        %s3646 = scalar_lea.sflag [#allocation4], %s3645
        %s3647 = sand.u32 %s374, 1
        %s3648 = smul.addr %s3647, 80
        %s3649 = scalar_lea.vmem [#allocation11], %s3648
        // Predicated region
        $region101: #{edge_func.1} parent=79 // pred_check
          %p3650 = pneg %p384
        $region102: #{edge_func.1} parent=79 // pred_check_branch
          %3652 = sbr.rel (%p3650) target = $region104
        $region103: #{edge_func.1} parent=79 // pred_region
          %s3653 = smul.u32 10, %s36
          %s3654 = ssub.s32 38, %s3653
          %p3655 = scmp.lt.s32.totalorder %s3654, 10
          %s3656 = scalar_select %p3655, %s3654, 10
          %s3657 = smul.u32 128, %s3656
          %s3659 = ssub.s32 1280, %s3657
          %3660 = vsyncadd %s3646, %s3659
          %p3661 = scmp.ne.s32.totalorder 0, %s3657
          %s3662 = smul.addr %s3653, 128
          %s3663 = scalar_lea.hbm %s15, %s3662
          %s3664 = smul.u32 8, %s3656
          %s3665 = sshll.u32 %s3649, 4
          %s3666 = int_to_ptr.vmem [resolvable:$true] %s3665
          %s3667 = sshll.u32 %s3664, 4
          %3671 = dma.vmem_to_hbm [thread:$0]  (%p3661), %s3666, %s3667, %s3663, %s3646, 128, 128, 8
        $region104: #{edge_func.1} parent=79 // pred_fallthru
          _
      $region80: #{edge_func.1} parent=5 // pred_fallthru
        _
      %p3672 = scmp.le.s32.totalorder 2, %s31
      // Predicated region
      $region105: #{edge_func.1} parent=5 // pred_check
        %p3673 = pneg %p3672
      $region106: #{edge_func.1} parent=5 // pred_check_branch
        %3675 = sbr.rel (%p3673) target = $region108
      $region107: #{edge_func.1} parent=5 // pred_region
        %s3676 = ssub.s32 %s31, 2
        // Predicated region
        $region109: #{edge_func.1} parent=107 // pred_check
          %p3677 = pneg %p390
        $region110: #{edge_func.1} parent=107 // pred_check_branch
          %3679 = sbr.rel (%p3677) target = $region112
        $region111: #{edge_func.1} parent=107 // pred_region
          %s3680 = sand.u32 %s375, 1
          %s3681 = scalar_lea.sflag [#allocation4], %s3680
          %s3682 = sand.u32 %s375, 1
          %s3683 = smul.addr %s3682, 80
          %s3684 = scalar_lea.vmem [#allocation11], %s3683
          %3685 = dma.done %s3681, 1280
        $region112: #{edge_func.1} parent=107 // pred_fallthru
          _
      $region108: #{edge_func.1} parent=5 // pred_fallthru
        _
    $region6: #{edge_func.1} parent=1 // loop_footer
      %s35 = sadd.s32 1, %s31
    $region7: #{edge_func.1} parent=1 // loop_footer_branch
      %30 = sbr.rel target = $region3
    $region8: #{edge_func.1} parent=1 // loop_exit
      _
    %3686 = vsyncpa [#allocation3], 1
    %s3687 = scalar_lea.sflag [#allocation3], 1
    %3688 = vsyncpa %s3687, 1
    %3689 = vsyncpa [#allocation6], 1
    %s3690 = scalar_lea.sflag [#allocation6], 1
    %3691 = vsyncpa %s3690, 1
    %3692 = vsyncpa [#allocation9], 1
    %3693 = vsyncpa [#allocation4], 1
    %s3694 = scalar_lea.sflag [#allocation4], 1
    %3695 = vsyncpa %s3694, 1

</llo_original>
